<compile_context>
chip_gen: v5e
topology: v5e:2x2
jax: 0.10.0
libtpu: 0.0.40
codegen_flags: <defaults>
</compile_context>

<pallas_src>
import functools

import jax
import jax.numpy as jnp
from jax.experimental import pallas as pl
from jax.experimental.pallas import tpu as pltpu


# ---------------------------------------------------------------------------
# Hardware-aware knobs
# ---------------------------------------------------------------------------
_WEIGHT_SINGLE_BUFFER = False  # set by detect_single_buffer() before jitting


def _vmem_limit_bytes():
    """Per-generation VMEM budget: ~3/4 of physical (96MiB v5e/v6e, 48MiB v7x)."""
    try:
        cap = int(pltpu.get_tpu_info().vmem_capacity_bytes)
    except Exception:
        cap = 128 * 1024 * 1024
    return int(max(32 * 1024 * 1024, min(cap * 3 // 4, cap - (8 << 20))))


def detect_single_buffer():
    """Probe whether pl.Buffered(1) (no double-buffering of VMEM-resident
    weights) compiles and runs on this jax/libtpu; fall back gracefully."""
    global _WEIGHT_SINGLE_BUFFER
    try:
        def _k(x_ref, w_ref, o_ref):
            o_ref[...] = x_ref[...] + w_ref[...]

        out = pl.pallas_call(
            _k,
            out_shape=jax.ShapeDtypeStruct((2, 8, 128), jnp.float32),
            grid_spec=pltpu.PrefetchScalarGridSpec(
                num_scalar_prefetch=0,
                grid=(2, 1),
                in_specs=[
                    pl.BlockSpec((None, 8, 128), lambda b, r: (b, 0, 0)),
                    pl.BlockSpec((8, 128), lambda b, r: (0, 0),
                                 pipeline_mode=pl.Buffered(1)),
                ],
                out_specs=pl.BlockSpec((None, 8, 128), lambda b, r: (b, 0, 0)),
            ),
        )(jnp.zeros((2, 8, 128), jnp.float32), jnp.ones((8, 128), jnp.float32))
        jax.block_until_ready(out)
        _WEIGHT_SINGLE_BUFFER = bool(jnp.all(out == 1.0))
    except Exception:
        _WEIGHT_SINGLE_BUFFER = False
    return _WEIGHT_SINGLE_BUFFER


def _resident_spec(shape):
    """BlockSpec for a VMEM-resident constant operand (weights / bias)."""
    nd = len(shape)

    def imap(b, r):
        return (0,) * nd

    if _WEIGHT_SINGLE_BUFFER:
        return pl.BlockSpec(shape, imap, pipeline_mode=pl.Buffered(1))
    return pl.BlockSpec(shape, imap)


# ---------------------------------------------------------------------------
# Tiling / weight-layout helpers
# ---------------------------------------------------------------------------
def _choose_tile_h(H):
    """Output rows per grid step.  Decoupled from W (the matmul M dim is th);
    take the whole image (or the largest multiple-of-8 divisor <= 512)."""
    if H <= 512 or H % 8 != 0:
        return H
    th = 512
    while th >= 8:
        if H % th == 0:
            return th
        th -= 8
    return H


def _band_weights(w, W):
    """(3,3,Cin,Cout) HWIO weight -> (3, W*Cin, W*Cout) block-Toeplitz bands
    over the UNPADDED lane axis (column zero-padding folded into the band)."""
    _, _, cin, cout = w.shape
    bands = []
    for dh in range(3):
        b4 = jnp.zeros((W, cin, W, cout), w.dtype)
        for dw in range(3):
            # input column wi feeds output column wo when wi == wo + dw - 1
            eye = jnp.eye(W, W, k=1 - dw, dtype=w.dtype)  # eye[wi, wo]
            b4 = b4 + jnp.einsum("wv,io->wivo", eye, w[dh, dw])
        bands.append(b4.reshape(W * cin, W * cout))
    return jnp.stack(bands, axis=0)


def _blockdiag_head(hw, W, nh_pad):
    """(Cin, Ncls) 1x1-conv weight -> (W*Cin, nh_pad) block-diagonal matrix,
    zero-padded on the output lanes so the masks store is lane-dense."""
    cin, ncls = hw.shape
    eye = jnp.eye(W, dtype=hw.dtype)
    blk = jnp.einsum("wv,io->wivo", eye, hw).reshape(W * cin, W * ncls)
    return jnp.pad(blk, ((0, 0), (0, nh_pad - W * ncls)))


# ---------------------------------------------------------------------------
# Pallas kernel: banded 3x3 conv (+ optional fused 1x1 segmentation head)
# ---------------------------------------------------------------------------
def _conv_kernel(*refs, n_in, th, H, act, head_act, has_head, single_tile):
    xs = refs[:n_in]                       # each (H, W*Ci) bf16
    ws = refs[n_in:2 * n_in]               # each (3, W*Ci, nb) bf16
    b_ref = refs[2 * n_in]                 # (1, nb) f32
    k = 2 * n_in + 1
    if has_head:
        hw_ref, hb_ref = refs[k], refs[k + 1]
        o_ref, m_ref = refs[k + 2], refs[k + 3]
    else:
        o_ref = refs[k]
    nb = o_ref.shape[-1]

    r0 = pl.multiple_of(pl.program_id(1) * th, 8)   # sublane-aligned tile start

    a_prev = a_mid = a_next = None
    top = bot = None
    for i in range(n_in):
        w0, w1, w2 = ws[i][0], ws[i][1], ws[i][2]
        if single_tile:
            xc = xs[i][...]                          # whole image rows
        else:
            xc = xs[i][pl.ds(r0, th), :]             # aligned (th, Ki) tile
        p0 = jnp.dot(xc, w0, preferred_element_type=jnp.float32)
        p1 = jnp.dot(xc, w1, preferred_element_type=jnp.float32)
        p2 = jnp.dot(xc, w2, preferred_element_type=jnp.float32)
        a_prev = p0 if a_prev is None else a_prev + p0
        a_mid = p1 if a_mid is None else a_mid + p1
        a_next = p2 if a_next is None else a_next + p2
        if not single_tile:
            # single-row halo contributions from the neighbouring tiles
            xt = xs[i][pl.ds(jnp.maximum(r0 - 1, 0), 1), :]
            xb = xs[i][pl.ds(jnp.minimum(r0 + th, H - 1), 1), :]
            tdot = jnp.dot(xt, w0, preferred_element_type=jnp.float32)
            bdot = jnp.dot(xb, w2, preferred_element_type=jnp.float32)
            top = tdot if top is None else top + tdot
            bot = bdot if bot is None else bot + bdot

    # Row taps: out[h] = a_prev[h-1] + a_mid[h] + a_next[h+1]  (zero outside).
    row = jax.lax.broadcasted_iota(jnp.int32, (th, nb), 0)
    prev_sh = pltpu.roll(a_prev, 1, axis=0)          # row h <- a_prev[h-1]
    next_sh = pltpu.roll(a_next, th - 1, axis=0)     # row h <- a_next[h+1]
    if single_tile:
        prev_sh = jnp.where(row == 0, 0.0, prev_sh)
        next_sh = jnp.where(row == th - 1, 0.0, next_sh)
    else:
        top = jnp.where(r0 > 0, top, 0.0)
        bot = jnp.where(r0 + th < H, bot, 0.0)
        prev_sh = jnp.where(row == 0, top, prev_sh)
        next_sh = jnp.where(row == th - 1, bot, next_sh)

    y = a_mid + prev_sh + next_sh + b_ref[...]
    if act == "relu":
        y = jnp.maximum(y, 0.0)
    elif act == "sigmoid":
        y = jax.nn.sigmoid(y)                        # EUP slot
    o_ref[...] = y.astype(o_ref.dtype)               # bf16 write-back

    if has_head:
        # fused 1x1 segmentation head (block-diagonal, lane-padded to 128)
        m = jnp.dot(y.astype(jnp.bfloat16), hw_ref[...],
                    preferred_element_type=jnp.float32) + hb_ref[...]
        if head_act == "sigmoid":
            m = jax.nn.sigmoid(m)
        m_ref[...] = m.astype(m_ref.dtype)


# ---------------------------------------------------------------------------
# pallas_call wrapper
# ---------------------------------------------------------------------------
def _conv_call(xs2d, wbands, bias_t, *, B, H, th, nb, act,
               head=None, head_act=None):
    n_in = len(xs2d)
    nrt = H // th
    single_tile = (nrt == 1)

    in_specs = [pl.BlockSpec((None, H, x.shape[-1]), lambda b, r: (b, 0, 0))
                for x in xs2d]
    in_specs += [_resident_spec(wb.shape) for wb in wbands]
    in_specs += [_resident_spec(bias_t.shape)]
    args = list(xs2d) + list(wbands) + [bias_t]

    flops = sum(2 * B * H * 3 * wb.shape[1] * nb for wb in wbands)
    trans = 0
    bytes_acc = (sum(x.size * 2 for x in xs2d)
                 + sum(wb.size * 2 for wb in wbands) + bias_t.size * 4)

    has_head = head is not None
    if not has_head:
        kern = functools.partial(_conv_kernel, n_in=n_in, th=th, H=H, act=act,
                                 head_act=None, has_head=False,
                                 single_tile=single_tile)
        out_shape = jax.ShapeDtypeStruct((B, H, nb), jnp.bfloat16)
        out_specs = pl.BlockSpec((None, th, nb), lambda b, r: (b, r, 0))
        bytes_acc += B * H * nb * 2
    else:
        hwbd, hbias = head
        nh = hwbd.shape[-1]
        kern = functools.partial(_conv_kernel, n_in=n_in, th=th, H=H, act=act,
                                 head_act=head_act, has_head=True,
                                 single_tile=single_tile)
        in_specs += [_resident_spec(hwbd.shape), _resident_spec(hbias.shape)]
        args += [hwbd, hbias]
        out_shape = (jax.ShapeDtypeStruct((B, H, nb), jnp.bfloat16),
                     jax.ShapeDtypeStruct((B, H, nh), jnp.float32))
        out_specs = [pl.BlockSpec((None, th, nb), lambda b, r: (b, r, 0)),
                     pl.BlockSpec((None, th, nh), lambda b, r: (b, r, 0))]
        flops += 2 * B * H * nb * nh
        trans = B * H * nh if head_act == "sigmoid" else 0
        bytes_acc += hwbd.size * 2 + hbias.size * 4 + B * H * (nb * 2 + nh * 4)

    return pl.pallas_call(
        kern,
        out_shape=out_shape,
        grid_spec=pltpu.PrefetchScalarGridSpec(
            num_scalar_prefetch=0,
            grid=(B, nrt),
            in_specs=in_specs,
            out_specs=out_specs,
        ),
        compiler_params=pltpu.CompilerParams(
            dimension_semantics=("parallel", "parallel"),
            vmem_limit_bytes=_vmem_limit_bytes(),
        ),
        cost_estimate=pl.CostEstimate(flops=flops, transcendentals=trans,
                                      bytes_accessed=bytes_acc),
    )(*args)


def conv3x3(inputs, w, bias, *, act="relu", head=None, head_act=None):
    """3x3 SAME conv over the channel-concatenation of `inputs` (list of NHWC
    arrays).  The concat is never materialized: each operand gets its own
    block-Toeplitz band (the conv weight split along Cin)."""
    if not isinstance(inputs, (list, tuple)):
        inputs = [inputs]
    B, H, W, _ = inputs[0].shape
    cout = w.shape[-1]
    nb = W * cout
    th = _choose_tile_h(H)

    xs2d, wbands, off = [], [], 0
    for xin in inputs:
        ci = xin.shape[-1]
        xs2d.append(xin.astype(jnp.bfloat16).reshape(B, H, W * ci))
        wbands.append(_band_weights(w[:, :, off:off + ci, :], W)
                      .astype(jnp.bfloat16))
        off += ci
    assert off == w.shape[2], "input channels must match the conv weight"
    bias_t = jnp.tile(bias.astype(jnp.float32), W).reshape(1, nb)

    if head is None:
        out = _conv_call(xs2d, wbands, bias_t, B=B, H=H, th=th, nb=nb, act=act)
        return out.reshape(B, H, W, cout)

    head_w, head_b = head
    n_cls = head_w.shape[-1]
    nh = max(128, -(-(W * n_cls) // 128) * 128)     # lane-dense head width
    hwbd = _blockdiag_head(head_w.astype(jnp.float32), W, nh).astype(jnp.bfloat16)
    hbias = jnp.pad(jnp.tile(head_b.astype(jnp.float32), W),
                    (0, nh - W * n_cls)).reshape(1, nh)
    dec, masks = _conv_call(xs2d, wbands, bias_t, B=B, H=H, th=th, nb=nb,
                            act=act, head=(hwbd, hbias), head_act=head_act)
    dec = dec.reshape(B, H, W, cout)
    masks = masks[:, :, :W * n_cls].reshape(B, H, W, n_cls)
    return dec, masks


# ---------------------------------------------------------------------------
# XLA glue ops between conv kernels
# TODO(synk): pooling / nearest-upsampling are left as cheap XLA ops.
# ---------------------------------------------------------------------------
def maxpool2(x):
    B, H, W, C = x.shape
    assert H % 2 == 0 and W % 2 == 0, "maxpool2 requires even spatial dims"
    return jnp.max(x.reshape(B, H // 2, 2, W // 2, 2, C), axis=(2, 4))


def upsample2(x):
    return jnp.repeat(jnp.repeat(x, 2, axis=1), 2, axis=2)


# ---------------------------------------------------------------------------
# Miniature UNet++ : params + forward (mirrors UNetPlusPlus.forward contract)
# ---------------------------------------------------------------------------
def init_unetpp_params(key, in_ch=3, classes=3, c0=8, c1=16, c2=32):
    specs = {
        "x00": (in_ch, c0), "x10": (c0, c1), "x20": (c1, c2),
        "x01": (c0 + c1, c0), "x11": (c1 + c2, c1), "x02": (c0 + c0 + c1, c0),
    }
    keys = jax.random.split(key, len(specs) + 1)
    params = {}
    for k, (name, (ci, co)) in zip(keys[:-1], specs.items()):
        params[name + "_w"] = (jax.random.normal(k, (3, 3, ci, co), jnp.float32)
                               / jnp.sqrt(9.0 * ci))
        params[name + "_b"] = jnp.zeros((co,), jnp.float32)
    params["head_w"] = (jax.random.normal(keys[-1], (c0, classes), jnp.float32)
                        / jnp.sqrt(float(c0)))
    params["head_b"] = jnp.zeros((classes,), jnp.float32)
    return params


def unetplusplus_forward(params, x_nchw, activation=None):
    """Returns (decoder_output, masks) in NCHW float32, like the torch module."""
    x = jnp.transpose(x_nchw, (0, 2, 3, 1)).astype(jnp.bfloat16)    # NCHW->NHWC
    # encoder column
    x00 = conv3x3([x], params["x00_w"], params["x00_b"])
    x10 = conv3x3([maxpool2(x00)], params["x10_w"], params["x10_b"])
    x20 = conv3x3([maxpool2(x10)], params["x20_w"], params["x20_b"])
    # UNet++ dense decoder nodes (skip concats passed as separate kernel inputs)
    x01 = conv3x3([x00, upsample2(x10)], params["x01_w"], params["x01_b"])
    x11 = conv3x3([x10, upsample2(x20)], params["x11_w"], params["x11_b"])
    dec, masks = conv3x3([x00, x01, upsample2(x11)],
                         params["x02_w"], params["x02_b"],
                         act="relu",
                         head=(params["head_w"], params["head_b"]),
                         head_act=activation)
    dec = jnp.transpose(dec, (0, 3, 1, 2)).astype(jnp.float32)
    masks = jnp.transpose(masks, (0, 3, 1, 2)).astype(jnp.float32)
    return dec, masks


# ---------------------------------------------------------------------------
# Pure-JAX reference (bf16 storage emulated) for correctness validation
# ---------------------------------------------------------------------------
def _ref_conv3x3(x, w, b, act="relu"):
    xq = x.astype(jnp.bfloat16).astype(jnp.float32)
    wq = w.astype(jnp.bfloat16).astype(jnp.float32)
    y = jax.lax.conv_general_dilated(xq, wq, (1, 1), "SAME",
                                     dimension_numbers=("NHWC", "HWIO", "NHWC"))
    y = y + b
    if act == "relu":
        y = jnp.maximum(y, 0.0)
    return y


def unetplusplus_reference(params, x_nchw, activation=None):
    q = lambda t: t.astype(jnp.bfloat16).astype(jnp.float32)
    x = q(jnp.transpose(x_nchw, (0, 2, 3, 1)))
    x00 = q(_ref_conv3x3(x, params["x00_w"], params["x00_b"]))
    x10 = q(_ref_conv3x3(maxpool2(x00), params["x10_w"], params["x10_b"]))
    x20 = q(_ref_conv3x3(maxpool2(x10), params["x20_w"], params["x20_b"]))
    x01 = q(_ref_conv3x3(jnp.concatenate([x00, upsample2(x10)], -1),
                         params["x01_w"], params["x01_b"]))
    x11 = q(_ref_conv3x3(jnp.concatenate([x10, upsample2(x20)], -1),
                         params["x11_w"], params["x11_b"]))
    dec = q(_ref_conv3x3(jnp.concatenate([x00, x01, upsample2(x11)], -1),
                         params["x02_w"], params["x02_b"]))
    hw = params["head_w"].astype(jnp.bfloat16).astype(jnp.float32)
    masks = jnp.einsum("bhwc,ck->bhwk", dec, hw) + params["head_b"]
    if activation == "sigmoid":
        masks = jax.nn.sigmoid(masks)
    return (jnp.transpose(dec, (0, 3, 1, 2)),
            jnp.transpose(masks, (0, 3, 1, 2)))


if __name__ == "__main__":
    detect_single_buffer()   # eager probe, must run before jit tracing

    key = jax.random.PRNGKey(0)
    k_params, k_x = jax.random.split(key)

    B, C_IN, H, W = 2, 3, 16, 16
    CLASSES = 3

    params = init_unetpp_params(k_params, in_ch=C_IN, classes=CLASSES)
    x = jax.random.normal(k_x, (B, C_IN, H, W), jnp.float32)

    # full forward (mirrors UNetPlusPlus.forward, activation=None)
    fwd = jax.jit(functools.partial(unetplusplus_forward, activation=None))
    decoder_output, masks = fwd(params, x)
    jax.block_until_ready((decoder_output, masks))

    assert decoder_output.shape == (B, 8, H, W)
    assert masks.shape == (B, CLASSES, H, W)
    assert bool(jnp.all(jnp.isfinite(decoder_output)))
    assert bool(jnp.all(jnp.isfinite(masks)))

    # pure-JAX reference (bf16-storage emulated) -- validates band layout,
    # in-kernel halo handling, concat splitting and the fused head.
    ref_dec, ref_masks = unetplusplus_reference(params, x, activation=None)
    assert bool(jnp.allclose(decoder_output, ref_dec, atol=5e-2, rtol=5e-2)), (
        "dec max abs err", float(jnp.max(jnp.abs(decoder_output - ref_dec))))
    assert bool(jnp.allclose(masks, ref_masks, atol=5e-2, rtol=5e-2)), (
        "masks max abs err", float(jnp.max(jnp.abs(masks - ref_masks))))

    print("KERNEL_OK")
</pallas_src>

<mosaic_0001>
module attributes {stable_mosaic.version = 11 : i64} {
  func.func @_k(%arg0: i32, %arg1: i32, %arg2: memref<1x8x128xf32, #tpu.memory_space<vmem>>, %arg3: memref<8x128xf32, #tpu.memory_space<vmem>>, %arg4: memref<1x8x128xf32, #tpu.memory_space<vmem>>) attributes {dimension_semantics = [#tpu.dimension_semantics<arbitrary>, #tpu.dimension_semantics<arbitrary>], iteration_bounds = array<i64: 2, 1>, scalar_prefetch = 0 : i64, scratch_operands = 0 : i64, tpu.core_type = #tpu.core_type<tc>, window_params = [{transform_indices = @transform_0, window_bounds = array<i64: 1, 8, 128>}, {pipeline_mode = #tpu.pipeline_mode<synchronous>, transform_indices = @transform_1, window_bounds = array<i64: 8, 128>}, {transform_indices = @transform_2, window_bounds = array<i64: 1, 8, 128>}]} {
    %c0 = arith.constant 0 : index
    %c0_0 = arith.constant 0 : index
    %c0_1 = arith.constant 0 : index
    %0 = vector.load %arg2[%c0, %c0_0, %c0_1] : memref<1x8x128xf32, #tpu.memory_space<vmem>>, vector<1x8x128xf32>
    %1 = vector.shape_cast %0 : vector<1x8x128xf32> to vector<8x128xf32>
    %c0_2 = arith.constant 0 : index
    %c0_3 = arith.constant 0 : index
    %2 = vector.load %arg3[%c0_2, %c0_3] : memref<8x128xf32, #tpu.memory_space<vmem>>, vector<8x128xf32>
    %3 = arith.addf %1, %2 : vector<8x128xf32>
    %c0_4 = arith.constant 0 : index
    %c0_5 = arith.constant 0 : index
    %c0_6 = arith.constant 0 : index
    %4 = vector.load %arg4[%c0_4, %c0_5, %c0_6] : memref<1x8x128xf32, #tpu.memory_space<vmem>>, vector<1x8x128xf32>
    %5 = vector.shape_cast %4 : vector<1x8x128xf32> to vector<8x128xf32>
    %6 = vector.shape_cast %3 : vector<8x128xf32> to vector<1x8x128xf32>
    tpu.vector_store %arg4[%c0_4, %c0_5, %c0_6], %6 {strides = array<i32>} : memref<1x8x128xf32, #tpu.memory_space<vmem>>, vector<1x8x128xf32>,
    return
  }
  func.func @transform_0(%arg0: i32, %arg1: i32) -> (i32, i32, i32) {
    %c0_i32 = arith.constant 0 : i32
    %c0_i32_0 = arith.constant 0 : i32
    %c0_i32_1 = arith.constant 0 : i32
    return %arg0, %c0_i32, %c0_i32_0 : i32, i32, i32
  }
  func.func @transform_1(%arg0: i32, %arg1: i32) -> (i32, i32) {
    %c0_i32 = arith.constant 0 : i32
    %c0_i32_0 = arith.constant 0 : i32
    %c0_i32_1 = arith.constant 0 : i32
    return %c0_i32, %c0_i32_0 : i32, i32
  }
  func.func @transform_2(%arg0: i32, %arg1: i32) -> (i32, i32, i32) {
    %c0_i32 = arith.constant 0 : i32
    %c0_i32_0 = arith.constant 0 : i32
    %c0_i32_1 = arith.constant 0 : i32
    return %arg0, %c0_i32, %c0_i32_0 : i32, i32, i32
  }
}

module attributes {stable_mosaic.version = 11 : i64} {
  func.func @_conv_kernel(%arg0: i32, %arg1: i32, %arg2: memref<1x16x48xbf16, #tpu.memory_space<vmem>>, %arg3: memref<3x48x128xbf16, #tpu.memory_space<vmem>>, %arg4: memref<1x128xf32, #tpu.memory_space<vmem>>, %arg5: memref<1x16x128xbf16, #tpu.memory_space<vmem>>) attributes {dimension_semantics = [#tpu.dimension_semantics<parallel>, #tpu.dimension_semantics<parallel>], iteration_bounds = array<i64: 2, 1>, scalar_prefetch = 0 : i64, scratch_operands = 0 : i64, tpu.core_type = #tpu.core_type<tc>, window_params = [{transform_indices = @transform_0, window_bounds = array<i64: 1, 16, 48>}, {pipeline_mode = #tpu.pipeline_mode<synchronous>, transform_indices = @transform_1, window_bounds = array<i64: 3, 48, 128>}, {pipeline_mode = #tpu.pipeline_mode<synchronous>, transform_indices = @transform_2, window_bounds = array<i64: 1, 128>}, {transform_indices = @transform_3, window_bounds = array<i64: 1, 16, 128>}]} {
    %c0 = arith.constant 0 : index
    %c0_0 = arith.constant 0 : index
    %c0_1 = arith.constant 0 : index
    %0 = vector.load %arg3[%c0, %c0_0, %c0_1] : memref<3x48x128xbf16, #tpu.memory_space<vmem>>, vector<1x48x128xbf16>
    %1 = vector.shape_cast %0 : vector<1x48x128xbf16> to vector<48x128xbf16>
    %c1 = arith.constant 1 : index
    %c0_2 = arith.constant 0 : index
    %c0_3 = arith.constant 0 : index
    %2 = vector.load %arg3[%c1, %c0_2, %c0_3] : memref<3x48x128xbf16, #tpu.memory_space<vmem>>, vector<1x48x128xbf16>
    %3 = vector.shape_cast %2 : vector<1x48x128xbf16> to vector<48x128xbf16>
    %c2 = arith.constant 2 : index
    %c0_4 = arith.constant 0 : index
    %c0_5 = arith.constant 0 : index
    %4 = vector.load %arg3[%c2, %c0_4, %c0_5] : memref<3x48x128xbf16, #tpu.memory_space<vmem>>, vector<1x48x128xbf16>
    %5 = vector.shape_cast %4 : vector<1x48x128xbf16> to vector<48x128xbf16>
    %c0_6 = arith.constant 0 : index
    %c0_7 = arith.constant 0 : index
    %c0_8 = arith.constant 0 : index
    %6 = vector.load %arg2[%c0_6, %c0_7, %c0_8] : memref<1x16x48xbf16, #tpu.memory_space<vmem>>, vector<1x16x48xbf16>
    %7 = vector.shape_cast %6 : vector<1x16x48xbf16> to vector<16x48xbf16>
    %cst = arith.constant dense<0.000000e+00> : vector<16x128xf32>
    %8 = tpu.matmul %7, %1, %cst {dimension_numbers = #tpu.dot_dimension_numbers<[1], [0], [0], [1], [0, 0, 1, 1], [], []>} : vector<16x48xbf16>, vector<48x128xbf16>, vector<16x128xf32> -> vector<16x128xf32>
    %cst_9 = arith.constant dense<0.000000e+00> : vector<16x128xf32>
    %9 = tpu.matmul %7, %3, %cst_9 {dimension_numbers = #tpu.dot_dimension_numbers<[1], [0], [0], [1], [0, 0, 1, 1], [], []>} : vector<16x48xbf16>, vector<48x128xbf16>, vector<16x128xf32> -> vector<16x128xf32>
    %cst_10 = arith.constant dense<0.000000e+00> : vector<16x128xf32>
    %10 = tpu.matmul %7, %5, %cst_10 {dimension_numbers = #tpu.dot_dimension_numbers<[1], [0], [0], [1], [0, 0, 1, 1], [], []>} : vector<16x48xbf16>, vector<48x128xbf16>, vector<16x128xf32> -> vector<16x128xf32>
    %11 = tpu.iota {dimensions = array<i32: 0>} : vector<16x128xi32>
    %c1_i32 = arith.constant 1 : i32
    %12 = tpu.dynamic_rotate %8 by %c1_i32 dim 0 : vector<16x128xf32>, i32 -> vector<16x128xf32>
    %c15_i32 = arith.constant 15 : i32
    %13 = tpu.dynamic_rotate %10 by %c15_i32 dim 0 : vector<16x128xf32>, i32 -> vector<16x128xf32>
    %c0_i32 = arith.constant 0 : i32
    %14 = vector.broadcast %c0_i32 : i32 to vector<16x128xi32>
    %15 = arith.cmpi eq, %11, %14 : vector<16x128xi32>
    %cst_11 = arith.constant 0.000000e+00 : f32
    %16 = vector.broadcast %cst_11 : f32 to vector<16x128xf32>
    %17 = arith.select %15, %16, %12 : vector<16x128xi1>, vector<16x128xf32>
    %c15_i32_12 = arith.constant 15 : i32
    %18 = vector.broadcast %c15_i32_12 : i32 to vector<16x128xi32>
    %19 = arith.cmpi eq, %11, %18 : vector<16x128xi32>
    %cst_13 = arith.constant 0.000000e+00 : f32
    %20 = vector.broadcast %cst_13 : f32 to vector<16x128xf32>
    %21 = arith.select %19, %20, %13 : vector<16x128xi1>, vector<16x128xf32>
    %22 = arith.addf %9, %17 : vector<16x128xf32>
    %23 = arith.addf %22, %21 : vector<16x128xf32>
    %c0_14 = arith.constant 0 : index
    %c0_15 = arith.constant 0 : index
    %24 = vector.load %arg4[%c0_14, %c0_15] : memref<1x128xf32, #tpu.memory_space<vmem>>, vector<1x128xf32>
    %25 = vector.broadcast %24 : vector<1x128xf32> to vector<16x128xf32>
    %26 = arith.addf %23, %25 : vector<16x128xf32>
    %cst_16 = arith.constant 0.000000e+00 : f32
    %27 = vector.broadcast %cst_16 : f32 to vector<16x128xf32>
    %28 = arith.maximumf %26, %27 : vector<16x128xf32>
    %29 = arith.truncf %28 : vector<16x128xf32> to vector<16x128xbf16>
    %c0_17 = arith.constant 0 : index
    %c0_18 = arith.constant 0 : index
    %c0_19 = arith.constant 0 : index
    %30 = vector.load %arg5[%c0_17, %c0_18, %c0_19] : memref<1x16x128xbf16, #tpu.memory_space<vmem>>, vector<1x16x128xbf16>
    %31 = vector.shape_cast %30 : vector<1x16x128xbf16> to vector<16x128xbf16>
    %32 = vector.shape_cast %29 : vector<16x128xbf16> to vector<1x16x128xbf16>
    tpu.vector_store %arg5[%c0_17, %c0_18, %c0_19], %32 {strides = array<i32>} : memref<1x16x128xbf16, #tpu.memory_space<vmem>>, vector<1x16x128xbf16>,
    return
  }
  func.func @transform_0(%arg0: i32, %arg1: i32) -> (i32, i32, i32) {
    %c0_i32 = arith.constant 0 : i32
    %c0_i32_0 = arith.constant 0 : i32
    %c0_i32_1 = arith.constant 0 : i32
    return %arg0, %c0_i32, %c0_i32_0 : i32, i32, i32
  }
  func.func @transform_1(%arg0: i32, %arg1: i32) -> (i32, i32, i32) {
    %c0_i32 = arith.constant 0 : i32
    %c0_i32_0 = arith.constant 0 : i32
    %c0_i32_1 = arith.constant 0 : i32
    %c0_i32_2 = arith.constant 0 : i32
    return %c0_i32, %c0_i32_0, %c0_i32_1 : i32, i32, i32
  }
  func.func @transform_2(%arg0: i32, %arg1: i32) -> (i32, i32) {
    %c0_i32 = arith.constant 0 : i32
    %c0_i32_0 = arith.constant 0 : i32
    %c0_i32_1 = arith.constant 0 : i32
    return %c0_i32, %c0_i32_0 : i32, i32
  }
  func.func @transform_3(%arg0: i32, %arg1: i32) -> (i32, i32, i32) {
    %c0_i32 = arith.constant 0 : i32
    %c0_i32_0 = arith.constant 0 : i32
    return %arg0, %arg1, %c0_i32 : i32, i32, i32
  }
}

module attributes {stable_mosaic.version = 11 : i64} {
  func.func @_conv_kernel(%arg0: i32, %arg1: i32, %arg2: memref<1x8x64xbf16, #tpu.memory_space<vmem>>, %arg3: memref<3x64x128xbf16, #tpu.memory_space<vmem>>, %arg4: memref<1x128xf32, #tpu.memory_space<vmem>>, %arg5: memref<1x8x128xbf16, #tpu.memory_space<vmem>>) attributes {dimension_semantics = [#tpu.dimension_semantics<parallel>, #tpu.dimension_semantics<parallel>], iteration_bounds = array<i64: 2, 1>, scalar_prefetch = 0 : i64, scratch_operands = 0 : i64, tpu.core_type = #tpu.core_type<tc>, window_params = [{transform_indices = @transform_0, window_bounds = array<i64: 1, 8, 64>}, {pipeline_mode = #tpu.pipeline_mode<synchronous>, transform_indices = @transform_1, window_bounds = array<i64: 3, 64, 128>}, {pipeline_mode = #tpu.pipeline_mode<synchronous>, transform_indices = @transform_2, window_bounds = array<i64: 1, 128>}, {transform_indices = @transform_3, window_bounds = array<i64: 1, 8, 128>}]} {
    %c0 = arith.constant 0 : index
    %c0_0 = arith.constant 0 : index
    %c0_1 = arith.constant 0 : index
    %0 = vector.load %arg3[%c0, %c0_0, %c0_1] : memref<3x64x128xbf16, #tpu.memory_space<vmem>>, vector<1x64x128xbf16>
    %1 = vector.shape_cast %0 : vector<1x64x128xbf16> to vector<64x128xbf16>
    %c1 = arith.constant 1 : index
    %c0_2 = arith.constant 0 : index
    %c0_3 = arith.constant 0 : index
    %2 = vector.load %arg3[%c1, %c0_2, %c0_3] : memref<3x64x128xbf16, #tpu.memory_space<vmem>>, vector<1x64x128xbf16>
    %3 = vector.shape_cast %2 : vector<1x64x128xbf16> to vector<64x128xbf16>
    %c2 = arith.constant 2 : index
    %c0_4 = arith.constant 0 : index
    %c0_5 = arith.constant 0 : index
    %4 = vector.load %arg3[%c2, %c0_4, %c0_5] : memref<3x64x128xbf16, #tpu.memory_space<vmem>>, vector<1x64x128xbf16>
    %5 = vector.shape_cast %4 : vector<1x64x128xbf16> to vector<64x128xbf16>
    %c0_6 = arith.constant 0 : index
    %c0_7 = arith.constant 0 : index
    %c0_8 = arith.constant 0 : index
    %6 = vector.load %arg2[%c0_6, %c0_7, %c0_8] : memref<1x8x64xbf16, #tpu.memory_space<vmem>>, vector<1x8x64xbf16>
    %7 = vector.shape_cast %6 : vector<1x8x64xbf16> to vector<8x64xbf16>
    %cst = arith.constant dense<0.000000e+00> : vector<8x128xf32>
    %8 = tpu.matmul %7, %1, %cst {dimension_numbers = #tpu.dot_dimension_numbers<[1], [0], [0], [1], [0, 0, 1, 1], [], []>} : vector<8x64xbf16>, vector<64x128xbf16>, vector<8x128xf32> -> vector<8x128xf32>
    %cst_9 = arith.constant dense<0.000000e+00> : vector<8x128xf32>
    %9 = tpu.matmul %7, %3, %cst_9 {dimension_numbers = #tpu.dot_dimension_numbers<[1], [0], [0], [1], [0, 0, 1, 1], [], []>} : vector<8x64xbf16>, vector<64x128xbf16>, vector<8x128xf32> -> vector<8x128xf32>
    %cst_10 = arith.constant dense<0.000000e+00> : vector<8x128xf32>
    %10 = tpu.matmul %7, %5, %cst_10 {dimension_numbers = #tpu.dot_dimension_numbers<[1], [0], [0], [1], [0, 0, 1, 1], [], []>} : vector<8x64xbf16>, vector<64x128xbf16>, vector<8x128xf32> -> vector<8x128xf32>
    %11 = tpu.iota {dimensions = array<i32: 0>} : vector<8x128xi32>
    %c1_i32 = arith.constant 1 : i32
    %12 = tpu.dynamic_rotate %8 by %c1_i32 dim 0 : vector<8x128xf32>, i32 -> vector<8x128xf32>
    %c7_i32 = arith.constant 7 : i32
    %13 = tpu.dynamic_rotate %10 by %c7_i32 dim 0 : vector<8x128xf32>, i32 -> vector<8x128xf32>
    %c0_i32 = arith.constant 0 : i32
    %14 = vector.broadcast %c0_i32 : i32 to vector<8x128xi32>
    %15 = arith.cmpi eq, %11, %14 : vector<8x128xi32>
    %cst_11 = arith.constant 0.000000e+00 : f32
    %16 = vector.broadcast %cst_11 : f32 to vector<8x128xf32>
    %17 = arith.select %15, %16, %12 : vector<8x128xi1>, vector<8x128xf32>
    %c7_i32_12 = arith.constant 7 : i32
    %18 = vector.broadcast %c7_i32_12 : i32 to vector<8x128xi32>
    %19 = arith.cmpi eq, %11, %18 : vector<8x128xi32>
    %cst_13 = arith.constant 0.000000e+00 : f32
    %20 = vector.broadcast %cst_13 : f32 to vector<8x128xf32>
    %21 = arith.select %19, %20, %13 : vector<8x128xi1>, vector<8x128xf32>
    %22 = arith.addf %9, %17 : vector<8x128xf32>
    %23 = arith.addf %22, %21 : vector<8x128xf32>
    %c0_14 = arith.constant 0 : index
    %c0_15 = arith.constant 0 : index
    %24 = vector.load %arg4[%c0_14, %c0_15] : memref<1x128xf32, #tpu.memory_space<vmem>>, vector<1x128xf32>
    %25 = vector.broadcast %24 : vector<1x128xf32> to vector<8x128xf32>
    %26 = arith.addf %23, %25 : vector<8x128xf32>
    %cst_16 = arith.constant 0.000000e+00 : f32
    %27 = vector.broadcast %cst_16 : f32 to vector<8x128xf32>
    %28 = arith.maximumf %26, %27 : vector<8x128xf32>
    %29 = arith.truncf %28 : vector<8x128xf32> to vector<8x128xbf16>
    %c0_17 = arith.constant 0 : index
    %c0_18 = arith.constant 0 : index
    %c0_19 = arith.constant 0 : index
    %30 = vector.load %arg5[%c0_17, %c0_18, %c0_19] : memref<1x8x128xbf16, #tpu.memory_space<vmem>>, vector<1x8x128xbf16>
    %31 = vector.shape_cast %30 : vector<1x8x128xbf16> to vector<8x128xbf16>
    %32 = vector.shape_cast %29 : vector<8x128xbf16> to vector<1x8x128xbf16>
    tpu.vector_store %arg5[%c0_17, %c0_18, %c0_19], %32 {strides = array<i32>} : memref<1x8x128xbf16, #tpu.memory_space<vmem>>, vector<1x8x128xbf16>,
    return
  }
  func.func @transform_0(%arg0: i32, %arg1: i32) -> (i32, i32, i32) {
    %c0_i32 = arith.constant 0 : i32
    %c0_i32_0 = arith.constant 0 : i32
    %c0_i32_1 = arith.constant 0 : i32
    return %arg0, %c0_i32, %c0_i32_0 : i32, i32, i32
  }
  func.func @transform_1(%arg0: i32, %arg1: i32) -> (i32, i32, i32) {
    %c0_i32 = arith.constant 0 : i32
    %c0_i32_0 = arith.constant 0 : i32
    %c0_i32_1 = arith.constant 0 : i32
    %c0_i32_2 = arith.constant 0 : i32
    return %c0_i32, %c0_i32_0, %c0_i32_1 : i32, i32, i32
  }
  func.func @transform_2(%arg0: i32, %arg1: i32) -> (i32, i32) {
    %c0_i32 = arith.constant 0 : i32
    %c0_i32_0 = arith.constant 0 : i32
    %c0_i32_1 = arith.constant 0 : i32
    return %c0_i32, %c0_i32_0 : i32, i32
  }
  func.func @transform_3(%arg0: i32, %arg1: i32) -> (i32, i32, i32) {
    %c0_i32 = arith.constant 0 : i32
    %c0_i32_0 = arith.constant 0 : i32
    return %arg0, %arg1, %c0_i32 : i32, i32, i32
  }
}

module attributes {stable_mosaic.version = 11 : i64} {
  func.func @_conv_kernel(%arg0: i32, %arg1: i32, %arg2: memref<1x4x64xbf16, #tpu.memory_space<vmem>>, %arg3: memref<3x64x128xbf16, #tpu.memory_space<vmem>>, %arg4: memref<1x128xf32, #tpu.memory_space<vmem>>, %arg5: memref<1x4x128xbf16, #tpu.memory_space<vmem>>) attributes {dimension_semantics = [#tpu.dimension_semantics<parallel>, #tpu.dimension_semantics<parallel>], iteration_bounds = array<i64: 2, 1>, scalar_prefetch = 0 : i64, scratch_operands = 0 : i64, tpu.core_type = #tpu.core_type<tc>, window_params = [{transform_indices = @transform_0, window_bounds = array<i64: 1, 4, 64>}, {pipeline_mode = #tpu.pipeline_mode<synchronous>, transform_indices = @transform_1, window_bounds = array<i64: 3, 64, 128>}, {pipeline_mode = #tpu.pipeline_mode<synchronous>, transform_indices = @transform_2, window_bounds = array<i64: 1, 128>}, {transform_indices = @transform_3, window_bounds = array<i64: 1, 4, 128>}]} {
    %c0 = arith.constant 0 : index
    %c0_0 = arith.constant 0 : index
    %c0_1 = arith.constant 0 : index
    %0 = vector.load %arg3[%c0, %c0_0, %c0_1] : memref<3x64x128xbf16, #tpu.memory_space<vmem>>, vector<1x64x128xbf16>
    %1 = vector.shape_cast %0 : vector<1x64x128xbf16> to vector<64x128xbf16>
    %c1 = arith.constant 1 : index
    %c0_2 = arith.constant 0 : index
    %c0_3 = arith.constant 0 : index
    %2 = vector.load %arg3[%c1, %c0_2, %c0_3] : memref<3x64x128xbf16, #tpu.memory_space<vmem>>, vector<1x64x128xbf16>
    %3 = vector.shape_cast %2 : vector<1x64x128xbf16> to vector<64x128xbf16>
    %c2 = arith.constant 2 : index
    %c0_4 = arith.constant 0 : index
    %c0_5 = arith.constant 0 : index
    %4 = vector.load %arg3[%c2, %c0_4, %c0_5] : memref<3x64x128xbf16, #tpu.memory_space<vmem>>, vector<1x64x128xbf16>
    %5 = vector.shape_cast %4 : vector<1x64x128xbf16> to vector<64x128xbf16>
    %c0_6 = arith.constant 0 : index
    %c0_7 = arith.constant 0 : index
    %c0_8 = arith.constant 0 : index
    %6 = vector.load %arg2[%c0_6, %c0_7, %c0_8] : memref<1x4x64xbf16, #tpu.memory_space<vmem>>, vector<1x4x64xbf16>
    %7 = vector.shape_cast %6 : vector<1x4x64xbf16> to vector<4x64xbf16>
    %cst = arith.constant dense<0.000000e+00> : vector<4x128xf32>
    %8 = tpu.matmul %7, %1, %cst {dimension_numbers = #tpu.dot_dimension_numbers<[1], [0], [0], [1], [0, 0, 1, 1], [], []>} : vector<4x64xbf16>, vector<64x128xbf16>, vector<4x128xf32> -> vector<4x128xf32>
    %cst_9 = arith.constant dense<0.000000e+00> : vector<4x128xf32>
    %9 = tpu.matmul %7, %3, %cst_9 {dimension_numbers = #tpu.dot_dimension_numbers<[1], [0], [0], [1], [0, 0, 1, 1], [], []>} : vector<4x64xbf16>, vector<64x128xbf16>, vector<4x128xf32> -> vector<4x128xf32>
    %cst_10 = arith.constant dense<0.000000e+00> : vector<4x128xf32>
    %10 = tpu.matmul %7, %5, %cst_10 {dimension_numbers = #tpu.dot_dimension_numbers<[1], [0], [0], [1], [0, 0, 1, 1], [], []>} : vector<4x64xbf16>, vector<64x128xbf16>, vector<4x128xf32> -> vector<4x128xf32>
    %11 = tpu.iota {dimensions = array<i32: 0>} : vector<4x128xi32>
    %c1_i32 = arith.constant 1 : i32
    %12 = tpu.dynamic_rotate %8 by %c1_i32 dim 0 : vector<4x128xf32>, i32 -> vector<4x128xf32>
    %c3_i32 = arith.constant 3 : i32
    %13 = tpu.dynamic_rotate %10 by %c3_i32 dim 0 : vector<4x128xf32>, i32 -> vector<4x128xf32>
    %c0_i32 = arith.constant 0 : i32
    %14 = vector.broadcast %c0_i32 : i32 to vector<4x128xi32>
    %15 = arith.cmpi eq, %11, %14 : vector<4x128xi32>
    %cst_11 = arith.constant 0.000000e+00 : f32
    %16 = vector.broadcast %cst_11 : f32 to vector<4x128xf32>
    %17 = arith.select %15, %16, %12 : vector<4x128xi1>, vector<4x128xf32>
    %c3_i32_12 = arith.constant 3 : i32
    %18 = vector.broadcast %c3_i32_12 : i32 to vector<4x128xi32>
    %19 = arith.cmpi eq, %11, %18 : vector<4x128xi32>
    %cst_13 = arith.constant 0.000000e+00 : f32
    %20 = vector.broadcast %cst_13 : f32 to vector<4x128xf32>
    %21 = arith.select %19, %20, %13 : vector<4x128xi1>, vector<4x128xf32>
    %22 = arith.addf %9, %17 : vector<4x128xf32>
    %23 = arith.addf %22, %21 : vector<4x128xf32>
    %c0_14 = arith.constant 0 : index
    %c0_15 = arith.constant 0 : index
    %24 = vector.load %arg4[%c0_14, %c0_15] : memref<1x128xf32, #tpu.memory_space<vmem>>, vector<1x128xf32>
    %25 = vector.broadcast %24 : vector<1x128xf32> to vector<4x128xf32>
    %26 = arith.addf %23, %25 : vector<4x128xf32>
    %cst_16 = arith.constant 0.000000e+00 : f32
    %27 = vector.broadcast %cst_16 : f32 to vector<4x128xf32>
    %28 = arith.maximumf %26, %27 : vector<4x128xf32>
    %29 = arith.truncf %28 : vector<4x128xf32> to vector<4x128xbf16>
    %c0_17 = arith.constant 0 : index
    %c0_18 = arith.constant 0 : index
    %c0_19 = arith.constant 0 : index
    %30 = vector.load %arg5[%c0_17, %c0_18, %c0_19] : memref<1x4x128xbf16, #tpu.memory_space<vmem>>, vector<1x4x128xbf16>
    %31 = vector.shape_cast %30 : vector<1x4x128xbf16> to vector<4x128xbf16>
    %32 = vector.shape_cast %29 : vector<4x128xbf16> to vector<1x4x128xbf16>
    tpu.vector_store %arg5[%c0_17, %c0_18, %c0_19], %32 {strides = array<i32>} : memref<1x4x128xbf16, #tpu.memory_space<vmem>>, vector<1x4x128xbf16>,
    return
  }
  func.func @transform_0(%arg0: i32, %arg1: i32) -> (i32, i32, i32) {
    %c0_i32 = arith.constant 0 : i32
    %c0_i32_0 = arith.constant 0 : i32
    %c0_i32_1 = arith.constant 0 : i32
    return %arg0, %c0_i32, %c0_i32_0 : i32, i32, i32
  }
  func.func @transform_1(%arg0: i32, %arg1: i32) -> (i32, i32, i32) {
    %c0_i32 = arith.constant 0 : i32
    %c0_i32_0 = arith.constant 0 : i32
    %c0_i32_1 = arith.constant 0 : i32
    %c0_i32_2 = arith.constant 0 : i32
    return %c0_i32, %c0_i32_0, %c0_i32_1 : i32, i32, i32
  }
  func.func @transform_2(%arg0: i32, %arg1: i32) -> (i32, i32) {
    %c0_i32 = arith.constant 0 : i32
    %c0_i32_0 = arith.constant 0 : i32
    %c0_i32_1 = arith.constant 0 : i32
    return %c0_i32, %c0_i32_0 : i32, i32
  }
  func.func @transform_3(%arg0: i32, %arg1: i32) -> (i32, i32, i32) {
    %c0_i32 = arith.constant 0 : i32
    %c0_i32_0 = arith.constant 0 : i32
    return %arg0, %arg1, %c0_i32 : i32, i32, i32
  }
}

module attributes {stable_mosaic.version = 11 : i64} {
  func.func @_conv_kernel(%arg0: i32, %arg1: i32, %arg2: memref<1x8x128xbf16, #tpu.memory_space<vmem>>, %arg3: memref<1x8x256xbf16, #tpu.memory_space<vmem>>, %arg4: memref<3x128x128xbf16, #tpu.memory_space<vmem>>, %arg5: memref<3x256x128xbf16, #tpu.memory_space<vmem>>, %arg6: memref<1x128xf32, #tpu.memory_space<vmem>>, %arg7: memref<1x8x128xbf16, #tpu.memory_space<vmem>>) attributes {dimension_semantics = [#tpu.dimension_semantics<parallel>, #tpu.dimension_semantics<parallel>], iteration_bounds = array<i64: 2, 1>, scalar_prefetch = 0 : i64, scratch_operands = 0 : i64, tpu.core_type = #tpu.core_type<tc>, window_params = [{transform_indices = @transform_0, window_bounds = array<i64: 1, 8, 128>}, {transform_indices = @transform_1, window_bounds = array<i64: 1, 8, 256>}, {pipeline_mode = #tpu.pipeline_mode<synchronous>, transform_indices = @transform_2, window_bounds = array<i64: 3, 128, 128>}, {pipeline_mode = #tpu.pipeline_mode<synchronous>, transform_indices = @transform_3, window_bounds = array<i64: 3, 256, 128>}, {pipeline_mode = #tpu.pipeline_mode<synchronous>, transform_indices = @transform_4, window_bounds = array<i64: 1, 128>}, {transform_indices = @transform_5, window_bounds = array<i64: 1, 8, 128>}]} {
    %c0 = arith.constant 0 : index
    %c0_0 = arith.constant 0 : index
    %c0_1 = arith.constant 0 : index
    %0 = vector.load %arg4[%c0, %c0_0, %c0_1] : memref<3x128x128xbf16, #tpu.memory_space<vmem>>, vector<1x128x128xbf16>
    %1 = vector.shape_cast %0 : vector<1x128x128xbf16> to vector<128x128xbf16>
    %c1 = arith.constant 1 : index
    %c0_2 = arith.constant 0 : index
    %c0_3 = arith.constant 0 : index
    %2 = vector.load %arg4[%c1, %c0_2, %c0_3] : memref<3x128x128xbf16, #tpu.memory_space<vmem>>, vector<1x128x128xbf16>
    %3 = vector.shape_cast %2 : vector<1x128x128xbf16> to vector<128x128xbf16>
    %c2 = arith.constant 2 : index
    %c0_4 = arith.constant 0 : index
    %c0_5 = arith.constant 0 : index
    %4 = vector.load %arg4[%c2, %c0_4, %c0_5] : memref<3x128x128xbf16, #tpu.memory_space<vmem>>, vector<1x128x128xbf16>
    %5 = vector.shape_cast %4 : vector<1x128x128xbf16> to vector<128x128xbf16>
    %c0_6 = arith.constant 0 : index
    %c0_7 = arith.constant 0 : index
    %c0_8 = arith.constant 0 : index
    %6 = vector.load %arg2[%c0_6, %c0_7, %c0_8] : memref<1x8x128xbf16, #tpu.memory_space<vmem>>, vector<1x8x128xbf16>
    %7 = vector.shape_cast %6 : vector<1x8x128xbf16> to vector<8x128xbf16>
    %cst = arith.constant dense<0.000000e+00> : vector<8x128xf32>
    %8 = tpu.matmul %7, %1, %cst {dimension_numbers = #tpu.dot_dimension_numbers<[1], [0], [0], [1], [0, 0, 1, 1], [], []>} : vector<8x128xbf16>, vector<128x128xbf16>, vector<8x128xf32> -> vector<8x128xf32>
    %cst_9 = arith.constant dense<0.000000e+00> : vector<8x128xf32>
    %9 = tpu.matmul %7, %3, %cst_9 {dimension_numbers = #tpu.dot_dimension_numbers<[1], [0], [0], [1], [0, 0, 1, 1], [], []>} : vector<8x128xbf16>, vector<128x128xbf16>, vector<8x128xf32> -> vector<8x128xf32>
    %cst_10 = arith.constant dense<0.000000e+00> : vector<8x128xf32>
    %10 = tpu.matmul %7, %5, %cst_10 {dimension_numbers = #tpu.dot_dimension_numbers<[1], [0], [0], [1], [0, 0, 1, 1], [], []>} : vector<8x128xbf16>, vector<128x128xbf16>, vector<8x128xf32> -> vector<8x128xf32>
    %c0_11 = arith.constant 0 : index
    %c0_12 = arith.constant 0 : index
    %c0_13 = arith.constant 0 : index
    %11 = vector.load %arg5[%c0_11, %c0_12, %c0_13] : memref<3x256x128xbf16, #tpu.memory_space<vmem>>, vector<1x256x128xbf16>
    %12 = vector.shape_cast %11 : vector<1x256x128xbf16> to vector<256x128xbf16>
    %c1_14 = arith.constant 1 : index
    %c0_15 = arith.constant 0 : index
    %c0_16 = arith.constant 0 : index
    %13 = vector.load %arg5[%c1_14, %c0_15, %c0_16] : memref<3x256x128xbf16, #tpu.memory_space<vmem>>, vector<1x256x128xbf16>
    %14 = vector.shape_cast %13 : vector<1x256x128xbf16> to vector<256x128xbf16>
    %c2_17 = arith.constant 2 : index
    %c0_18 = arith.constant 0 : index
    %c0_19 = arith.constant 0 : index
    %15 = vector.load %arg5[%c2_17, %c0_18, %c0_19] : memref<3x256x128xbf16, #tpu.memory_space<vmem>>, vector<1x256x128xbf16>
    %16 = vector.shape_cast %15 : vector<1x256x128xbf16> to vector<256x128xbf16>
    %c0_20 = arith.constant 0 : index
    %c0_21 = arith.constant 0 : index
    %c0_22 = arith.constant 0 : index
    %17 = vector.load %arg3[%c0_20, %c0_21, %c0_22] : memref<1x8x256xbf16, #tpu.memory_space<vmem>>, vector<1x8x256xbf16>
    %18 = vector.shape_cast %17 : vector<1x8x256xbf16> to vector<8x256xbf16>
    %cst_23 = arith.constant dense<0.000000e+00> : vector<8x128xf32>
    %19 = tpu.matmul %18, %12, %cst_23 {dimension_numbers = #tpu.dot_dimension_numbers<[1], [0], [0], [1], [0, 0, 1, 1], [], []>} : vector<8x256xbf16>, vector<256x128xbf16>, vector<8x128xf32> -> vector<8x128xf32>
    %cst_24 = arith.constant dense<0.000000e+00> : vector<8x128xf32>
    %20 = tpu.matmul %18, %14, %cst_24 {dimension_numbers = #tpu.dot_dimension_numbers<[1], [0], [0], [1], [0, 0, 1, 1], [], []>} : vector<8x256xbf16>, vector<256x128xbf16>, vector<8x128xf32> -> vector<8x128xf32>
    %cst_25 = arith.constant dense<0.000000e+00> : vector<8x128xf32>
    %21 = tpu.matmul %18, %16, %cst_25 {dimension_numbers = #tpu.dot_dimension_numbers<[1], [0], [0], [1], [0, 0, 1, 1], [], []>} : vector<8x256xbf16>, vector<256x128xbf16>, vector<8x128xf32> -> vector<8x128xf32>
    %22 = arith.addf %8, %19 : vector<8x128xf32>
    %23 = arith.addf %9, %20 : vector<8x128xf32>
    %24 = arith.addf %10, %21 : vector<8x128xf32>
    %25 = tpu.iota {dimensions = array<i32: 0>} : vector<8x128xi32>
    %c1_i32 = arith.constant 1 : i32
    %26 = tpu.dynamic_rotate %22 by %c1_i32 dim 0 : vector<8x128xf32>, i32 -> vector<8x128xf32>
    %c7_i32 = arith.constant 7 : i32
    %27 = tpu.dynamic_rotate %24 by %c7_i32 dim 0 : vector<8x128xf32>, i32 -> vector<8x128xf32>
    %c0_i32 = arith.constant 0 : i32
    %28 = vector.broadcast %c0_i32 : i32 to vector<8x128xi32>
    %29 = arith.cmpi eq, %25, %28 : vector<8x128xi32>
    %cst_26 = arith.constant 0.000000e+00 : f32
    %30 = vector.broadcast %cst_26 : f32 to vector<8x128xf32>
    %31 = arith.select %29, %30, %26 : vector<8x128xi1>, vector<8x128xf32>
    %c7_i32_27 = arith.constant 7 : i32
    %32 = vector.broadcast %c7_i32_27 : i32 to vector<8x128xi32>
    %33 = arith.cmpi eq, %25, %32 : vector<8x128xi32>
    %cst_28 = arith.constant 0.000000e+00 : f32
    %34 = vector.broadcast %cst_28 : f32 to vector<8x128xf32>
    %35 = arith.select %33, %34, %27 : vector<8x128xi1>, vector<8x128xf32>
    %36 = arith.addf %23, %31 : vector<8x128xf32>
    %37 = arith.addf %36, %35 : vector<8x128xf32>
    %c0_29 = arith.constant 0 : index
    %c0_30 = arith.constant 0 : index
    %38 = vector.load %arg6[%c0_29, %c0_30] : memref<1x128xf32, #tpu.memory_space<vmem>>, vector<1x128xf32>
    %39 = vector.broadcast %38 : vector<1x128xf32> to vector<8x128xf32>
    %40 = arith.addf %37, %39 : vector<8x128xf32>
    %cst_31 = arith.constant 0.000000e+00 : f32
    %41 = vector.broadcast %cst_31 : f32 to vector<8x128xf32>
    %42 = arith.maximumf %40, %41 : vector<8x128xf32>
    %43 = arith.truncf %42 : vector<8x128xf32> to vector<8x128xbf16>
    %c0_32 = arith.constant 0 : index
    %c0_33 = arith.constant 0 : index
    %c0_34 = arith.constant 0 : index
    %44 = vector.load %arg7[%c0_32, %c0_33, %c0_34] : memref<1x8x128xbf16, #tpu.memory_space<vmem>>, vector<1x8x128xbf16>
    %45 = vector.shape_cast %44 : vector<1x8x128xbf16> to vector<8x128xbf16>
    %46 = vector.shape_cast %43 : vector<8x128xbf16> to vector<1x8x128xbf16>
    tpu.vector_store %arg7[%c0_32, %c0_33, %c0_34], %46 {strides = array<i32>} : memref<1x8x128xbf16, #tpu.memory_space<vmem>>, vector<1x8x128xbf16>,
    return
  }
  func.func @transform_0(%arg0: i32, %arg1: i32) -> (i32, i32, i32) {
    %c0_i32 = arith.constant 0 : i32
    %c0_i32_0 = arith.constant 0 : i32
    %c0_i32_1 = arith.constant 0 : i32
    return %arg0, %c0_i32, %c0_i32_0 : i32, i32, i32
  }
  func.func @transform_1(%arg0: i32, %arg1: i32) -> (i32, i32, i32) {
    %c0_i32 = arith.constant 0 : i32
    %c0_i32_0 = arith.constant 0 : i32
    %c0_i32_1 = arith.constant 0 : i32
    return %arg0, %c0_i32, %c0_i32_0 : i32, i32, i32
  }
  func.func @transform_2(%arg0: i32, %arg1: i32) -> (i32, i32, i32) {
    %c0_i32 = arith.constant 0 : i32
    %c0_i32_0 = arith.constant 0 : i32
    %c0_i32_1 = arith.constant 0 : i32
    %c0_i32_2 = arith.constant 0 : i32
    return %c0_i32, %c0_i32_0, %c0_i32_1 : i32, i32, i32
  }
  func.func @transform_3(%arg0: i32, %arg1: i32) -> (i32, i32, i32) {
    %c0_i32 = arith.constant 0 : i32
    %c0_i32_0 = arith.constant 0 : i32
    %c0_i32_1 = arith.constant 0 : i32
    %c0_i32_2 = arith.constant 0 : i32
    return %c0_i32, %c0_i32_0, %c0_i32_1 : i32, i32, i32
  }
  func.func @transform_4(%arg0: i32, %arg1: i32) -> (i32, i32) {
    %c0_i32 = arith.constant 0 : i32
    %c0_i32_0 = arith.constant 0 : i32
    %c0_i32_1 = arith.constant 0 : i32
    return %c0_i32, %c0_i32_0 : i32, i32
  }
  func.func @transform_5(%arg0: i32, %arg1: i32) -> (i32, i32, i32) {
    %c0_i32 = arith.constant 0 : i32
    %c0_i32_0 = arith.constant 0 : i32
    return %arg0, %arg1, %c0_i32 : i32, i32, i32
  }
}

module attributes {stable_mosaic.version = 11 : i64} {
  func.func @_conv_kernel(%arg0: i32, %arg1: i32, %arg2: memref<1x16x128xbf16, #tpu.memory_space<vmem>>, %arg3: memref<1x16x256xbf16, #tpu.memory_space<vmem>>, %arg4: memref<3x128x128xbf16, #tpu.memory_space<vmem>>, %arg5: memref<3x256x128xbf16, #tpu.memory_space<vmem>>, %arg6: memref<1x128xf32, #tpu.memory_space<vmem>>, %arg7: memref<1x16x128xbf16, #tpu.memory_space<vmem>>) attributes {dimension_semantics = [#tpu.dimension_semantics<parallel>, #tpu.dimension_semantics<parallel>], iteration_bounds = array<i64: 2, 1>, scalar_prefetch = 0 : i64, scratch_operands = 0 : i64, tpu.core_type = #tpu.core_type<tc>, window_params = [{transform_indices = @transform_0, window_bounds = array<i64: 1, 16, 128>}, {transform_indices = @transform_1, window_bounds = array<i64: 1, 16, 256>}, {pipeline_mode = #tpu.pipeline_mode<synchronous>, transform_indices = @transform_2, window_bounds = array<i64: 3, 128, 128>}, {pipeline_mode = #tpu.pipeline_mode<synchronous>, transform_indices = @transform_3, window_bounds = array<i64: 3, 256, 128>}, {pipeline_mode = #tpu.pipeline_mode<synchronous>, transform_indices = @transform_4, window_bounds = array<i64: 1, 128>}, {transform_indices = @transform_5, window_bounds = array<i64: 1, 16, 128>}]} {
    %c0 = arith.constant 0 : index
    %c0_0 = arith.constant 0 : index
    %c0_1 = arith.constant 0 : index
    %0 = vector.load %arg4[%c0, %c0_0, %c0_1] : memref<3x128x128xbf16, #tpu.memory_space<vmem>>, vector<1x128x128xbf16>
    %1 = vector.shape_cast %0 : vector<1x128x128xbf16> to vector<128x128xbf16>
    %c1 = arith.constant 1 : index
    %c0_2 = arith.constant 0 : index
    %c0_3 = arith.constant 0 : index
    %2 = vector.load %arg4[%c1, %c0_2, %c0_3] : memref<3x128x128xbf16, #tpu.memory_space<vmem>>, vector<1x128x128xbf16>
    %3 = vector.shape_cast %2 : vector<1x128x128xbf16> to vector<128x128xbf16>
    %c2 = arith.constant 2 : index
    %c0_4 = arith.constant 0 : index
    %c0_5 = arith.constant 0 : index
    %4 = vector.load %arg4[%c2, %c0_4, %c0_5] : memref<3x128x128xbf16, #tpu.memory_space<vmem>>, vector<1x128x128xbf16>
    %5 = vector.shape_cast %4 : vector<1x128x128xbf16> to vector<128x128xbf16>
    %c0_6 = arith.constant 0 : index
    %c0_7 = arith.constant 0 : index
    %c0_8 = arith.constant 0 : index
    %6 = vector.load %arg2[%c0_6, %c0_7, %c0_8] : memref<1x16x128xbf16, #tpu.memory_space<vmem>>, vector<1x16x128xbf16>
    %7 = vector.shape_cast %6 : vector<1x16x128xbf16> to vector<16x128xbf16>
    %cst = arith.constant dense<0.000000e+00> : vector<16x128xf32>
    %8 = tpu.matmul %7, %1, %cst {dimension_numbers = #tpu.dot_dimension_numbers<[1], [0], [0], [1], [0, 0, 1, 1], [], []>} : vector<16x128xbf16>, vector<128x128xbf16>, vector<16x128xf32> -> vector<16x128xf32>
    %cst_9 = arith.constant dense<0.000000e+00> : vector<16x128xf32>
    %9 = tpu.matmul %7, %3, %cst_9 {dimension_numbers = #tpu.dot_dimension_numbers<[1], [0], [0], [1], [0, 0, 1, 1], [], []>} : vector<16x128xbf16>, vector<128x128xbf16>, vector<16x128xf32> -> vector<16x128xf32>
    %cst_10 = arith.constant dense<0.000000e+00> : vector<16x128xf32>
    %10 = tpu.matmul %7, %5, %cst_10 {dimension_numbers = #tpu.dot_dimension_numbers<[1], [0], [0], [1], [0, 0, 1, 1], [], []>} : vector<16x128xbf16>, vector<128x128xbf16>, vector<16x128xf32> -> vector<16x128xf32>
    %c0_11 = arith.constant 0 : index
    %c0_12 = arith.constant 0 : index
    %c0_13 = arith.constant 0 : index
    %11 = vector.load %arg5[%c0_11, %c0_12, %c0_13] : memref<3x256x128xbf16, #tpu.memory_space<vmem>>, vector<1x256x128xbf16>
    %12 = vector.shape_cast %11 : vector<1x256x128xbf16> to vector<256x128xbf16>
    %c1_14 = arith.constant 1 : index
    %c0_15 = arith.constant 0 : index
    %c0_16 = arith.constant 0 : index
    %13 = vector.load %arg5[%c1_14, %c0_15, %c0_16] : memref<3x256x128xbf16, #tpu.memory_space<vmem>>, vector<1x256x128xbf16>
    %14 = vector.shape_cast %13 : vector<1x256x128xbf16> to vector<256x128xbf16>
    %c2_17 = arith.constant 2 : index
    %c0_18 = arith.constant 0 : index
    %c0_19 = arith.constant 0 : index
    %15 = vector.load %arg5[%c2_17, %c0_18, %c0_19] : memref<3x256x128xbf16, #tpu.memory_space<vmem>>, vector<1x256x128xbf16>
    %16 = vector.shape_cast %15 : vector<1x256x128xbf16> to vector<256x128xbf16>
    %c0_20 = arith.constant 0 : index
    %c0_21 = arith.constant 0 : index
    %c0_22 = arith.constant 0 : index
    %17 = vector.load %arg3[%c0_20, %c0_21, %c0_22] : memref<1x16x256xbf16, #tpu.memory_space<vmem>>, vector<1x16x256xbf16>
    %18 = vector.shape_cast %17 : vector<1x16x256xbf16> to vector<16x256xbf16>
    %cst_23 = arith.constant dense<0.000000e+00> : vector<16x128xf32>
    %19 = tpu.matmul %18, %12, %cst_23 {dimension_numbers = #tpu.dot_dimension_numbers<[1], [0], [0], [1], [0, 0, 1, 1], [], []>} : vector<16x256xbf16>, vector<256x128xbf16>, vector<16x128xf32> -> vector<16x128xf32>
    %cst_24 = arith.constant dense<0.000000e+00> : vector<16x128xf32>
    %20 = tpu.matmul %18, %14, %cst_24 {dimension_numbers = #tpu.dot_dimension_numbers<[1], [0], [0], [1], [0, 0, 1, 1], [], []>} : vector<16x256xbf16>, vector<256x128xbf16>, vector<16x128xf32> -> vector<16x128xf32>
    %cst_25 = arith.constant dense<0.000000e+00> : vector<16x128xf32>
    %21 = tpu.matmul %18, %16, %cst_25 {dimension_numbers = #tpu.dot_dimension_numbers<[1], [0], [0], [1], [0, 0, 1, 1], [], []>} : vector<16x256xbf16>, vector<256x128xbf16>, vector<16x128xf32> -> vector<16x128xf32>
    %22 = arith.addf %8, %19 : vector<16x128xf32>
    %23 = arith.addf %9, %20 : vector<16x128xf32>
    %24 = arith.addf %10, %21 : vector<16x128xf32>
    %25 = tpu.iota {dimensions = array<i32: 0>} : vector<16x128xi32>
    %c1_i32 = arith.constant 1 : i32
    %26 = tpu.dynamic_rotate %22 by %c1_i32 dim 0 : vector<16x128xf32>, i32 -> vector<16x128xf32>
    %c15_i32 = arith.constant 15 : i32
    %27 = tpu.dynamic_rotate %24 by %c15_i32 dim 0 : vector<16x128xf32>, i32 -> vector<16x128xf32>
    %c0_i32 = arith.constant 0 : i32
    %28 = vector.broadcast %c0_i32 : i32 to vector<16x128xi32>
    %29 = arith.cmpi eq, %25, %28 : vector<16x128xi32>
    %cst_26 = arith.constant 0.000000e+00 : f32
    %30 = vector.broadcast %cst_26 : f32 to vector<16x128xf32>
    %31 = arith.select %29, %30, %26 : vector<16x128xi1>, vector<16x128xf32>
    %c15_i32_27 = arith.constant 15 : i32
    %32 = vector.broadcast %c15_i32_27 : i32 to vector<16x128xi32>
    %33 = arith.cmpi eq, %25, %32 : vector<16x128xi32>
    %cst_28 = arith.constant 0.000000e+00 : f32
    %34 = vector.broadcast %cst_28 : f32 to vector<16x128xf32>
    %35 = arith.select %33, %34, %27 : vector<16x128xi1>, vector<16x128xf32>
    %36 = arith.addf %23, %31 : vector<16x128xf32>
    %37 = arith.addf %36, %35 : vector<16x128xf32>
    %c0_29 = arith.constant 0 : index
    %c0_30 = arith.constant 0 : index
    %38 = vector.load %arg6[%c0_29, %c0_30] : memref<1x128xf32, #tpu.memory_space<vmem>>, vector<1x128xf32>
    %39 = vector.broadcast %38 : vector<1x128xf32> to vector<16x128xf32>
    %40 = arith.addf %37, %39 : vector<16x128xf32>
    %cst_31 = arith.constant 0.000000e+00 : f32
    %41 = vector.broadcast %cst_31 : f32 to vector<16x128xf32>
    %42 = arith.maximumf %40, %41 : vector<16x128xf32>
    %43 = arith.truncf %42 : vector<16x128xf32> to vector<16x128xbf16>
    %c0_32 = arith.constant 0 : index
    %c0_33 = arith.constant 0 : index
    %c0_34 = arith.constant 0 : index
    %44 = vector.load %arg7[%c0_32, %c0_33, %c0_34] : memref<1x16x128xbf16, #tpu.memory_space<vmem>>, vector<1x16x128xbf16>
    %45 = vector.shape_cast %44 : vector<1x16x128xbf16> to vector<16x128xbf16>
    %46 = vector.shape_cast %43 : vector<16x128xbf16> to vector<1x16x128xbf16>
    tpu.vector_store %arg7[%c0_32, %c0_33, %c0_34], %46 {strides = array<i32>} : memref<1x16x128xbf16, #tpu.memory_space<vmem>>, vector<1x16x128xbf16>,
    return
  }
  func.func @transform_0(%arg0: i32, %arg1: i32) -> (i32, i32, i32) {
    %c0_i32 = arith.constant 0 : i32
    %c0_i32_0 = arith.constant 0 : i32
    %c0_i32_1 = arith.constant 0 : i32
    return %arg0, %c0_i32, %c0_i32_0 : i32, i32, i32
  }
  func.func @transform_1(%arg0: i32, %arg1: i32) -> (i32, i32, i32) {
    %c0_i32 = arith.constant 0 : i32
    %c0_i32_0 = arith.constant 0 : i32
    %c0_i32_1 = arith.constant 0 : i32
    return %arg0, %c0_i32, %c0_i32_0 : i32, i32, i32
  }
  func.func @transform_2(%arg0: i32, %arg1: i32) -> (i32, i32, i32) {
    %c0_i32 = arith.constant 0 : i32
    %c0_i32_0 = arith.constant 0 : i32
    %c0_i32_1 = arith.constant 0 : i32
    %c0_i32_2 = arith.constant 0 : i32
    return %c0_i32, %c0_i32_0, %c0_i32_1 : i32, i32, i32
  }
  func.func @transform_3(%arg0: i32, %arg1: i32) -> (i32, i32, i32) {
    %c0_i32 = arith.constant 0 : i32
    %c0_i32_0 = arith.constant 0 : i32
    %c0_i32_1 = arith.constant 0 : i32
    %c0_i32_2 = arith.constant 0 : i32
    return %c0_i32, %c0_i32_0, %c0_i32_1 : i32, i32, i32
  }
  func.func @transform_4(%arg0: i32, %arg1: i32) -> (i32, i32) {
    %c0_i32 = arith.constant 0 : i32
    %c0_i32_0 = arith.constant 0 : i32
    %c0_i32_1 = arith.constant 0 : i32
    return %c0_i32, %c0_i32_0 : i32, i32
  }
  func.func @transform_5(%arg0: i32, %arg1: i32) -> (i32, i32, i32) {
    %c0_i32 = arith.constant 0 : i32
    %c0_i32_0 = arith.constant 0 : i32
    return %arg0, %arg1, %c0_i32 : i32, i32, i32
  }
}

module attributes {stable_mosaic.version = 11 : i64} {
  func.func @_conv_kernel(%arg0: i32, %arg1: i32, %arg2: memref<1x16x128xbf16, #tpu.memory_space<vmem>>, %arg3: memref<1x16x128xbf16, #tpu.memory_space<vmem>>, %arg4: memref<1x16x256xbf16, #tpu.memory_space<vmem>>, %arg5: memref<3x128x128xbf16, #tpu.memory_space<vmem>>, %arg6: memref<3x128x128xbf16, #tpu.memory_space<vmem>>, %arg7: memref<3x256x128xbf16, #tpu.memory_space<vmem>>, %arg8: memref<1x128xf32, #tpu.memory_space<vmem>>, %arg9: memref<128x128xbf16, #tpu.memory_space<vmem>>, %arg10: memref<1x128xf32, #tpu.memory_space<vmem>>, %arg11: memref<1x16x128xbf16, #tpu.memory_space<vmem>>, %arg12: memref<1x16x128xf32, #tpu.memory_space<vmem>>) attributes {dimension_semantics = [#tpu.dimension_semantics<parallel>, #tpu.dimension_semantics<parallel>], iteration_bounds = array<i64: 2, 1>, scalar_prefetch = 0 : i64, scratch_operands = 0 : i64, tpu.core_type = #tpu.core_type<tc>, window_params = [{transform_indices = @transform_0, window_bounds = array<i64: 1, 16, 128>}, {transform_indices = @transform_1, window_bounds = array<i64: 1, 16, 128>}, {transform_indices = @transform_2, window_bounds = array<i64: 1, 16, 256>}, {pipeline_mode = #tpu.pipeline_mode<synchronous>, transform_indices = @transform_3, window_bounds = array<i64: 3, 128, 128>}, {pipeline_mode = #tpu.pipeline_mode<synchronous>, transform_indices = @transform_4, window_bounds = array<i64: 3, 128, 128>}, {pipeline_mode = #tpu.pipeline_mode<synchronous>, transform_indices = @transform_5, window_bounds = array<i64: 3, 256, 128>}, {pipeline_mode = #tpu.pipeline_mode<synchronous>, transform_indices = @transform_6, window_bounds = array<i64: 1, 128>}, {pipeline_mode = #tpu.pipeline_mode<synchronous>, transform_indices = @transform_7, window_bounds = array<i64: 128, 128>}, {pipeline_mode = #tpu.pipeline_mode<synchronous>, transform_indices = @transform_8, window_bounds = array<i64: 1, 128>}, {transform_indices = @transform_9, window_bounds = array<i64: 1, 16, 128>}, {transform_indices = @transform_10, window_bounds = array<i64: 1, 16, 128>}]} {
    %c0 = arith.constant 0 : index
    %c0_0 = arith.constant 0 : index
    %c0_1 = arith.constant 0 : index
    %0 = vector.load %arg5[%c0, %c0_0, %c0_1] : memref<3x128x128xbf16, #tpu.memory_space<vmem>>, vector<1x128x128xbf16>
    %1 = vector.shape_cast %0 : vector<1x128x128xbf16> to vector<128x128xbf16>
    %c1 = arith.constant 1 : index
    %c0_2 = arith.constant 0 : index
    %c0_3 = arith.constant 0 : index
    %2 = vector.load %arg5[%c1, %c0_2, %c0_3] : memref<3x128x128xbf16, #tpu.memory_space<vmem>>, vector<1x128x128xbf16>
    %3 = vector.shape_cast %2 : vector<1x128x128xbf16> to vector<128x128xbf16>
    %c2 = arith.constant 2 : index
    %c0_4 = arith.constant 0 : index
    %c0_5 = arith.constant 0 : index
    %4 = vector.load %arg5[%c2, %c0_4, %c0_5] : memref<3x128x128xbf16, #tpu.memory_space<vmem>>, vector<1x128x128xbf16>
    %5 = vector.shape_cast %4 : vector<1x128x128xbf16> to vector<128x128xbf16>
    %c0_6 = arith.constant 0 : index
    %c0_7 = arith.constant 0 : index
    %c0_8 = arith.constant 0 : index
    %6 = vector.load %arg2[%c0_6, %c0_7, %c0_8] : memref<1x16x128xbf16, #tpu.memory_space<vmem>>, vector<1x16x128xbf16>
    %7 = vector.shape_cast %6 : vector<1x16x128xbf16> to vector<16x128xbf16>
    %cst = arith.constant dense<0.000000e+00> : vector<16x128xf32>
    %8 = tpu.matmul %7, %1, %cst {dimension_numbers = #tpu.dot_dimension_numbers<[1], [0], [0], [1], [0, 0, 1, 1], [], []>} : vector<16x128xbf16>, vector<128x128xbf16>, vector<16x128xf32> -> vector<16x128xf32>
    %cst_9 = arith.constant dense<0.000000e+00> : vector<16x128xf32>
    %9 = tpu.matmul %7, %3, %cst_9 {dimension_numbers = #tpu.dot_dimension_numbers<[1], [0], [0], [1], [0, 0, 1, 1], [], []>} : vector<16x128xbf16>, vector<128x128xbf16>, vector<16x128xf32> -> vector<16x128xf32>
    %cst_10 = arith.constant dense<0.000000e+00> : vector<16x128xf32>
    %10 = tpu.matmul %7, %5, %cst_10 {dimension_numbers = #tpu.dot_dimension_numbers<[1], [0], [0], [1], [0, 0, 1, 1], [], []>} : vector<16x128xbf16>, vector<128x128xbf16>, vector<16x128xf32> -> vector<16x128xf32>
    %c0_11 = arith.constant 0 : index
    %c0_12 = arith.constant 0 : index
    %c0_13 = arith.constant 0 : index
    %11 = vector.load %arg6[%c0_11, %c0_12, %c0_13] : memref<3x128x128xbf16, #tpu.memory_space<vmem>>, vector<1x128x128xbf16>
    %12 = vector.shape_cast %11 : vector<1x128x128xbf16> to vector<128x128xbf16>
    %c1_14 = arith.constant 1 : index
    %c0_15 = arith.constant 0 : index
    %c0_16 = arith.constant 0 : index
    %13 = vector.load %arg6[%c1_14, %c0_15, %c0_16] : memref<3x128x128xbf16, #tpu.memory_space<vmem>>, vector<1x128x128xbf16>
    %14 = vector.shape_cast %13 : vector<1x128x128xbf16> to vector<128x128xbf16>
    %c2_17 = arith.constant 2 : index
    %c0_18 = arith.constant 0 : index
    %c0_19 = arith.constant 0 : index
    %15 = vector.load %arg6[%c2_17, %c0_18, %c0_19] : memref<3x128x128xbf16, #tpu.memory_space<vmem>>, vector<1x128x128xbf16>
    %16 = vector.shape_cast %15 : vector<1x128x128xbf16> to vector<128x128xbf16>
    %c0_20 = arith.constant 0 : index
    %c0_21 = arith.constant 0 : index
    %c0_22 = arith.constant 0 : index
    %17 = vector.load %arg3[%c0_20, %c0_21, %c0_22] : memref<1x16x128xbf16, #tpu.memory_space<vmem>>, vector<1x16x128xbf16>
    %18 = vector.shape_cast %17 : vector<1x16x128xbf16> to vector<16x128xbf16>
    %cst_23 = arith.constant dense<0.000000e+00> : vector<16x128xf32>
    %19 = tpu.matmul %18, %12, %cst_23 {dimension_numbers = #tpu.dot_dimension_numbers<[1], [0], [0], [1], [0, 0, 1, 1], [], []>} : vector<16x128xbf16>, vector<128x128xbf16>, vector<16x128xf32> -> vector<16x128xf32>
    %cst_24 = arith.constant dense<0.000000e+00> : vector<16x128xf32>
    %20 = tpu.matmul %18, %14, %cst_24 {dimension_numbers = #tpu.dot_dimension_numbers<[1], [0], [0], [1], [0, 0, 1, 1], [], []>} : vector<16x128xbf16>, vector<128x128xbf16>, vector<16x128xf32> -> vector<16x128xf32>
    %cst_25 = arith.constant dense<0.000000e+00> : vector<16x128xf32>
    %21 = tpu.matmul %18, %16, %cst_25 {dimension_numbers = #tpu.dot_dimension_numbers<[1], [0], [0], [1], [0, 0, 1, 1], [], []>} : vector<16x128xbf16>, vector<128x128xbf16>, vector<16x128xf32> -> vector<16x128xf32>
    %22 = arith.addf %8, %19 : vector<16x128xf32>
    %23 = arith.addf %9, %20 : vector<16x128xf32>
    %24 = arith.addf %10, %21 : vector<16x128xf32>
    %c0_26 = arith.constant 0 : index
    %c0_27 = arith.constant 0 : index
    %c0_28 = arith.constant 0 : index
    %25 = vector.load %arg7[%c0_26, %c0_27, %c0_28] : memref<3x256x128xbf16, #tpu.memory_space<vmem>>, vector<1x256x128xbf16>
    %26 = vector.shape_cast %25 : vector<1x256x128xbf16> to vector<256x128xbf16>
    %c1_29 = arith.constant 1 : index
    %c0_30 = arith.constant 0 : index
    %c0_31 = arith.constant 0 : index
    %27 = vector.load %arg7[%c1_29, %c0_30, %c0_31] : memref<3x256x128xbf16, #tpu.memory_space<vmem>>, vector<1x256x128xbf16>
    %28 = vector.shape_cast %27 : vector<1x256x128xbf16> to vector<256x128xbf16>
    %c2_32 = arith.constant 2 : index
    %c0_33 = arith.constant 0 : index
    %c0_34 = arith.constant 0 : index
    %29 = vector.load %arg7[%c2_32, %c0_33, %c0_34] : memref<3x256x128xbf16, #tpu.memory_space<vmem>>, vector<1x256x128xbf16>
    %30 = vector.shape_cast %29 : vector<1x256x128xbf16> to vector<256x128xbf16>
    %c0_35 = arith.constant 0 : index
    %c0_36 = arith.constant 0 : index
    %c0_37 = arith.constant 0 : index
    %31 = vector.load %arg4[%c0_35, %c0_36, %c0_37] : memref<1x16x256xbf16, #tpu.memory_space<vmem>>, vector<1x16x256xbf16>
    %32 = vector.shape_cast %31 : vector<1x16x256xbf16> to vector<16x256xbf16>
    %cst_38 = arith.constant dense<0.000000e+00> : vector<16x128xf32>
    %33 = tpu.matmul %32, %26, %cst_38 {dimension_numbers = #tpu.dot_dimension_numbers<[1], [0], [0], [1], [0, 0, 1, 1], [], []>} : vector<16x256xbf16>, vector<256x128xbf16>, vector<16x128xf32> -> vector<16x128xf32>
    %cst_39 = arith.constant dense<0.000000e+00> : vector<16x128xf32>
    %34 = tpu.matmul %32, %28, %cst_39 {dimension_numbers = #tpu.dot_dimension_numbers<[1], [0], [0], [1], [0, 0, 1, 1], [], []>} : vector<16x256xbf16>, vector<256x128xbf16>, vector<16x128xf32> -> vector<16x128xf32>
    %cst_40 = arith.constant dense<0.000000e+00> : vector<16x128xf32>
    %35 = tpu.matmul %32, %30, %cst_40 {dimension_numbers = #tpu.dot_dimension_numbers<[1], [0], [0], [1], [0, 0, 1, 1], [], []>} : vector<16x256xbf16>, vector<256x128xbf16>, vector<16x128xf32> -> vector<16x128xf32>
    %36 = arith.addf %22, %33 : vector<16x128xf32>
    %37 = arith.addf %23, %34 : vector<16x128xf32>
    %38 = arith.addf %24, %35 : vector<16x128xf32>
    %39 = tpu.iota {dimensions = array<i32: 0>} : vector<16x128xi32>
    %c1_i32 = arith.constant 1 : i32
    %40 = tpu.dynamic_rotate %36 by %c1_i32 dim 0 : vector<16x128xf32>, i32 -> vector<16x128xf32>
    %c15_i32 = arith.constant 15 : i32
    %41 = tpu.dynamic_rotate %38 by %c15_i32 dim 0 : vector<16x128xf32>, i32 -> vector<16x128xf32>
    %c0_i32 = arith.constant 0 : i32
    %42 = vector.broadcast %c0_i32 : i32 to vector<16x128xi32>
    %43 = arith.cmpi eq, %39, %42 : vector<16x128xi32>
    %cst_41 = arith.constant 0.000000e+00 : f32
    %44 = vector.broadcast %cst_41 : f32 to vector<16x128xf32>
    %45 = arith.select %43, %44, %40 : vector<16x128xi1>, vector<16x128xf32>
    %c15_i32_42 = arith.constant 15 : i32
    %46 = vector.broadcast %c15_i32_42 : i32 to vector<16x128xi32>
    %47 = arith.cmpi eq, %39, %46 : vector<16x128xi32>
    %cst_43 = arith.constant 0.000000e+00 : f32
    %48 = vector.broadcast %cst_43 : f32 to vector<16x128xf32>
    %49 = arith.select %47, %48, %41 : vector<16x128xi1>, vector<16x128xf32>
    %50 = arith.addf %37, %45 : vector<16x128xf32>
    %51 = arith.addf %50, %49 : vector<16x128xf32>
    %c0_44 = arith.constant 0 : index
    %c0_45 = arith.constant 0 : index
    %52 = vector.load %arg8[%c0_44, %c0_45] : memref<1x128xf32, #tpu.memory_space<vmem>>, vector<1x128xf32>
    %53 = vector.broadcast %52 : vector<1x128xf32> to vector<16x128xf32>
    %54 = arith.addf %51, %53 : vector<16x128xf32>
    %cst_46 = arith.constant 0.000000e+00 : f32
    %55 = vector.broadcast %cst_46 : f32 to vector<16x128xf32>
    %56 = arith.maximumf %54, %55 : vector<16x128xf32>
    %57 = arith.truncf %56 : vector<16x128xf32> to vector<16x128xbf16>
    %c0_47 = arith.constant 0 : index
    %c0_48 = arith.constant 0 : index
    %c0_49 = arith.constant 0 : index
    %58 = vector.load %arg11[%c0_47, %c0_48, %c0_49] : memref<1x16x128xbf16, #tpu.memory_space<vmem>>, vector<1x16x128xbf16>
    %59 = vector.shape_cast %58 : vector<1x16x128xbf16> to vector<16x128xbf16>
    %60 = vector.shape_cast %57 : vector<16x128xbf16> to vector<1x16x128xbf16>
    tpu.vector_store %arg11[%c0_47, %c0_48, %c0_49], %60 {strides = array<i32>} : memref<1x16x128xbf16, #tpu.memory_space<vmem>>, vector<1x16x128xbf16>,
    %61 = arith.truncf %56 : vector<16x128xf32> to vector<16x128xbf16>
    %c0_50 = arith.constant 0 : index
    %c0_51 = arith.constant 0 : index
    %62 = vector.load %arg9[%c0_50, %c0_51] : memref<128x128xbf16, #tpu.memory_space<vmem>>, vector<128x128xbf16>
    %cst_52 = arith.constant dense<0.000000e+00> : vector<16x128xf32>
    %63 = tpu.matmul %61, %62, %cst_52 {dimension_numbers = #tpu.dot_dimension_numbers<[1], [0], [0], [1], [0, 0, 1, 1], [], []>} : vector<16x128xbf16>, vector<128x128xbf16>, vector<16x128xf32> -> vector<16x128xf32>
    %c0_53 = arith.constant 0 : index
    %c0_54 = arith.constant 0 : index
    %64 = vector.load %arg10[%c0_53, %c0_54] : memref<1x128xf32, #tpu.memory_space<vmem>>, vector<1x128xf32>
    %65 = vector.broadcast %64 : vector<1x128xf32> to vector<16x128xf32>
    %66 = arith.addf %63, %65 : vector<16x128xf32>
    %c0_55 = arith.constant 0 : index
    %c0_56 = arith.constant 0 : index
    %c0_57 = arith.constant 0 : index
    %67 = vector.load %arg12[%c0_55, %c0_56, %c0_57] : memref<1x16x128xf32, #tpu.memory_space<vmem>>, vector<1x16x128xf32>
    %68 = vector.shape_cast %67 : vector<1x16x128xf32> to vector<16x128xf32>
    %69 = vector.shape_cast %66 : vector<16x128xf32> to vector<1x16x128xf32>
    tpu.vector_store %arg12[%c0_55, %c0_56, %c0_57], %69 {strides = array<i32>} : memref<1x16x128xf32, #tpu.memory_space<vmem>>, vector<1x16x128xf32>,
    return
  }
  func.func @transform_0(%arg0: i32, %arg1: i32) -> (i32, i32, i32) {
    %c0_i32 = arith.constant 0 : i32
    %c0_i32_0 = arith.constant 0 : i32
    %c0_i32_1 = arith.constant 0 : i32
    return %arg0, %c0_i32, %c0_i32_0 : i32, i32, i32
  }
  func.func @transform_1(%arg0: i32, %arg1: i32) -> (i32, i32, i32) {
    %c0_i32 = arith.constant 0 : i32
    %c0_i32_0 = arith.constant 0 : i32
    %c0_i32_1 = arith.constant 0 : i32
    return %arg0, %c0_i32, %c0_i32_0 : i32, i32, i32
  }
  func.func @transform_2(%arg0: i32, %arg1: i32) -> (i32, i32, i32) {
    %c0_i32 = arith.constant 0 : i32
    %c0_i32_0 = arith.constant 0 : i32
    %c0_i32_1 = arith.constant 0 : i32
    return %arg0, %c0_i32, %c0_i32_0 : i32, i32, i32
  }
  func.func @transform_3(%arg0: i32, %arg1: i32) -> (i32, i32, i32) {
    %c0_i32 = arith.constant 0 : i32
    %c0_i32_0 = arith.constant 0 : i32
    %c0_i32_1 = arith.constant 0 : i32
    %c0_i32_2 = arith.constant 0 : i32
    return %c0_i32, %c0_i32_0, %c0_i32_1 : i32, i32, i32
  }
  func.func @transform_4(%arg0: i32, %arg1: i32) -> (i32, i32, i32) {
    %c0_i32 = arith.constant 0 : i32
    %c0_i32_0 = arith.constant 0 : i32
    %c0_i32_1 = arith.constant 0 : i32
    %c0_i32_2 = arith.constant 0 : i32
    return %c0_i32, %c0_i32_0, %c0_i32_1 : i32, i32, i32
  }
  func.func @transform_5(%arg0: i32, %arg1: i32) -> (i32, i32, i32) {
    %c0_i32 = arith.constant 0 : i32
    %c0_i32_0 = arith.constant 0 : i32
    %c0_i32_1 = arith.constant 0 : i32
    %c0_i32_2 = arith.constant 0 : i32
    return %c0_i32, %c0_i32_0, %c0_i32_1 : i32, i32, i32
  }
  func.func @transform_6(%arg0: i32, %arg1: i32) -> (i32, i32) {
    %c0_i32 = arith.constant 0 : i32
    %c0_i32_0 = arith.constant 0 : i32
    %c0_i32_1 = arith.constant 0 : i32
    return %c0_i32, %c0_i32_0 : i32, i32
  }
  func.func @transform_7(%arg0: i32, %arg1: i32) -> (i32, i32) {
    %c0_i32 = arith.constant 0 : i32
    %c0_i32_0 = arith.constant 0 : i32
    %c0_i32_1 = arith.constant 0 : i32
    return %c0_i32, %c0_i32_0 : i32, i32
  }
  func.func @transform_8(%arg0: i32, %arg1: i32) -> (i32, i32) {
    %c0_i32 = arith.constant 0 : i32
    %c0_i32_0 = arith.constant 0 : i32
    %c0_i32_1 = arith.constant 0 : i32
    return %c0_i32, %c0_i32_0 : i32, i32
  }
  func.func @transform_9(%arg0: i32, %arg1: i32) -> (i32, i32, i32) {
    %c0_i32 = arith.constant 0 : i32
    %c0_i32_0 = arith.constant 0 : i32
    return %arg0, %arg1, %c0_i32 : i32, i32, i32
  }
  func.func @transform_10(%arg0: i32, %arg1: i32) -> (i32, i32, i32) {
    %c0_i32 = arith.constant 0 : i32
    %c0_i32_0 = arith.constant 0 : i32
    return %arg0, %arg1, %c0_i32 : i32, i32, i32
  }
}

</mosaic_0001>

<llo_original>
// kernel: tpu_custom_call.1
$region0: #{tpu_custom_call.1}
  #allocation0 [shape = 'u32[]', space=smem, size = 0x4, offset = 0x4, fixed_abs, tag = 'smem constant byte address 0x4 - core index']
  #allocation1 [shape = 'u32[72,128]{1,0:T(1,128)}', space=vmem, size = 0x9000, scoped, tag = 'internal scratch']
  %s0 = inlined_call_operand.hbm [shape: f32[2,8,128], index: 0, kind: input, shape index: {}]
  %s1 = inlined_call_operand.hbm [shape: f32[8,128], index: 1, kind: input, shape index: {}]
  %s2 = inlined_call_operand.hbm [shape: f32[2,8,128], index: 2, kind: output, shape index: {}]
  %s3 = sld [smem:[#allocation0]]
  $region49: #{tpu_custom_call.1} parent=0
    _
  %s5 = ssub.s32 1, %s3
  %s6 = scalar_select 0, %s5, %s3
  $region1: #{tpu_custom_call.1} parent=0
    #allocation2 [shape = 'u8[8192]{0}', space=vmem, size = 0x2000, scoped, tag = 'input window, operand 0']
    #allocation3 [shape = 's32[2]{0}', space=sflag, size = 0x8, scoped, tag = 'scoped memory for tpu_custom_call.1']
    #allocation4 [shape = 's32[2]{0}', space=sflag, size = 0x8, scoped, tag = 'scoped memory for tpu_custom_call.1']
    #allocation5 [shape = 'u8[4096]{0}', space=vmem, size = 0x1000, scoped, tag = 'input window, operand 1, single buffered']
    #allocation6 [shape = 's32[1]{0}', space=sflag, size = 0x4, scoped, tag = 'scoped memory for tpu_custom_call.1']
    #allocation7 [shape = 'u8[8192]{0}', space=vmem, size = 0x2000, scoped, tag = 'output window, operand 0']
    %7 = vsyncpa [#allocation3], 0
    %s8 = scalar_lea.sflag [#allocation3], 1
    %9 = vsyncpa %s8, 0
    %10 = vsyncpa [#allocation6], 0
    %11 = vsyncpa [#allocation4], 0
    %s12 = scalar_lea.sflag [#allocation4], 1
    %13 = vsyncpa %s12, 0
    loop: start=0, step=1, limit=4
    $region2: #{tpu_custom_call.1} parent=1 // loop_pre_header
      _
    $region3: #{tpu_custom_call.1} parent=1 // loop_header
      %s15 = sphi 0, %s19
      %p16 = scmp.ge.s32.totalorder %s15, 4
      %s22 = sphi 0, %s34
      %s23 = sphi 0, %s30
      %s24 = sphi 0, %s22
      %s25 = sphi 0, %s23
      %s26 = sphi 0, %s24
      %s27 = sphi 0, %s25
      %s37 = sphi 0, %s39
      %s40 = sphi 0, %s37
      %s41 = sphi 0, %s40
      %s57 = sphi 0, %s41
      %s61 = sphi 0, %s61
      %s63 = sphi 0, %s61
      %s64 = sphi 0, %s63
      %s78 = sphi 0, %s64
      %s84 = sphi 0, %s86
      %s87 = sphi 0, %s84
      %s88 = sphi 0, %s87
      %s104 = sphi 0, %s88
    $region4: #{tpu_custom_call.1} parent=1 // loop_header_branch
      %18 = sbr.rel (%p16) target = $region8
    $region5: #{tpu_custom_call.1} parent=1 // loop_body
      %s20 = ssub.s32 %s15, 1
      %s21 = ssub.s32 %s15, 2
      %s28 = sadd.s32 1, %s23
      %p29 = scmp.ge.s32.totalorder %s28, 1
      %s30 = scalar_select %p29, 0, %s28
      %s31 = sadd.s32 1, %s22
      %s32 = scalar_select %p29, %s31, %s22
      %p33 = scmp.ge.s32.totalorder %s32, 2
      %s34 = scalar_select %p33, 0, %s32
      %s35 = ssub.s32 %s22, %s34
      %p36 = scmp.eq.s32.totalorder %s35, 0
      %s38 = sadd.s32 %s37, 1
      %s39 = scalar_select %p36, %s37, %s38
      %p42 = pneg %p36
      %p43 = scmp.eq.s32.totalorder %s15, 1
      %p44 = por %p42, %p43
      %p45 = scmp.ne.s32.totalorder %s37, %s40
      %p46 = scmp.eq.s32.totalorder %s15, 0
      %p47 = por %p45, %p46
      %p48 = scmp.ne.s32.totalorder %s37, %s40
      %p49 = scmp.eq.s32.totalorder %s20, 1
      %p50 = por %p48, %p49
      %p51 = scmp.ne.s32.totalorder %s40, %s41
      %p52 = scmp.eq.s32.totalorder %s20, 0
      %p53 = por %p51, %p52
      %p54 = scmp.ne.s32.totalorder %s40, %s41
      %p55 = scmp.eq.s32.totalorder %s21, 1
      %p56 = por %p54, %p55
      %p58 = scmp.ne.s32.totalorder %s41, %s57
      %p59 = scmp.eq.s32.totalorder %s21, 0
      %p60 = por %p58, %p59
      %s62 = sadd.s32 %s61, 1
      %p65 = scmp.eq.s32.totalorder %s15, 1
      %p66 = scmp.ne.s32.totalorder %s61, %s63
      %p67 = scmp.eq.s32.totalorder %s15, 0
      %p68 = por %p66, %p67
      %p69 = scmp.ne.s32.totalorder %s61, %s63
      %p70 = scmp.eq.s32.totalorder %s20, 1
      %p71 = por %p69, %p70
      %p72 = scmp.ne.s32.totalorder %s63, %s64
      %p73 = scmp.eq.s32.totalorder %s20, 0
      %p74 = por %p72, %p73
      %p75 = scmp.ne.s32.totalorder %s63, %s64
      %p76 = scmp.eq.s32.totalorder %s21, 1
      %p77 = por %p75, %p76
      %p79 = scmp.ne.s32.totalorder %s64, %s78
      %p80 = scmp.eq.s32.totalorder %s21, 0
      %p81 = por %p79, %p80
      %s82 = ssub.s32 %s22, %s34
      %p83 = scmp.eq.s32.totalorder %s82, 0
      %s85 = sadd.s32 %s84, 1
      %s86 = scalar_select %p83, %s84, %s85
      %p89 = pneg %p83
      %p90 = scmp.eq.s32.totalorder %s15, 1
      %p91 = por %p89, %p90
      %p92 = scmp.ne.s32.totalorder %s84, %s87
      %p93 = scmp.eq.s32.totalorder %s15, 0
      %p94 = por %p92, %p93
      %p95 = scmp.ne.s32.totalorder %s84, %s87
      %p96 = scmp.eq.s32.totalorder %s20, 1
      %p97 = por %p95, %p96
      %p98 = scmp.ne.s32.totalorder %s87, %s88
      %p99 = scmp.eq.s32.totalorder %s20, 0
      %p100 = por %p98, %p99
      %p101 = scmp.ne.s32.totalorder %s87, %s88
      %p102 = scmp.eq.s32.totalorder %s21, 1
      %p103 = por %p101, %p102
      %p105 = scmp.ne.s32.totalorder %s88, %s104
      %p106 = scmp.eq.s32.totalorder %s21, 0
      %p107 = por %p105, %p106
      %p108 = scmp.le.s32.totalorder 1, %s15
      %p109 = scmp.lt.s32.totalorder %s15, 3
      %p110 = pnand %p108, %p109
      %p111 = pneg %p110
      // Predicated region
      $region9: #{tpu_custom_call.1} parent=5 // pred_check
        _
      $region10: #{tpu_custom_call.1} parent=5 // pred_check_branch
        %113 = sbr.rel (%p110) target = $region12
      $region11: #{tpu_custom_call.1} parent=5 // pred_region
        %s114 = ssub.s32 %s15, 1
        // Predicated region
        $region13: #{tpu_custom_call.1} parent=11 // pred_check
          %p115 = pneg %p74
        $region14: #{tpu_custom_call.1} parent=11 // pred_check_branch
          %117 = sbr.rel (%p115) target = $region16
        $region15: #{tpu_custom_call.1} parent=11 // pred_region
          %119 = vsyncadd [#allocation6], 0
          %s121 = sshll.u32 %s1, 4
          %s122 = int_to_ptr.hbm [resolvable:$true] %s121
          %s123 = sshll.u32 [#allocation5], 4
          %s124 = int_to_ptr.vmem [resolvable:$true] %s123
          %126 = dma.hbm_to_vmem [thread:$0]  %s122, 128, %s124, [#allocation6]
        $region16: #{tpu_custom_call.1} parent=11 // pred_fallthru
          _
      $region12: #{tpu_custom_call.1} parent=5 // pred_fallthru
        _
      %p127 = scmp.lt.s32.totalorder %s15, 2
      // Predicated region
      $region17: #{tpu_custom_call.1} parent=5 // pred_check
        %p128 = pneg %p127
      $region18: #{tpu_custom_call.1} parent=5 // pred_check_branch
        %130 = sbr.rel (%p128) target = $region20
      $region19: #{tpu_custom_call.1} parent=5 // pred_region
        // Predicated region
        $region21: #{tpu_custom_call.1} parent=19 // pred_check
          %p131 = pneg %p47
        $region22: #{tpu_custom_call.1} parent=19 // pred_check_branch
          %133 = sbr.rel (%p131) target = $region24
        $region23: #{tpu_custom_call.1} parent=19 // pred_region
          %s134 = sand.u32 %s37, 1
          %s135 = scalar_lea.sflag [#allocation3], %s134
          %s136 = sand.u32 %s37, 1
          %s137 = smul.addr %s136, 8
          %s138 = scalar_lea.vmem [#allocation2], %s137
          %140 = vsyncadd %s135, 0
          %s141 = smul.addr %s22, 8
          %s142 = scalar_lea.hbm %s0, %s141
          %s144 = sshll.u32 %s142, 4
          %s145 = int_to_ptr.hbm [resolvable:$true] %s144
          %s146 = sshll.u32 %s138, 4
          %s147 = int_to_ptr.vmem [resolvable:$true] %s146
          %149 = dma.hbm_to_vmem [thread:$0]  %s145, 128, %s147, %s135
        $region24: #{tpu_custom_call.1} parent=19 // pred_fallthru
          _
      $region20: #{tpu_custom_call.1} parent=5 // pred_fallthru
        _
      %p150 = scmp.le.s32.totalorder 1, %s15
      %p151 = scmp.lt.s32.totalorder %s15, 3
      %p152 = pnand %p150, %p151
      %p153 = pneg %p152
      // Predicated region
      $region25: #{tpu_custom_call.1} parent=5 // pred_check
        _
      $region26: #{tpu_custom_call.1} parent=5 // pred_check_branch
        %155 = sbr.rel (%p152) target = $region28
      $region27: #{tpu_custom_call.1} parent=5 // pred_region
        %s156 = ssub.s32 %s15, 1
        %s157 = sand.u32 %s40, 1
        %s158 = scalar_lea.sflag [#allocation3], %s157
        %s159 = sand.u32 %s40, 1
        %s160 = smul.addr %s159, 8
        %s161 = scalar_lea.vmem [#allocation2], %s160
        // Predicated region
        $region29: #{tpu_custom_call.1} parent=27 // pred_check
          %p162 = pneg %p53
        $region30: #{tpu_custom_call.1} parent=27 // pred_check_branch
          %164 = sbr.rel (%p162) target = $region32
        $region31: #{tpu_custom_call.1} parent=27 // pred_region
          %166 = dma.done %s158, 128
        $region32: #{tpu_custom_call.1} parent=27 // pred_fallthru
          _
        // Predicated region
        $region33: #{tpu_custom_call.1} parent=27 // pred_check
          %p167 = pneg %p74
        $region34: #{tpu_custom_call.1} parent=27 // pred_check_branch
          %169 = sbr.rel (%p167) target = $region36
        $region35: #{tpu_custom_call.1} parent=27 // pred_region
          %171 = dma.done [#allocation6], 128
        $region36: #{tpu_custom_call.1} parent=27 // pred_fallthru
          _
        %s172 = sand.u32 %s40, 1
        %s173 = scalar_lea.sflag [#allocation3], %s172
        %s174 = sand.u32 %s40, 1
        %s175 = smul.addr %s174, 8
        %s176 = scalar_lea.vmem [#allocation2], %s175
        %p177 = pneg %p53
        %p178 = pneg %p50
        %p179 = pneg %p74
        %p180 = pneg %p71
        %p181 = pneg %p100
        %p182 = pneg %p97
        %s183 = sand.u32 %s87, 1
        %s184 = scalar_lea.sflag [#allocation4], %s183
        %s185 = sand.u32 %s87, 1
        %s186 = smul.addr %s185, 8
        %s187 = scalar_lea.vmem [#allocation7], %s186
        %v188 = vld [vmem:[%s161] sm:$0xff]
        %v189 = vld [vmem:[#allocation5] sm:$0xff]
        %v190 = vadd.f32 %v188, %v189
        %191 = vst [vmem:[%s187] sm:$0xff] %v190
        %s192 = sand.u32 %s87, 1
        %s193 = scalar_lea.sflag [#allocation4], %s192
        %s194 = sand.u32 %s87, 1
        %s195 = smul.addr %s194, 8
        %s196 = scalar_lea.vmem [#allocation7], %s195
        // Predicated region
        $region37: #{tpu_custom_call.1} parent=27 // pred_check
          %p197 = pneg %p97
        $region38: #{tpu_custom_call.1} parent=27 // pred_check_branch
          %199 = sbr.rel (%p197) target = $region40
        $region39: #{tpu_custom_call.1} parent=27 // pred_region
          %201 = vsyncadd %s193, 0
          %s202 = smul.addr %s24, 8
          %s203 = scalar_lea.hbm %s2, %s202
          %s205 = sshll.u32 %s196, 4
          %s206 = int_to_ptr.vmem [resolvable:$true] %s205
          %s207 = sshll.u32 %s203, 4
          %s208 = int_to_ptr.hbm [resolvable:$true] %s207
          %210 = dma.vmem_to_hbm [thread:$0]  %s206, 128, %s208, %s193
        $region40: #{tpu_custom_call.1} parent=27 // pred_fallthru
          _
      $region28: #{tpu_custom_call.1} parent=5 // pred_fallthru
        _
      %p211 = scmp.le.s32.totalorder 2, %s15
      // Predicated region
      $region41: #{tpu_custom_call.1} parent=5 // pred_check
        %p212 = pneg %p211
      $region42: #{tpu_custom_call.1} parent=5 // pred_check_branch
        %214 = sbr.rel (%p212) target = $region44
      $region43: #{tpu_custom_call.1} parent=5 // pred_region
        %s215 = ssub.s32 %s15, 2
        // Predicated region
        $region45: #{tpu_custom_call.1} parent=43 // pred_check
          %p216 = pneg %p103
        $region46: #{tpu_custom_call.1} parent=43 // pred_check_branch
          %218 = sbr.rel (%p216) target = $region48
        $region47: #{tpu_custom_call.1} parent=43 // pred_region
          %s219 = sand.u32 %s88, 1
          %s220 = scalar_lea.sflag [#allocation4], %s219
          %s221 = sand.u32 %s88, 1
          %s222 = smul.addr %s221, 8
          %s223 = scalar_lea.vmem [#allocation7], %s222
          %225 = dma.done %s220, 128
        $region48: #{tpu_custom_call.1} parent=43 // pred_fallthru
          _
      $region44: #{tpu_custom_call.1} parent=5 // pred_fallthru
        _
    $region6: #{tpu_custom_call.1} parent=1 // loop_footer
      %s19 = sadd.s32 1, %s15
    $region7: #{tpu_custom_call.1} parent=1 // loop_footer_branch
      %14 = sbr.rel target = $region3
    $region8: #{tpu_custom_call.1} parent=1 // loop_exit
      _
    %226 = vsyncpa [#allocation3], 1
    %s227 = scalar_lea.sflag [#allocation3], 1
    %228 = vsyncpa %s227, 1
    %229 = vsyncpa [#allocation6], 1
    %230 = vsyncpa [#allocation4], 1
    %s231 = scalar_lea.sflag [#allocation4], 1
    %232 = vsyncpa %s231, 1

// kernel: tile.48
$region0: #{tile.48}
  #allocation0 [shape = 's32[1]{0}', space=sflag, size = 0x4, scoped, tag = 'scoped memory for tile.48']
  %s0 = inlined_call_operand.vmem [shape: f32[32], index: 0, kind: input, shape index: {}]
  %s1 = inlined_call_operand.vmem [shape: f32[4,32], index: 1, kind: output, shape index: {}]
  // Predicated region
  $region2: #{tile.48} parent=0 // pred_check
    _
  $region3: #{tile.48} parent=0 // pred_check_branch
    %3 = sbr.rel (0) target = $region5
  $region4: #{tile.48} parent=0 // pred_region
    _
  $region5: #{tile.48} parent=0 // pred_fallthru
    _
  %v4 = vld [vmem:[%s0] ss:$0 sm:$0xff]
  %5 = vst [vmem:[%s1] sm:$0xf] %v4

// kernel: tile.49
$region0: #{tile.49}
  %s0 = inlined_call_operand.vmem [shape: f32[4,32], index: 0, kind: input, shape index: {}]
  %s1 = inlined_call_operand.vmem [shape: f32[1,128], index: 1, kind: output, shape index: {}]
  $region1: #{tile.49} parent=0
    #allocation0 [shape = 'u8[4096]{0}', space=vmem, size = 0x1000, scoped, tag = 'scoped mem for output reshape']
    #allocation1 [shape = 'u8[4096]{0}', space=vmem, size = 0x1000, scoped, tag = 'scoped mem for input reshape']
    %s3 = ssub.s32 16, 1
    %v4 = vld [vmem:[%s0] sm:%s3]
    %5 = vst [vmem:[#allocation1] sm:%s3] %v4
    %v6 = vld [vmem:[#allocation1] sm:$0x1]
    %vm7 = vcmask 261120
    %8 = vst.msk [vmem:[#allocation0] sm:$0x1] %vm7, %v6
    %s9 = scalar_lea.vmem [#allocation1], 3
    %v10 = vld [vmem:[%s9] sm:$0x1]
    %11 = vrot.lane.b32.xlu0 %v10, 96
    %v12 = vpop.permute.xlu0 %11
    %vm13 = vcmask 1048320
    %14 = vst.msk [vmem:[#allocation0] sm:$0x1] %vm13, %v12
    %s15 = scalar_lea.vmem [#allocation1], 2
    %v16 = vld [vmem:[%s15] sm:$0x1]
    %17 = vrot.lane.b32.xlu0 %v16, 64
    %v18 = vpop.permute.xlu0 %17
    %vm19 = vcmask 785920
    %20 = vst.msk [vmem:[#allocation0] sm:$0x1] %vm19, %v18
    %s21 = scalar_lea.vmem [#allocation1], 1
    %v22 = vld [vmem:[%s21] sm:$0x1]
    %23 = vrot.lane.b32.xlu0 %v22, 32
    %v24 = vpop.permute.xlu0 %23
    %vm25 = vcmask 523520
    %26 = vst.msk [vmem:[#allocation0] sm:$0x1] %vm25, %v24
    %s28 = ssub.s32 2, 1
    %v29 = vld [vmem:[#allocation0] sm:%s28]
    %s31 = ssub.s32 2, 1
    %32 = vst [vmem:[%s1] sm:%s31] %v29

// kernel: tile.43
$region0: #{tile.43}
  #allocation0 [shape = 's32[1]{0}', space=sflag, size = 0x4, scoped, tag = 'scoped memory for tile.43']
  %s0 = inlined_call_operand.vmem [shape: f32[16], index: 0, kind: input, shape index: {}]
  %s1 = inlined_call_operand.vmem [shape: f32[8,16], index: 1, kind: output, shape index: {}]
  // Predicated region
  $region2: #{tile.43} parent=0 // pred_check
    _
  $region3: #{tile.43} parent=0 // pred_check_branch
    %3 = sbr.rel (0) target = $region5
  $region4: #{tile.43} parent=0 // pred_region
    _
  $region5: #{tile.43} parent=0 // pred_fallthru
    _
  %v4 = vld [vmem:[%s0] ss:$0 sm:$0xff]
  %5 = vst [vmem:[%s1] sm:$0xff] %v4

// kernel: tile.44
$region0: #{tile.44}
  %s0 = inlined_call_operand.vmem [shape: f32[8,16], index: 0, kind: input, shape index: {}]
  %s1 = inlined_call_operand.vmem [shape: f32[1,128], index: 1, kind: output, shape index: {}]
  $region1: #{tile.44} parent=0
    #allocation0 [shape = 'u8[4096]{0}', space=vmem, size = 0x1000, scoped, tag = 'scoped mem for output reshape']
    %v2 = vld [vmem:[%s0] sm:$0x1]
    %vm3 = vcmask 130048
    %4 = vst.msk [vmem:[#allocation0] sm:$0x1] %vm3, %v2
    %s5 = scalar_lea.vmem %s0, 7
    %v6 = vld [vmem:[%s5] sm:$0x1]
    %7 = vrot.lane.b32.xlu0 %v6, 112
    %v8 = vpop.permute.xlu0 %7
    %vm9 = vcmask 1048448
    %10 = vst.msk [vmem:[#allocation0] sm:$0x1] %vm9, %v8
    %s11 = scalar_lea.vmem %s0, 6
    %v12 = vld [vmem:[%s11] sm:$0x1]
    %13 = vrot.lane.b32.xlu0 %v12, 96
    %v14 = vpop.permute.xlu0 %13
    %vm15 = vcmask 917248
    %16 = vst.msk [vmem:[#allocation0] sm:$0x1] %vm15, %v14
    %s17 = scalar_lea.vmem %s0, 5
    %v18 = vld [vmem:[%s17] sm:$0x1]
    %19 = vrot.lane.b32.xlu0 %v18, 80
    %v20 = vpop.permute.xlu0 %19
    %vm21 = vcmask 786048
    %22 = vst.msk [vmem:[#allocation0] sm:$0x1] %vm21, %v20
    %s23 = scalar_lea.vmem %s0, 4
    %v24 = vld [vmem:[%s23] sm:$0x1]
    %25 = vrot.lane.b32.xlu0 %v24, 64
    %v26 = vpop.permute.xlu0 %25
    %vm27 = vcmask 654848
    %28 = vst.msk [vmem:[#allocation0] sm:$0x1] %vm27, %v26
    %s29 = scalar_lea.vmem %s0, 3
    %v30 = vld [vmem:[%s29] sm:$0x1]
    %31 = vrot.lane.b32.xlu0 %v30, 48
    %v32 = vpop.permute.xlu0 %31
    %vm33 = vcmask 523648
    %34 = vst.msk [vmem:[#allocation0] sm:$0x1] %vm33, %v32
    %s35 = scalar_lea.vmem %s0, 2
    %v36 = vld [vmem:[%s35] sm:$0x1]
    %37 = vrot.lane.b32.xlu0 %v36, 32
    %v38 = vpop.permute.xlu0 %37
    %vm39 = vcmask 392448
    %40 = vst.msk [vmem:[#allocation0] sm:$0x1] %vm39, %v38
    %s41 = scalar_lea.vmem %s0, 1
    %v42 = vld [vmem:[%s41] sm:$0x1]
    %43 = vrot.lane.b32.xlu0 %v42, 16
    %v44 = vpop.permute.xlu0 %43
    %vm45 = vcmask 261248
    %46 = vst.msk [vmem:[#allocation0] sm:$0x1] %vm45, %v44
    %s48 = ssub.s32 2, 1
    %v49 = vld [vmem:[#allocation0] sm:%s48]
    %s51 = ssub.s32 2, 1
    %52 = vst [vmem:[%s1] sm:%s51] %v49

// kernel: tile.68
$region0: #{tile.68}
  #allocation0 [shape = 's32[1]{0}', space=sflag, size = 0x4, scoped, tag = 'scoped memory for tile.68']
  %s0 = inlined_call_operand.vmem [shape: f32[3], index: 0, kind: input, shape index: {}]
  %s1 = inlined_call_operand.vmem [shape: f32[16,3], index: 1, kind: output, shape index: {}]
  // Predicated region
  $region2: #{tile.68} parent=0 // pred_check
    _
  $region3: #{tile.68} parent=0 // pred_check_branch
    %3 = sbr.rel (0) target = $region5
  $region4: #{tile.68} parent=0 // pred_region
    _
  $region5: #{tile.68} parent=0 // pred_fallthru
    _
  %v4 = vld [vmem:[%s0] ss:$0 sm:$0xff]
  %5 = vst [vmem:[%s1] sm:$0xff] %v4
  %s6 = scalar_lea.vmem %s1, 8
  %7 = vst [vmem:[%s6] sm:$0xff] %v4

// kernel: tile.69
$region0: #{tile.69}
  %s0 = inlined_call_operand.vmem [shape: f32[16,3], index: 0, kind: input, shape index: {}]
  %s1 = inlined_call_operand.vmem [shape: f32[48], index: 1, kind: output, shape index: {}]
  $region1: #{tile.69} parent=0
    #allocation0 [shape = 'u8[4096]{0}', space=vmem, size = 0x1000, scoped, tag = 'scoped mem for output reshape']
    %v2 = vld [vmem:[%s0] sm:$0x1]
    %vm3 = vcmask 23552
    %4 = vst.msk [vmem:[#allocation0] sm:$0x1] %vm3, %v2
    %s5 = scalar_lea.vmem %s0, 15
    %v6 = vld [vmem:[%s5] sm:$0x1]
    %7 = vrot.lane.b32.xlu0 %v6, 45
    %v8 = vpop.permute.xlu0 %7
    %vm9 = vcmask 392552
    %10 = vst.msk [vmem:[#allocation0] sm:$0x1] %vm9, %v8
    %s11 = scalar_lea.vmem %s0, 14
    %v12 = vld [vmem:[%s11] sm:$0x1]
    %13 = vrot.lane.b32.xlu0 %v12, 42
    %v14 = vpop.permute.xlu0 %13
    %vm15 = vcmask 367952
    %16 = vst.msk [vmem:[#allocation0] sm:$0x1] %vm15, %v14
    %s17 = scalar_lea.vmem %s0, 13
    %v18 = vld [vmem:[%s17] sm:$0x1]
    %19 = vrot.lane.b32.xlu0 %v18, 39
    %v20 = vpop.permute.xlu0 %19
    %vm21 = vcmask 343352
    %22 = vst.msk [vmem:[#allocation0] sm:$0x1] %vm21, %v20
    %s23 = scalar_lea.vmem %s0, 12
    %v24 = vld [vmem:[%s23] sm:$0x1]
    %25 = vrot.lane.b32.xlu0 %v24, 36
    %v26 = vpop.permute.xlu0 %25
    %vm27 = vcmask 318752
    %28 = vst.msk [vmem:[#allocation0] sm:$0x1] %vm27, %v26
    %s29 = scalar_lea.vmem %s0, 11
    %v30 = vld [vmem:[%s29] sm:$0x1]
    %31 = vrot.lane.b32.xlu0 %v30, 33
    %v32 = vpop.permute.xlu0 %31
    %vm33 = vcmask 294152
    %34 = vst.msk [vmem:[#allocation0] sm:$0x1] %vm33, %v32
    %s35 = scalar_lea.vmem %s0, 10
    %v36 = vld [vmem:[%s35] sm:$0x1]
    %37 = vrot.lane.b32.xlu0 %v36, 30
    %v38 = vpop.permute.xlu0 %37
    %vm39 = vcmask 269552
    %40 = vst.msk [vmem:[#allocation0] sm:$0x1] %vm39, %v38
    %s41 = scalar_lea.vmem %s0, 9
    %v42 = vld [vmem:[%s41] sm:$0x1]
    %43 = vrot.lane.b32.xlu0 %v42, 27
    %v44 = vpop.permute.xlu0 %43
    %vm45 = vcmask 244952
    %46 = vst.msk [vmem:[#allocation0] sm:$0x1] %vm45, %v44
    %s47 = scalar_lea.vmem %s0, 8
    %v48 = vld [vmem:[%s47] sm:$0x1]
    %49 = vrot.lane.b32.xlu0 %v48, 24
    %v50 = vpop.permute.xlu0 %49
    %vm51 = vcmask 220352
    %52 = vst.msk [vmem:[#allocation0] sm:$0x1] %vm51, %v50
    %s53 = scalar_lea.vmem %s0, 7
    %v54 = vld [vmem:[%s53] sm:$0x1]
    %55 = vrot.lane.b32.xlu0 %v54, 21
    %v56 = vpop.permute.xlu0 %55
    %vm57 = vcmask 195752
    %58 = vst.msk [vmem:[#allocation0] sm:$0x1] %vm57, %v56
    %s59 = scalar_lea.vmem %s0, 6
    %v60 = vld [vmem:[%s59] sm:$0x1]
    %61 = vrot.lane.b32.xlu0 %v60, 18
    %v62 = vpop.permute.xlu0 %61
    %vm63 = vcmask 171152
    %64 = vst.msk [vmem:[#allocation0] sm:$0x1] %vm63, %v62
    %s65 = scalar_lea.vmem %s0, 5
    %v66 = vld [vmem:[%s65] sm:$0x1]
    %67 = vrot.lane.b32.xlu0 %v66, 15
    %v68 = vpop.permute.xlu0 %67
    %vm69 = vcmask 146552
    %70 = vst.msk [vmem:[#allocation0] sm:$0x1] %vm69, %v68
    %s71 = scalar_lea.vmem %s0, 4
    %v72 = vld [vmem:[%s71] sm:$0x1]
    %73 = vrot.lane.b32.xlu0 %v72, 12
    %v74 = vpop.permute.xlu0 %73
    %vm75 = vcmask 121952
    %76 = vst.msk [vmem:[#allocation0] sm:$0x1] %vm75, %v74
    %s77 = scalar_lea.vmem %s0, 3
    %v78 = vld [vmem:[%s77] sm:$0x1]
    %79 = vrot.lane.b32.xlu0 %v78, 9
    %v80 = vpop.permute.xlu0 %79
    %vm81 = vcmask 97352
    %82 = vst.msk [vmem:[#allocation0] sm:$0x1] %vm81, %v80
    %s83 = scalar_lea.vmem %s0, 2
    %v84 = vld [vmem:[%s83] sm:$0x1]
    %85 = vrot.lane.b32.xlu0 %v84, 6
    %v86 = vpop.permute.xlu0 %85
    %vm87 = vcmask 72752
    %88 = vst.msk [vmem:[#allocation0] sm:$0x1] %vm87, %v86
    %s89 = scalar_lea.vmem %s0, 1
    %v90 = vld [vmem:[%s89] sm:$0x1]
    %91 = vrot.lane.b32.xlu0 %v90, 3
    %v92 = vpop.permute.xlu0 %91
    %vm93 = vcmask 48152
    %94 = vst.msk [vmem:[#allocation0] sm:$0x1] %vm93, %v92
    %s96 = ssub.s32 2, 1
    %v97 = vld [vmem:[#allocation0] sm:%s96]
    %s99 = ssub.s32 2, 1
    %100 = vst [vmem:[%s1] sm:%s99] %v97

// kernel: tile.38
$region0: #{tile.38}
  #allocation0 [shape = 's32[1]{0}', space=sflag, size = 0x4, scoped, tag = 'scoped memory for tile.38']
  %s0 = inlined_call_operand.vmem [shape: f32[8], index: 0, kind: input, shape index: {}]
  %s1 = inlined_call_operand.vmem [shape: f32[16,8], index: 1, kind: output, shape index: {}]
  // Predicated region
  $region2: #{tile.38} parent=0 // pred_check
    _
  $region3: #{tile.38} parent=0 // pred_check_branch
    %3 = sbr.rel (0) target = $region5
  $region4: #{tile.38} parent=0 // pred_region
    _
  $region5: #{tile.38} parent=0 // pred_fallthru
    _
  %v4 = vld [vmem:[%s0] ss:$0 sm:$0xff]
  %5 = vst [vmem:[%s1] sm:$0xff] %v4
  %s6 = scalar_lea.vmem %s1, 8
  %7 = vst [vmem:[%s6] sm:$0xff] %v4

// kernel: tile.39
$region0: #{tile.39}
  %s0 = inlined_call_operand.vmem [shape: f32[16,8], index: 0, kind: input, shape index: {}]
  %s1 = inlined_call_operand.vmem [shape: f32[1,128], index: 1, kind: output, shape index: {}]
  $region1: #{tile.39} parent=0
    #allocation0 [shape = 'u8[4096]{0}', space=vmem, size = 0x1000, scoped, tag = 'scoped mem for output reshape']
    %v2 = vld [vmem:[%s0] sm:$0x1]
    %vm3 = vcmask 64512
    %4 = vst.msk [vmem:[#allocation0] sm:$0x1] %vm3, %v2
    %s5 = scalar_lea.vmem %s0, 15
    %v6 = vld [vmem:[%s5] sm:$0x1]
    %7 = vrot.lane.b32.xlu0 %v6, 120
    %v8 = vpop.permute.xlu0 %7
    %vm9 = vcmask 1048512
    %10 = vst.msk [vmem:[#allocation0] sm:$0x1] %vm9, %v8
    %s11 = scalar_lea.vmem %s0, 14
    %v12 = vld [vmem:[%s11] sm:$0x1]
    %13 = vrot.lane.b32.xlu0 %v12, 112
    %v14 = vpop.permute.xlu0 %13
    %vm15 = vcmask 982912
    %16 = vst.msk [vmem:[#allocation0] sm:$0x1] %vm15, %v14
    %s17 = scalar_lea.vmem %s0, 13
    %v18 = vld [vmem:[%s17] sm:$0x1]
    %19 = vrot.lane.b32.xlu0 %v18, 104
    %v20 = vpop.permute.xlu0 %19
    %vm21 = vcmask 917312
    %22 = vst.msk [vmem:[#allocation0] sm:$0x1] %vm21, %v20
    %s23 = scalar_lea.vmem %s0, 12
    %v24 = vld [vmem:[%s23] sm:$0x1]
    %25 = vrot.lane.b32.xlu0 %v24, 96
    %v26 = vpop.permute.xlu0 %25
    %vm27 = vcmask 851712
    %28 = vst.msk [vmem:[#allocation0] sm:$0x1] %vm27, %v26
    %s29 = scalar_lea.vmem %s0, 11
    %v30 = vld [vmem:[%s29] sm:$0x1]
    %31 = vrot.lane.b32.xlu0 %v30, 88
    %v32 = vpop.permute.xlu0 %31
    %vm33 = vcmask 786112
    %34 = vst.msk [vmem:[#allocation0] sm:$0x1] %vm33, %v32
    %s35 = scalar_lea.vmem %s0, 10
    %v36 = vld [vmem:[%s35] sm:$0x1]
    %37 = vrot.lane.b32.xlu0 %v36, 80
    %v38 = vpop.permute.xlu0 %37
    %vm39 = vcmask 720512
    %40 = vst.msk [vmem:[#allocation0] sm:$0x1] %vm39, %v38
    %s41 = scalar_lea.vmem %s0, 9
    %v42 = vld [vmem:[%s41] sm:$0x1]
    %43 = vrot.lane.b32.xlu0 %v42, 72
    %v44 = vpop.permute.xlu0 %43
    %vm45 = vcmask 654912
    %46 = vst.msk [vmem:[#allocation0] sm:$0x1] %vm45, %v44
    %s47 = scalar_lea.vmem %s0, 8
    %v48 = vld [vmem:[%s47] sm:$0x1]
    %49 = vrot.lane.b32.xlu0 %v48, 64
    %v50 = vpop.permute.xlu0 %49
    %vm51 = vcmask 589312
    %52 = vst.msk [vmem:[#allocation0] sm:$0x1] %vm51, %v50
    %s53 = scalar_lea.vmem %s0, 7
    %v54 = vld [vmem:[%s53] sm:$0x1]
    %55 = vrot.lane.b32.xlu0 %v54, 56
    %v56 = vpop.permute.xlu0 %55
    %vm57 = vcmask 523712
    %58 = vst.msk [vmem:[#allocation0] sm:$0x1] %vm57, %v56
    %s59 = scalar_lea.vmem %s0, 6
    %v60 = vld [vmem:[%s59] sm:$0x1]
    %61 = vrot.lane.b32.xlu0 %v60, 48
    %v62 = vpop.permute.xlu0 %61
    %vm63 = vcmask 458112
    %64 = vst.msk [vmem:[#allocation0] sm:$0x1] %vm63, %v62
    %s65 = scalar_lea.vmem %s0, 5
    %v66 = vld [vmem:[%s65] sm:$0x1]
    %67 = vrot.lane.b32.xlu0 %v66, 40
    %v68 = vpop.permute.xlu0 %67
    %vm69 = vcmask 392512
    %70 = vst.msk [vmem:[#allocation0] sm:$0x1] %vm69, %v68
    %s71 = scalar_lea.vmem %s0, 4
    %v72 = vld [vmem:[%s71] sm:$0x1]
    %73 = vrot.lane.b32.xlu0 %v72, 32
    %v74 = vpop.permute.xlu0 %73
    %vm75 = vcmask 326912
    %76 = vst.msk [vmem:[#allocation0] sm:$0x1] %vm75, %v74
    %s77 = scalar_lea.vmem %s0, 3
    %v78 = vld [vmem:[%s77] sm:$0x1]
    %79 = vrot.lane.b32.xlu0 %v78, 24
    %v80 = vpop.permute.xlu0 %79
    %vm81 = vcmask 261312
    %82 = vst.msk [vmem:[#allocation0] sm:$0x1] %vm81, %v80
    %s83 = scalar_lea.vmem %s0, 2
    %v84 = vld [vmem:[%s83] sm:$0x1]
    %85 = vrot.lane.b32.xlu0 %v84, 16
    %v86 = vpop.permute.xlu0 %85
    %vm87 = vcmask 195712
    %88 = vst.msk [vmem:[#allocation0] sm:$0x1] %vm87, %v86
    %s89 = scalar_lea.vmem %s0, 1
    %v90 = vld [vmem:[%s89] sm:$0x1]
    %91 = vrot.lane.b32.xlu0 %v90, 8
    %v92 = vpop.permute.xlu0 %91
    %vm93 = vcmask 130112
    %94 = vst.msk [vmem:[#allocation0] sm:$0x1] %vm93, %v92
    %s96 = ssub.s32 2, 1
    %v97 = vld [vmem:[#allocation0] sm:%s96]
    %s99 = ssub.s32 2, 1
    %100 = vst [vmem:[%s1] sm:%s99] %v97

// kernel: unetplusplus_forward.6
$region0: #{unetplusplus_forward.6}
  #allocation0 [shape = 'u32[]', space=smem, size = 0x4, offset = 0x4, fixed_abs, tag = 'smem constant byte address 0x4 - core index']
  #allocation1 [shape = 'u32[72,128]{1,0:T(1,128)}', space=vmem, size = 0x9000, scoped, tag = 'internal scratch']
  %s0 = inlined_call_operand.vmem [shape: bf16[2,16,48], index: 0, kind: input, shape index: {}]
  %s1 = inlined_call_operand.vmem [shape: bf16[3,48,128], index: 1, kind: input, shape index: {}]
  %s2 = inlined_call_operand.vmem [shape: f32[1,128], index: 2, kind: input, shape index: {}]
  %s3 = inlined_call_operand.vmem [shape: bf16[2,16,128], index: 3, kind: output, shape index: {}]
  %s4 = sld [smem:[#allocation0]]
  $region45: #{unetplusplus_forward.6} parent=0
    _
  %s6 = ssub.s32 1, %s4
  %s7 = scalar_select 0, %s6, %s4
  loop: start=0, step=1, limit=4
  $region2: #{unetplusplus_forward.6} parent=0 // loop_pre_header
    _
  $region3: #{unetplusplus_forward.6} parent=0 // loop_header
    %s9 = sphi 0, %s13
    %p10 = scmp.ge.s32.totalorder %s9, 4
    %s16 = sphi 0, %s28
    %s17 = sphi 0, %s24
    %s18 = sphi 0, %s16
    %s19 = sphi 0, %s17
    %s20 = sphi 0, %s18
    %s21 = sphi 0, %s19
    %s31 = sphi 0, %s33
    %s34 = sphi 0, %s31
    %s35 = sphi 0, %s34
    %s51 = sphi 0, %s35
    %s55 = sphi 0, %s55
    %s57 = sphi 0, %s55
    %s58 = sphi 0, %s57
    %s72 = sphi 0, %s58
    %s76 = sphi 0, %s76
    %s78 = sphi 0, %s76
    %s79 = sphi 0, %s78
    %s93 = sphi 0, %s79
    %s101 = sphi 0, %s103
    %s104 = sphi 0, %s101
    %s105 = sphi 0, %s104
    %s121 = sphi 0, %s105
  $region4: #{unetplusplus_forward.6} parent=0 // loop_header_branch
    %12 = sbr.rel (%p10) target = $region8
  $region5: #{unetplusplus_forward.6} parent=0 // loop_body
    %s14 = ssub.s32 %s9, 1
    %s15 = ssub.s32 %s9, 2
    %s22 = sadd.s32 1, %s17
    %p23 = scmp.ge.s32.totalorder %s22, 1
    %s24 = scalar_select %p23, 0, %s22
    %s25 = sadd.s32 1, %s16
    %s26 = scalar_select %p23, %s25, %s16
    %p27 = scmp.ge.s32.totalorder %s26, 2
    %s28 = scalar_select %p27, 0, %s26
    %s29 = ssub.s32 %s16, %s28
    %p30 = scmp.eq.s32.totalorder %s29, 0
    %s32 = sadd.s32 %s31, 1
    %s33 = scalar_select %p30, %s31, %s32
    %p36 = pneg %p30
    %p37 = scmp.eq.s32.totalorder %s9, 1
    %p38 = por %p36, %p37
    %p39 = scmp.ne.s32.totalorder %s31, %s34
    %p40 = scmp.eq.s32.totalorder %s9, 0
    %p41 = por %p39, %p40
    %p42 = scmp.ne.s32.totalorder %s31, %s34
    %p43 = scmp.eq.s32.totalorder %s14, 1
    %p44 = por %p42, %p43
    %p45 = scmp.ne.s32.totalorder %s34, %s35
    %p46 = scmp.eq.s32.totalorder %s14, 0
    %p47 = por %p45, %p46
    %p48 = scmp.ne.s32.totalorder %s34, %s35
    %p49 = scmp.eq.s32.totalorder %s15, 1
    %p50 = por %p48, %p49
    %p52 = scmp.ne.s32.totalorder %s35, %s51
    %p53 = scmp.eq.s32.totalorder %s15, 0
    %p54 = por %p52, %p53
    %s56 = sadd.s32 %s55, 1
    %p59 = scmp.eq.s32.totalorder %s9, 1
    %p60 = scmp.ne.s32.totalorder %s55, %s57
    %p61 = scmp.eq.s32.totalorder %s9, 0
    %p62 = por %p60, %p61
    %p63 = scmp.ne.s32.totalorder %s55, %s57
    %p64 = scmp.eq.s32.totalorder %s14, 1
    %p65 = por %p63, %p64
    %p66 = scmp.ne.s32.totalorder %s57, %s58
    %p67 = scmp.eq.s32.totalorder %s14, 0
    %p68 = por %p66, %p67
    %p69 = scmp.ne.s32.totalorder %s57, %s58
    %p70 = scmp.eq.s32.totalorder %s15, 1
    %p71 = por %p69, %p70
    %p73 = scmp.ne.s32.totalorder %s58, %s72
    %p74 = scmp.eq.s32.totalorder %s15, 0
    %p75 = por %p73, %p74
    %s77 = sadd.s32 %s76, 1
    %p80 = scmp.eq.s32.totalorder %s9, 1
    %p81 = scmp.ne.s32.totalorder %s76, %s78
    %p82 = scmp.eq.s32.totalorder %s9, 0
    %p83 = por %p81, %p82
    %p84 = scmp.ne.s32.totalorder %s76, %s78
    %p85 = scmp.eq.s32.totalorder %s14, 1
    %p86 = por %p84, %p85
    %p87 = scmp.ne.s32.totalorder %s78, %s79
    %p88 = scmp.eq.s32.totalorder %s14, 0
    %p89 = por %p87, %p88
    %p90 = scmp.ne.s32.totalorder %s78, %s79
    %p91 = scmp.eq.s32.totalorder %s15, 1
    %p92 = por %p90, %p91
    %p94 = scmp.ne.s32.totalorder %s79, %s93
    %p95 = scmp.eq.s32.totalorder %s15, 0
    %p96 = por %p94, %p95
    %s97 = ssub.s32 %s16, %s28
    %s98 = ssub.s32 %s17, %s24
    %s99 = sor.u32 %s97, %s98
    %p100 = scmp.eq.s32.totalorder %s99, 0
    %s102 = sadd.s32 %s101, 1
    %s103 = scalar_select %p100, %s101, %s102
    %p106 = pneg %p100
    %p107 = scmp.eq.s32.totalorder %s9, 1
    %p108 = por %p106, %p107
    %p109 = scmp.ne.s32.totalorder %s101, %s104
    %p110 = scmp.eq.s32.totalorder %s9, 0
    %p111 = por %p109, %p110
    %p112 = scmp.ne.s32.totalorder %s101, %s104
    %p113 = scmp.eq.s32.totalorder %s14, 1
    %p114 = por %p112, %p113
    %p115 = scmp.ne.s32.totalorder %s104, %s105
    %p116 = scmp.eq.s32.totalorder %s14, 0
    %p117 = por %p115, %p116
    %p118 = scmp.ne.s32.totalorder %s104, %s105
    %p119 = scmp.eq.s32.totalorder %s15, 1
    %p120 = por %p118, %p119
    %p122 = scmp.ne.s32.totalorder %s105, %s121
    %p123 = scmp.eq.s32.totalorder %s15, 0
    %p124 = por %p122, %p123
    %p125 = scmp.le.s32.totalorder 1, %s9
    %p126 = scmp.lt.s32.totalorder %s9, 3
    %p127 = pnand %p125, %p126
    %p128 = pneg %p127
    // Predicated region
    $region9: #{unetplusplus_forward.6} parent=5 // pred_check
      _
    $region10: #{unetplusplus_forward.6} parent=5 // pred_check_branch
      %130 = sbr.rel (%p127) target = $region12
    $region11: #{unetplusplus_forward.6} parent=5 // pred_region
      %s131 = ssub.s32 %s9, 1
      // Predicated region
      $region13: #{unetplusplus_forward.6} parent=11 // pred_check
        %p132 = pneg %p68
      $region14: #{unetplusplus_forward.6} parent=11 // pred_check_branch
        %134 = sbr.rel (%p132) target = $region16
      $region15: #{unetplusplus_forward.6} parent=11 // pred_region
        _
      $region16: #{unetplusplus_forward.6} parent=11 // pred_fallthru
        _
      // Predicated region
      $region17: #{unetplusplus_forward.6} parent=11 // pred_check
        %p135 = pneg %p89
      $region18: #{unetplusplus_forward.6} parent=11 // pred_check_branch
        %137 = sbr.rel (%p135) target = $region20
      $region19: #{unetplusplus_forward.6} parent=11 // pred_region
        _
      $region20: #{unetplusplus_forward.6} parent=11 // pred_fallthru
        _
    $region12: #{unetplusplus_forward.6} parent=5 // pred_fallthru
      _
    %p138 = scmp.lt.s32.totalorder %s9, 2
    // Predicated region
    $region21: #{unetplusplus_forward.6} parent=5 // pred_check
      %p139 = pneg %p138
    $region22: #{unetplusplus_forward.6} parent=5 // pred_check_branch
      %141 = sbr.rel (%p139) target = $region24
    $region23: #{unetplusplus_forward.6} parent=5 // pred_region
      // Predicated region
      $region25: #{unetplusplus_forward.6} parent=23 // pred_check
        %p142 = pneg %p41
      $region26: #{unetplusplus_forward.6} parent=23 // pred_check_branch
        %144 = sbr.rel (%p142) target = $region28
      $region27: #{unetplusplus_forward.6} parent=23 // pred_region
        %p145 = scmp.lt.s32.totalorder %s16, 1
        %s146 = scalar_select %p145, %s16, 1
        %s147 = smul.addr %s146, 2
        %s148 = smul.addr %s147, 4
        %s149 = scalar_lea.vmem %s0, %s148
      $region28: #{unetplusplus_forward.6} parent=23 // pred_fallthru
        _
    $region24: #{unetplusplus_forward.6} parent=5 // pred_fallthru
      _
    %p150 = scmp.le.s32.totalorder 1, %s9
    %p151 = scmp.lt.s32.totalorder %s9, 3
    %p152 = pnand %p150, %p151
    %p153 = pneg %p152
    // Predicated region
    $region29: #{unetplusplus_forward.6} parent=5 // pred_check
      _
    $region30: #{unetplusplus_forward.6} parent=5 // pred_check_branch
      %155 = sbr.rel (%p152) target = $region32
    $region31: #{unetplusplus_forward.6} parent=5 // pred_region
      %s156 = ssub.s32 %s9, 1
      %p157 = scmp.lt.s32.totalorder %s18, 1
      %s158 = scalar_select %p157, %s18, 1
      %s159 = smul.addr %s158, 2
      %s160 = smul.addr %s159, 4
      %s161 = scalar_lea.vmem %s0, %s160
      %p162 = pneg %p47
      %p163 = pneg %p44
      %p164 = pneg %p68
      %p165 = pneg %p65
      %p166 = pneg %p89
      %p167 = pneg %p86
      %p168 = pneg %p117
      %p169 = pneg %p114
      %s170 = smul.u32 2, %s19
      %p171 = scmp.lt.s32.totalorder %s18, 1
      %s172 = scalar_select %p171, %s18, 1
      %p173 = scmp.lt.s32.totalorder %s170, 1
      %s174 = scalar_select %p173, %s170, 1
      %s175 = smul.addr %s172, 2
      %s176 = sadd.s32 %s174, %s175
      %s177 = smul.addr %s176, 4
      %s178 = scalar_lea.vmem %s3, %s177
      %p179 = scmp.lt.s32.totalorder %s18, 1
      %s180 = scalar_select %p179, %s18, 1
      %s181 = smul.addr %s180, 2
      %s182 = smul.addr %s181, 4
      %s183 = scalar_lea.vmem %s0, %s182
      %s184 = smul.u32 2, %s19
      %p185 = scmp.lt.s32.totalorder %s18, 1
      %s186 = scalar_select %p185, %s18, 1
      %p187 = scmp.lt.s32.totalorder %s184, 1
      %s188 = scalar_select %p187, %s184, 1
      %s189 = smul.addr %s186, 2
      %s190 = sadd.s32 %s188, %s189
      %s191 = smul.addr %s190, 4
      %s192 = scalar_lea.vmem %s3, %s191
      %s193 = smul.u32 2, %s19
      %v195 = vld [vmem:[%s1] sm:$0xf]
      %v196 = vld [vmem:[%s1 + $0x4] sm:$0xf]
      %v197 = vld [vmem:[%s1 + $0x8] sm:$0xf]
      %v198 = vld [vmem:[%s1 + $0xc] sm:$0xf]
      %v199 = vld [vmem:[%s1 + $0x10] sm:$0xf]
      %v200 = vld [vmem:[%s1 + $0x14] sm:$0xf]
      %s201 = scalar_lea.vmem %s1, 24
      %v202 = vld [vmem:[%s201] sm:$0xf]
      %v203 = vld [vmem:[%s201 + $0x4] sm:$0xf]
      %v204 = vld [vmem:[%s201 + $0x8] sm:$0xf]
      %v205 = vld [vmem:[%s201 + $0xc] sm:$0xf]
      %v206 = vld [vmem:[%s201 + $0x10] sm:$0xf]
      %v207 = vld [vmem:[%s201 + $0x14] sm:$0xf]
      %s208 = scalar_lea.vmem %s1, 48
      %v209 = vld [vmem:[%s208] sm:$0xf]
      %v210 = vld [vmem:[%s208 + $0x4] sm:$0xf]
      %v211 = vld [vmem:[%s208 + $0x8] sm:$0xf]
      %v212 = vld [vmem:[%s208 + $0xc] sm:$0xf]
      %v213 = vld [vmem:[%s208 + $0x10] sm:$0xf]
      %v214 = vld [vmem:[%s208 + $0x14] sm:$0xf]
      %v215 = vld [vmem:[%s183] sm:$0xf]
      %v216 = vld [vmem:[%s183 + $0x4] sm:$0xf]
      %v219 = vunpack.c.l.b16 %v215
      %v220 = vunpack.c.l.b16 %v216
      %v221 = vpack.c.b16 %v220, %v219
      %v228 = vunpack.c.l.b16 %v195
      %v229 = vunpack.c.l.b16 %v196
      %v230 = vunpack.c.l.b16 %v197
      %v231 = vunpack.c.l.b16 %v198
      %v232 = vunpack.c.l.b16 %v199
      %v233 = vunpack.c.l.b16 %v200
      %v234 = vpack.c.b16 %v229, %v228
      %v235 = vpack.c.b16 %v231, %v230
      %v236 = vpack.c.b16 %v233, %v232
      %vm240 = vcmask 392192
      %v242 = vsel %vm240, %v221, 0
      %244 = vmatpush.bf16.msra.mxu0 0
      %245 = vmatpush.bf16.msra.mxu0 0
      %246 = vmatpush.bf16.msra.mxu0 0
      %247 = vmatpush.bf16.msra.mxu0 0
      %248 = vmatpush.bf16.msra.mxu0 0
      %249 = vmatpush.bf16.msra.mxu0 %v236
      %250 = vmatpush.bf16.msra.mxu0 %v235
      %251 = vmatpush.bf16.msra.mxu0 %v234
      %252 = vmatmul.bf16.gmra.mxu0 %v242
      %v253 = vpop.f32.mrf.mxu0
      %v254 = vadd.f32 0.0, %v253
      %v255 = vpop.f32.mrf.mxu0
      %v256 = vadd.f32 0.0, %v255
      %257 = vdwg.mxu0
      %v264 = vunpack.c.l.b16 %v209
      %v265 = vunpack.c.l.b16 %v210
      %v266 = vunpack.c.l.b16 %v211
      %v267 = vunpack.c.l.b16 %v212
      %v268 = vunpack.c.l.b16 %v213
      %v269 = vunpack.c.l.b16 %v214
      %v270 = vpack.c.b16 %v265, %v264
      %v271 = vpack.c.b16 %v267, %v266
      %v272 = vpack.c.b16 %v269, %v268
      %276 = vmatpush.bf16.msra.mxu0 0
      %277 = vmatpush.bf16.msra.mxu0 0
      %278 = vmatpush.bf16.msra.mxu0 0
      %279 = vmatpush.bf16.msra.mxu0 0
      %280 = vmatpush.bf16.msra.mxu0 0
      %281 = vmatpush.bf16.msra.mxu0 %v272
      %282 = vmatpush.bf16.msra.mxu0 %v271
      %283 = vmatpush.bf16.msra.mxu0 %v270
      %284 = vmatmul.bf16.gmra.mxu0 %v242
      %v285 = vpop.f32.mrf.mxu0
      %v286 = vadd.f32 0.0, %v285
      %v287 = vpop.f32.mrf.mxu0
      %v288 = vadd.f32 0.0, %v287
      %289 = vdwg.mxu0
      %v290 = vlaneseq
      %v291 = vshrl.u32 %v290, 7
      %v292 = vadd.s32 %v291, 8
      %v293 = vrot.slane %v254, 7
      %v294 = vrot.slane %v256, 7
      %vm295 = vcmp.lt.s32.totalorder %v291, 1
      %v296 = vsel %vm295, %v293, %v294
      %v297 = vsel %vm295, %v294, %v293
      %v298 = vrot.slane %v286, 1
      %v299 = vrot.slane %v288, 1
      %vm300 = vcmp.lt.s32.totalorder %v291, 7
      %v301 = vsel %vm300, %v298, %v299
      %v302 = vsel %vm300, %v299, %v298
      %vm303 = vcmp.eq.s32.totalorder %v291, 0
      %vm304 = vcmp.eq.s32.totalorder %v292, 0
      %v305 = vsel %vm303, 0.0, %v297
      %v306 = vsel %vm304, 0.0, %v296
      %vm307 = vcmp.eq.s32.totalorder %v291, 15
      %vm308 = vcmp.eq.s32.totalorder %v292, 15
      %v309 = vsel %vm307, 0.0, %v301
      %v310 = vsel %vm308, 0.0, %v302
      %v317 = vunpack.c.l.b16 %v202
      %v318 = vunpack.c.l.b16 %v203
      %v319 = vunpack.c.l.b16 %v204
      %v320 = vunpack.c.l.b16 %v205
      %v321 = vunpack.c.l.b16 %v206
      %v322 = vunpack.c.l.b16 %v207
      %v323 = vpack.c.b16 %v318, %v317
      %v324 = vpack.c.b16 %v320, %v319
      %v325 = vpack.c.b16 %v322, %v321
      %329 = vmatpush.bf16.msra.mxu0 0
      %330 = vmatpush.bf16.msra.mxu0 0
      %331 = vmatpush.bf16.msra.mxu0 0
      %332 = vmatpush.bf16.msra.mxu0 0
      %333 = vmatpush.bf16.msra.mxu0 0
      %334 = vmatpush.bf16.msra.mxu0 %v325
      %335 = vmatpush.bf16.msra.mxu0 %v324
      %336 = vmatpush.bf16.msra.mxu0 %v323
      %337 = vmatmul.bf16.gmra.mxu0 %v242
      %v338 = vpop.f32.mrf.mxu0
      %v339 = vadd.f32 %v305, %v338
      %v340 = vpop.f32.mrf.mxu0
      %v341 = vadd.f32 %v306, %v340
      %342 = vdwg.mxu0
      %v343 = vadd.f32 %v339, %v309
      %v344 = vadd.f32 %v341, %v310
      %v345 = vld [vmem:[%s2] sm:$0x1]
      %v347 = vperm.slane %v345, 0
      %v349 = vadd.f32 %v343, %v347
      %v350 = vadd.f32 %v344, %v347
      %v351 = vmax.f32 %v349, 0.0
      %v352 = vmax.f32 %v350, 0.0
      %v353 = vpack.c.bf16 %v351, %v351
      %v354 = vpack.c.bf16 %v352, %v352
      %355 = vst [vmem:[%s192] sm:$0xf] %v353
      %356 = vst [vmem:[%s192 + $0x4] sm:$0xf] %v354
      %s357 = smul.u32 2, %s19
      %p358 = scmp.lt.s32.totalorder %s18, 1
      %s359 = scalar_select %p358, %s18, 1
      %p360 = scmp.lt.s32.totalorder %s357, 1
      %s361 = scalar_select %p360, %s357, 1
      %s362 = smul.addr %s359, 2
      %s363 = sadd.s32 %s361, %s362
      %s364 = smul.addr %s363, 4
      %s365 = scalar_lea.vmem %s3, %s364
      // Predicated region
      $region33: #{unetplusplus_forward.6} parent=31 // pred_check
        %p366 = pneg %p114
      $region34: #{unetplusplus_forward.6} parent=31 // pred_check_branch
        %368 = sbr.rel (%p366) target = $region36
      $region35: #{unetplusplus_forward.6} parent=31 // pred_region
        %s369 = smul.u32 2, %s19
      $region36: #{unetplusplus_forward.6} parent=31 // pred_fallthru
        _
    $region32: #{unetplusplus_forward.6} parent=5 // pred_fallthru
      _
    %p370 = scmp.le.s32.totalorder 2, %s9
    // Predicated region
    $region37: #{unetplusplus_forward.6} parent=5 // pred_check
      %p371 = pneg %p370
    $region38: #{unetplusplus_forward.6} parent=5 // pred_check_branch
      %373 = sbr.rel (%p371) target = $region40
    $region39: #{unetplusplus_forward.6} parent=5 // pred_region
      %s374 = ssub.s32 %s9, 2
      // Predicated region
      $region41: #{unetplusplus_forward.6} parent=39 // pred_check
        %p375 = pneg %p120
      $region42: #{unetplusplus_forward.6} parent=39 // pred_check_branch
        %377 = sbr.rel (%p375) target = $region44
      $region43: #{unetplusplus_forward.6} parent=39 // pred_region
        %s378 = smul.u32 2, %s21
        %p379 = scmp.lt.s32.totalorder %s20, 1
        %s380 = scalar_select %p379, %s20, 1
        %p381 = scmp.lt.s32.totalorder %s378, 1
        %s382 = scalar_select %p381, %s378, 1
        %s383 = smul.addr %s380, 2
        %s384 = sadd.s32 %s382, %s383
        %s385 = smul.addr %s384, 4
        %s386 = scalar_lea.vmem %s3, %s385
      $region44: #{unetplusplus_forward.6} parent=39 // pred_fallthru
        _
    $region40: #{unetplusplus_forward.6} parent=5 // pred_fallthru
      _
  $region6: #{unetplusplus_forward.6} parent=0 // loop_footer
    %s13 = sadd.s32 1, %s9
  $region7: #{unetplusplus_forward.6} parent=0 // loop_footer_branch
    %8 = sbr.rel target = $region3
  $region8: #{unetplusplus_forward.6} parent=0 // loop_exit
    _

// kernel: unetplusplus_forward.7
$region0: #{unetplusplus_forward.7}
  #allocation0 [shape = 'u32[]', space=smem, size = 0x4, offset = 0x4, fixed_abs, tag = 'smem constant byte address 0x4 - core index']
  #allocation1 [shape = 'u32[72,128]{1,0:T(1,128)}', space=vmem, size = 0x9000, scoped, tag = 'internal scratch']
  %s0 = inlined_call_operand.vmem [shape: bf16[2,8,64], index: 0, kind: input, shape index: {}]
  %s1 = inlined_call_operand.vmem [shape: bf16[3,64,128], index: 1, kind: input, shape index: {}]
  %s2 = inlined_call_operand.vmem [shape: f32[1,128], index: 2, kind: input, shape index: {}]
  %s3 = inlined_call_operand.vmem [shape: bf16[2,8,128], index: 3, kind: output, shape index: {}]
  %s4 = sld [smem:[#allocation0]]
  $region45: #{unetplusplus_forward.7} parent=0
    _
  %s6 = ssub.s32 1, %s4
  %s7 = scalar_select 0, %s6, %s4
  loop: start=0, step=1, limit=4
  $region2: #{unetplusplus_forward.7} parent=0 // loop_pre_header
    _
  $region3: #{unetplusplus_forward.7} parent=0 // loop_header
    %s9 = sphi 0, %s13
    %p10 = scmp.ge.s32.totalorder %s9, 4
    %s16 = sphi 0, %s28
    %s17 = sphi 0, %s24
    %s18 = sphi 0, %s16
    %s19 = sphi 0, %s17
    %s20 = sphi 0, %s18
    %s21 = sphi 0, %s19
    %s31 = sphi 0, %s33
    %s34 = sphi 0, %s31
    %s35 = sphi 0, %s34
    %s51 = sphi 0, %s35
    %s55 = sphi 0, %s55
    %s57 = sphi 0, %s55
    %s58 = sphi 0, %s57
    %s72 = sphi 0, %s58
    %s76 = sphi 0, %s76
    %s78 = sphi 0, %s76
    %s79 = sphi 0, %s78
    %s93 = sphi 0, %s79
    %s101 = sphi 0, %s103
    %s104 = sphi 0, %s101
    %s105 = sphi 0, %s104
    %s121 = sphi 0, %s105
  $region4: #{unetplusplus_forward.7} parent=0 // loop_header_branch
    %12 = sbr.rel (%p10) target = $region8
  $region5: #{unetplusplus_forward.7} parent=0 // loop_body
    %s14 = ssub.s32 %s9, 1
    %s15 = ssub.s32 %s9, 2
    %s22 = sadd.s32 1, %s17
    %p23 = scmp.ge.s32.totalorder %s22, 1
    %s24 = scalar_select %p23, 0, %s22
    %s25 = sadd.s32 1, %s16
    %s26 = scalar_select %p23, %s25, %s16
    %p27 = scmp.ge.s32.totalorder %s26, 2
    %s28 = scalar_select %p27, 0, %s26
    %s29 = ssub.s32 %s16, %s28
    %p30 = scmp.eq.s32.totalorder %s29, 0
    %s32 = sadd.s32 %s31, 1
    %s33 = scalar_select %p30, %s31, %s32
    %p36 = pneg %p30
    %p37 = scmp.eq.s32.totalorder %s9, 1
    %p38 = por %p36, %p37
    %p39 = scmp.ne.s32.totalorder %s31, %s34
    %p40 = scmp.eq.s32.totalorder %s9, 0
    %p41 = por %p39, %p40
    %p42 = scmp.ne.s32.totalorder %s31, %s34
    %p43 = scmp.eq.s32.totalorder %s14, 1
    %p44 = por %p42, %p43
    %p45 = scmp.ne.s32.totalorder %s34, %s35
    %p46 = scmp.eq.s32.totalorder %s14, 0
    %p47 = por %p45, %p46
    %p48 = scmp.ne.s32.totalorder %s34, %s35
    %p49 = scmp.eq.s32.totalorder %s15, 1
    %p50 = por %p48, %p49
    %p52 = scmp.ne.s32.totalorder %s35, %s51
    %p53 = scmp.eq.s32.totalorder %s15, 0
    %p54 = por %p52, %p53
    %s56 = sadd.s32 %s55, 1
    %p59 = scmp.eq.s32.totalorder %s9, 1
    %p60 = scmp.ne.s32.totalorder %s55, %s57
    %p61 = scmp.eq.s32.totalorder %s9, 0
    %p62 = por %p60, %p61
    %p63 = scmp.ne.s32.totalorder %s55, %s57
    %p64 = scmp.eq.s32.totalorder %s14, 1
    %p65 = por %p63, %p64
    %p66 = scmp.ne.s32.totalorder %s57, %s58
    %p67 = scmp.eq.s32.totalorder %s14, 0
    %p68 = por %p66, %p67
    %p69 = scmp.ne.s32.totalorder %s57, %s58
    %p70 = scmp.eq.s32.totalorder %s15, 1
    %p71 = por %p69, %p70
    %p73 = scmp.ne.s32.totalorder %s58, %s72
    %p74 = scmp.eq.s32.totalorder %s15, 0
    %p75 = por %p73, %p74
    %s77 = sadd.s32 %s76, 1
    %p80 = scmp.eq.s32.totalorder %s9, 1
    %p81 = scmp.ne.s32.totalorder %s76, %s78
    %p82 = scmp.eq.s32.totalorder %s9, 0
    %p83 = por %p81, %p82
    %p84 = scmp.ne.s32.totalorder %s76, %s78
    %p85 = scmp.eq.s32.totalorder %s14, 1
    %p86 = por %p84, %p85
    %p87 = scmp.ne.s32.totalorder %s78, %s79
    %p88 = scmp.eq.s32.totalorder %s14, 0
    %p89 = por %p87, %p88
    %p90 = scmp.ne.s32.totalorder %s78, %s79
    %p91 = scmp.eq.s32.totalorder %s15, 1
    %p92 = por %p90, %p91
    %p94 = scmp.ne.s32.totalorder %s79, %s93
    %p95 = scmp.eq.s32.totalorder %s15, 0
    %p96 = por %p94, %p95
    %s97 = ssub.s32 %s16, %s28
    %s98 = ssub.s32 %s17, %s24
    %s99 = sor.u32 %s97, %s98
    %p100 = scmp.eq.s32.totalorder %s99, 0
    %s102 = sadd.s32 %s101, 1
    %s103 = scalar_select %p100, %s101, %s102
    %p106 = pneg %p100
    %p107 = scmp.eq.s32.totalorder %s9, 1
    %p108 = por %p106, %p107
    %p109 = scmp.ne.s32.totalorder %s101, %s104
    %p110 = scmp.eq.s32.totalorder %s9, 0
    %p111 = por %p109, %p110
    %p112 = scmp.ne.s32.totalorder %s101, %s104
    %p113 = scmp.eq.s32.totalorder %s14, 1
    %p114 = por %p112, %p113
    %p115 = scmp.ne.s32.totalorder %s104, %s105
    %p116 = scmp.eq.s32.totalorder %s14, 0
    %p117 = por %p115, %p116
    %p118 = scmp.ne.s32.totalorder %s104, %s105
    %p119 = scmp.eq.s32.totalorder %s15, 1
    %p120 = por %p118, %p119
    %p122 = scmp.ne.s32.totalorder %s105, %s121
    %p123 = scmp.eq.s32.totalorder %s15, 0
    %p124 = por %p122, %p123
    %p125 = scmp.le.s32.totalorder 1, %s9
    %p126 = scmp.lt.s32.totalorder %s9, 3
    %p127 = pnand %p125, %p126
    %p128 = pneg %p127
    // Predicated region
    $region9: #{unetplusplus_forward.7} parent=5 // pred_check
      _
    $region10: #{unetplusplus_forward.7} parent=5 // pred_check_branch
      %130 = sbr.rel (%p127) target = $region12
    $region11: #{unetplusplus_forward.7} parent=5 // pred_region
      %s131 = ssub.s32 %s9, 1
      // Predicated region
      $region13: #{unetplusplus_forward.7} parent=11 // pred_check
        %p132 = pneg %p68
      $region14: #{unetplusplus_forward.7} parent=11 // pred_check_branch
        %134 = sbr.rel (%p132) target = $region16
      $region15: #{unetplusplus_forward.7} parent=11 // pred_region
        _
      $region16: #{unetplusplus_forward.7} parent=11 // pred_fallthru
        _
      // Predicated region
      $region17: #{unetplusplus_forward.7} parent=11 // pred_check
        %p135 = pneg %p89
      $region18: #{unetplusplus_forward.7} parent=11 // pred_check_branch
        %137 = sbr.rel (%p135) target = $region20
      $region19: #{unetplusplus_forward.7} parent=11 // pred_region
        _
      $region20: #{unetplusplus_forward.7} parent=11 // pred_fallthru
        _
    $region12: #{unetplusplus_forward.7} parent=5 // pred_fallthru
      _
    %p138 = scmp.lt.s32.totalorder %s9, 2
    // Predicated region
    $region21: #{unetplusplus_forward.7} parent=5 // pred_check
      %p139 = pneg %p138
    $region22: #{unetplusplus_forward.7} parent=5 // pred_check_branch
      %141 = sbr.rel (%p139) target = $region24
    $region23: #{unetplusplus_forward.7} parent=5 // pred_region
      // Predicated region
      $region25: #{unetplusplus_forward.7} parent=23 // pred_check
        %p142 = pneg %p41
      $region26: #{unetplusplus_forward.7} parent=23 // pred_check_branch
        %144 = sbr.rel (%p142) target = $region28
      $region27: #{unetplusplus_forward.7} parent=23 // pred_region
        %p145 = scmp.lt.s32.totalorder %s16, 1
        %s146 = scalar_select %p145, %s16, 1
        %s147 = smul.addr %s146, 4
        %s148 = scalar_lea.vmem %s0, %s147
      $region28: #{unetplusplus_forward.7} parent=23 // pred_fallthru
        _
    $region24: #{unetplusplus_forward.7} parent=5 // pred_fallthru
      _
    %p149 = scmp.le.s32.totalorder 1, %s9
    %p150 = scmp.lt.s32.totalorder %s9, 3
    %p151 = pnand %p149, %p150
    %p152 = pneg %p151
    // Predicated region
    $region29: #{unetplusplus_forward.7} parent=5 // pred_check
      _
    $region30: #{unetplusplus_forward.7} parent=5 // pred_check_branch
      %154 = sbr.rel (%p151) target = $region32
    $region31: #{unetplusplus_forward.7} parent=5 // pred_region
      %s155 = ssub.s32 %s9, 1
      %p156 = scmp.lt.s32.totalorder %s18, 1
      %s157 = scalar_select %p156, %s18, 1
      %s158 = smul.addr %s157, 4
      %s159 = scalar_lea.vmem %s0, %s158
      %p160 = pneg %p47
      %p161 = pneg %p44
      %p162 = pneg %p68
      %p163 = pneg %p65
      %p164 = pneg %p89
      %p165 = pneg %p86
      %p166 = pneg %p117
      %p167 = pneg %p114
      %p168 = scmp.lt.s32.totalorder %s18, 1
      %s169 = scalar_select %p168, %s18, 1
      %p170 = scmp.lt.s32.totalorder %s19, 0
      %s171 = scalar_select %p170, %s19, 0
      %s172 = sadd.s32 %s171, %s169
      %s173 = smul.addr %s172, 4
      %s174 = scalar_lea.vmem %s3, %s173
      %p175 = scmp.lt.s32.totalorder %s18, 1
      %s176 = scalar_select %p175, %s18, 1
      %s177 = smul.addr %s176, 4
      %s178 = scalar_lea.vmem %s0, %s177
      %p179 = scmp.lt.s32.totalorder %s18, 1
      %s180 = scalar_select %p179, %s18, 1
      %p181 = scmp.lt.s32.totalorder %s19, 0
      %s182 = scalar_select %p181, %s19, 0
      %s183 = sadd.s32 %s182, %s180
      %s184 = smul.addr %s183, 4
      %s185 = scalar_lea.vmem %s3, %s184
      %v187 = vld [vmem:[%s1] sm:$0xf]
      %v188 = vld [vmem:[%s1 + $0x4] sm:$0xf]
      %v189 = vld [vmem:[%s1 + $0x8] sm:$0xf]
      %v190 = vld [vmem:[%s1 + $0xc] sm:$0xf]
      %v191 = vld [vmem:[%s1 + $0x10] sm:$0xf]
      %v192 = vld [vmem:[%s1 + $0x14] sm:$0xf]
      %v193 = vld [vmem:[%s1 + $0x18] sm:$0xf]
      %v194 = vld [vmem:[%s1 + $0x1c] sm:$0xf]
      %s195 = scalar_lea.vmem %s1, 32
      %v196 = vld [vmem:[%s195] sm:$0xf]
      %v197 = vld [vmem:[%s195 + $0x4] sm:$0xf]
      %v198 = vld [vmem:[%s195 + $0x8] sm:$0xf]
      %v199 = vld [vmem:[%s195 + $0xc] sm:$0xf]
      %v200 = vld [vmem:[%s195 + $0x10] sm:$0xf]
      %v201 = vld [vmem:[%s195 + $0x14] sm:$0xf]
      %v202 = vld [vmem:[%s195 + $0x18] sm:$0xf]
      %v203 = vld [vmem:[%s195 + $0x1c] sm:$0xf]
      %s204 = scalar_lea.vmem %s1, 64
      %v205 = vld [vmem:[%s204] sm:$0xf]
      %v206 = vld [vmem:[%s204 + $0x4] sm:$0xf]
      %v207 = vld [vmem:[%s204 + $0x8] sm:$0xf]
      %v208 = vld [vmem:[%s204 + $0xc] sm:$0xf]
      %v209 = vld [vmem:[%s204 + $0x10] sm:$0xf]
      %v210 = vld [vmem:[%s204 + $0x14] sm:$0xf]
      %v211 = vld [vmem:[%s204 + $0x18] sm:$0xf]
      %v212 = vld [vmem:[%s204 + $0x1c] sm:$0xf]
      %v213 = vld [vmem:[%s178] sm:$0xf]
      %v222 = vunpack.c.l.b16 %v187
      %v223 = vunpack.c.l.b16 %v188
      %v224 = vunpack.c.l.b16 %v189
      %v225 = vunpack.c.l.b16 %v190
      %v226 = vunpack.c.l.b16 %v191
      %v227 = vunpack.c.l.b16 %v192
      %v228 = vunpack.c.l.b16 %v193
      %v229 = vunpack.c.l.b16 %v194
      %v230 = vpack.c.b16 %v223, %v222
      %v231 = vpack.c.b16 %v225, %v224
      %v232 = vpack.c.b16 %v227, %v226
      %v233 = vpack.c.b16 %v229, %v228
      %vm238 = vcmask 523264
      %v240 = vsel %vm238, %v213, 0
      %242 = vmatpush.bf16.msra.mxu0 0
      %243 = vmatpush.bf16.msra.mxu0 0
      %244 = vmatpush.bf16.msra.mxu0 0
      %245 = vmatpush.bf16.msra.mxu0 0
      %246 = vmatpush.bf16.msra.mxu0 %v233
      %247 = vmatpush.bf16.msra.mxu0 %v232
      %248 = vmatpush.bf16.msra.mxu0 %v231
      %249 = vmatpush.bf16.msra.mxu0 %v230
      %250 = vmatmul.bf16.gmra.mxu0 %v240
      %v251 = vpop.f32.mrf.mxu0
      %v252 = vadd.f32 0.0, %v251
      %v253 = vpop.f32.mrf.mxu0
      %254 = vdwg.mxu0
      %v263 = vunpack.c.l.b16 %v205
      %v264 = vunpack.c.l.b16 %v206
      %v265 = vunpack.c.l.b16 %v207
      %v266 = vunpack.c.l.b16 %v208
      %v267 = vunpack.c.l.b16 %v209
      %v268 = vunpack.c.l.b16 %v210
      %v269 = vunpack.c.l.b16 %v211
      %v270 = vunpack.c.l.b16 %v212
      %v271 = vpack.c.b16 %v264, %v263
      %v272 = vpack.c.b16 %v266, %v265
      %v273 = vpack.c.b16 %v268, %v267
      %v274 = vpack.c.b16 %v270, %v269
      %279 = vmatpush.bf16.msra.mxu0 0
      %280 = vmatpush.bf16.msra.mxu0 0
      %281 = vmatpush.bf16.msra.mxu0 0
      %282 = vmatpush.bf16.msra.mxu0 0
      %283 = vmatpush.bf16.msra.mxu0 %v274
      %284 = vmatpush.bf16.msra.mxu0 %v273
      %285 = vmatpush.bf16.msra.mxu0 %v272
      %286 = vmatpush.bf16.msra.mxu0 %v271
      %287 = vmatmul.bf16.gmra.mxu0 %v240
      %v288 = vpop.f32.mrf.mxu0
      %v289 = vadd.f32 0.0, %v288
      %v290 = vpop.f32.mrf.mxu0
      %291 = vdwg.mxu0
      %v292 = vlaneseq
      %v293 = vshrl.u32 %v292, 7
      %v294 = vrot.slane %v252, 7
      %v295 = vrot.slane %v289, 1
      %vm296 = vcmp.eq.s32.totalorder %v293, 0
      %v297 = vsel %vm296, 0.0, %v294
      %vm298 = vcmp.eq.s32.totalorder %v293, 7
      %v299 = vsel %vm298, 0.0, %v295
      %v308 = vunpack.c.l.b16 %v196
      %v309 = vunpack.c.l.b16 %v197
      %v310 = vunpack.c.l.b16 %v198
      %v311 = vunpack.c.l.b16 %v199
      %v312 = vunpack.c.l.b16 %v200
      %v313 = vunpack.c.l.b16 %v201
      %v314 = vunpack.c.l.b16 %v202
      %v315 = vunpack.c.l.b16 %v203
      %v316 = vpack.c.b16 %v309, %v308
      %v317 = vpack.c.b16 %v311, %v310
      %v318 = vpack.c.b16 %v313, %v312
      %v319 = vpack.c.b16 %v315, %v314
      %324 = vmatpush.bf16.msra.mxu0 0
      %325 = vmatpush.bf16.msra.mxu0 0
      %326 = vmatpush.bf16.msra.mxu0 0
      %327 = vmatpush.bf16.msra.mxu0 0
      %328 = vmatpush.bf16.msra.mxu0 %v319
      %329 = vmatpush.bf16.msra.mxu0 %v318
      %330 = vmatpush.bf16.msra.mxu0 %v317
      %331 = vmatpush.bf16.msra.mxu0 %v316
      %332 = vmatmul.bf16.gmra.mxu0 %v240
      %v333 = vpop.f32.mrf.mxu0
      %v334 = vadd.f32 %v297, %v333
      %v335 = vpop.f32.mrf.mxu0
      %336 = vdwg.mxu0
      %v337 = vadd.f32 %v334, %v299
      %v338 = vld [vmem:[%s2] sm:$0x1]
      %v340 = vperm.slane %v338, 0
      %v342 = vadd.f32 %v337, %v340
      %v343 = vmax.f32 %v342, 0.0
      %v344 = vpack.c.bf16 %v343, %v343
      %345 = vst [vmem:[%s185] sm:$0xf] %v344
      %p346 = scmp.lt.s32.totalorder %s18, 1
      %s347 = scalar_select %p346, %s18, 1
      %p348 = scmp.lt.s32.totalorder %s19, 0
      %s349 = scalar_select %p348, %s19, 0
      %s350 = sadd.s32 %s349, %s347
      %s351 = smul.addr %s350, 4
      %s352 = scalar_lea.vmem %s3, %s351
      // Predicated region
      $region33: #{unetplusplus_forward.7} parent=31 // pred_check
        %p353 = pneg %p114
      $region34: #{unetplusplus_forward.7} parent=31 // pred_check_branch
        %355 = sbr.rel (%p353) target = $region36
      $region35: #{unetplusplus_forward.7} parent=31 // pred_region
        _
      $region36: #{unetplusplus_forward.7} parent=31 // pred_fallthru
        _
    $region32: #{unetplusplus_forward.7} parent=5 // pred_fallthru
      _
    %p356 = scmp.le.s32.totalorder 2, %s9
    // Predicated region
    $region37: #{unetplusplus_forward.7} parent=5 // pred_check
      %p357 = pneg %p356
    $region38: #{unetplusplus_forward.7} parent=5 // pred_check_branch
      %359 = sbr.rel (%p357) target = $region40
    $region39: #{unetplusplus_forward.7} parent=5 // pred_region
      %s360 = ssub.s32 %s9, 2
      // Predicated region
      $region41: #{unetplusplus_forward.7} parent=39 // pred_check
        %p361 = pneg %p120
      $region42: #{unetplusplus_forward.7} parent=39 // pred_check_branch
        %363 = sbr.rel (%p361) target = $region44
      $region43: #{unetplusplus_forward.7} parent=39 // pred_region
        %p364 = scmp.lt.s32.totalorder %s20, 1
        %s365 = scalar_select %p364, %s20, 1
        %p366 = scmp.lt.s32.totalorder %s21, 0
        %s367 = scalar_select %p366, %s21, 0
        %s368 = sadd.s32 %s367, %s365
        %s369 = smul.addr %s368, 4
        %s370 = scalar_lea.vmem %s3, %s369
      $region44: #{unetplusplus_forward.7} parent=39 // pred_fallthru
        _
    $region40: #{unetplusplus_forward.7} parent=5 // pred_fallthru
      _
  $region6: #{unetplusplus_forward.7} parent=0 // loop_footer
    %s13 = sadd.s32 1, %s9
  $region7: #{unetplusplus_forward.7} parent=0 // loop_footer_branch
    %8 = sbr.rel target = $region3
  $region8: #{unetplusplus_forward.7} parent=0 // loop_exit
    _

// kernel: unetplusplus_forward.8
$region0: #{unetplusplus_forward.8}
  #allocation0 [shape = 'u32[]', space=smem, size = 0x4, offset = 0x4, fixed_abs, tag = 'smem constant byte address 0x4 - core index']
  #allocation1 [shape = 'u32[72,128]{1,0:T(1,128)}', space=vmem, size = 0x9000, scoped, tag = 'internal scratch']
  %s0 = inlined_call_operand.vmem [shape: bf16[2,4,64], index: 0, kind: input, shape index: {}]
  %s1 = inlined_call_operand.vmem [shape: bf16[3,64,128], index: 1, kind: input, shape index: {}]
  %s2 = inlined_call_operand.vmem [shape: f32[1,128], index: 2, kind: input, shape index: {}]
  %s3 = inlined_call_operand.vmem [shape: bf16[2,4,128], index: 3, kind: output, shape index: {}]
  %s4 = sld [smem:[#allocation0]]
  $region45: #{unetplusplus_forward.8} parent=0
    _
  %s6 = ssub.s32 1, %s4
  %s7 = scalar_select 0, %s6, %s4
  loop: start=0, step=1, limit=4
  $region2: #{unetplusplus_forward.8} parent=0 // loop_pre_header
    _
  $region3: #{unetplusplus_forward.8} parent=0 // loop_header
    %s9 = sphi 0, %s13
    %p10 = scmp.ge.s32.totalorder %s9, 4
    %s16 = sphi 0, %s28
    %s17 = sphi 0, %s24
    %s18 = sphi 0, %s16
    %s19 = sphi 0, %s17
    %s20 = sphi 0, %s18
    %s21 = sphi 0, %s19
    %s31 = sphi 0, %s33
    %s34 = sphi 0, %s31
    %s35 = sphi 0, %s34
    %s51 = sphi 0, %s35
    %s55 = sphi 0, %s55
    %s57 = sphi 0, %s55
    %s58 = sphi 0, %s57
    %s72 = sphi 0, %s58
    %s76 = sphi 0, %s76
    %s78 = sphi 0, %s76
    %s79 = sphi 0, %s78
    %s93 = sphi 0, %s79
    %s101 = sphi 0, %s103
    %s104 = sphi 0, %s101
    %s105 = sphi 0, %s104
    %s121 = sphi 0, %s105
  $region4: #{unetplusplus_forward.8} parent=0 // loop_header_branch
    %12 = sbr.rel (%p10) target = $region8
  $region5: #{unetplusplus_forward.8} parent=0 // loop_body
    %s14 = ssub.s32 %s9, 1
    %s15 = ssub.s32 %s9, 2
    %s22 = sadd.s32 1, %s17
    %p23 = scmp.ge.s32.totalorder %s22, 1
    %s24 = scalar_select %p23, 0, %s22
    %s25 = sadd.s32 1, %s16
    %s26 = scalar_select %p23, %s25, %s16
    %p27 = scmp.ge.s32.totalorder %s26, 2
    %s28 = scalar_select %p27, 0, %s26
    %s29 = ssub.s32 %s16, %s28
    %p30 = scmp.eq.s32.totalorder %s29, 0
    %s32 = sadd.s32 %s31, 1
    %s33 = scalar_select %p30, %s31, %s32
    %p36 = pneg %p30
    %p37 = scmp.eq.s32.totalorder %s9, 1
    %p38 = por %p36, %p37
    %p39 = scmp.ne.s32.totalorder %s31, %s34
    %p40 = scmp.eq.s32.totalorder %s9, 0
    %p41 = por %p39, %p40
    %p42 = scmp.ne.s32.totalorder %s31, %s34
    %p43 = scmp.eq.s32.totalorder %s14, 1
    %p44 = por %p42, %p43
    %p45 = scmp.ne.s32.totalorder %s34, %s35
    %p46 = scmp.eq.s32.totalorder %s14, 0
    %p47 = por %p45, %p46
    %p48 = scmp.ne.s32.totalorder %s34, %s35
    %p49 = scmp.eq.s32.totalorder %s15, 1
    %p50 = por %p48, %p49
    %p52 = scmp.ne.s32.totalorder %s35, %s51
    %p53 = scmp.eq.s32.totalorder %s15, 0
    %p54 = por %p52, %p53
    %s56 = sadd.s32 %s55, 1
    %p59 = scmp.eq.s32.totalorder %s9, 1
    %p60 = scmp.ne.s32.totalorder %s55, %s57
    %p61 = scmp.eq.s32.totalorder %s9, 0
    %p62 = por %p60, %p61
    %p63 = scmp.ne.s32.totalorder %s55, %s57
    %p64 = scmp.eq.s32.totalorder %s14, 1
    %p65 = por %p63, %p64
    %p66 = scmp.ne.s32.totalorder %s57, %s58
    %p67 = scmp.eq.s32.totalorder %s14, 0
    %p68 = por %p66, %p67
    %p69 = scmp.ne.s32.totalorder %s57, %s58
    %p70 = scmp.eq.s32.totalorder %s15, 1
    %p71 = por %p69, %p70
    %p73 = scmp.ne.s32.totalorder %s58, %s72
    %p74 = scmp.eq.s32.totalorder %s15, 0
    %p75 = por %p73, %p74
    %s77 = sadd.s32 %s76, 1
    %p80 = scmp.eq.s32.totalorder %s9, 1
    %p81 = scmp.ne.s32.totalorder %s76, %s78
    %p82 = scmp.eq.s32.totalorder %s9, 0
    %p83 = por %p81, %p82
    %p84 = scmp.ne.s32.totalorder %s76, %s78
    %p85 = scmp.eq.s32.totalorder %s14, 1
    %p86 = por %p84, %p85
    %p87 = scmp.ne.s32.totalorder %s78, %s79
    %p88 = scmp.eq.s32.totalorder %s14, 0
    %p89 = por %p87, %p88
    %p90 = scmp.ne.s32.totalorder %s78, %s79
    %p91 = scmp.eq.s32.totalorder %s15, 1
    %p92 = por %p90, %p91
    %p94 = scmp.ne.s32.totalorder %s79, %s93
    %p95 = scmp.eq.s32.totalorder %s15, 0
    %p96 = por %p94, %p95
    %s97 = ssub.s32 %s16, %s28
    %s98 = ssub.s32 %s17, %s24
    %s99 = sor.u32 %s97, %s98
    %p100 = scmp.eq.s32.totalorder %s99, 0
    %s102 = sadd.s32 %s101, 1
    %s103 = scalar_select %p100, %s101, %s102
    %p106 = pneg %p100
    %p107 = scmp.eq.s32.totalorder %s9, 1
    %p108 = por %p106, %p107
    %p109 = scmp.ne.s32.totalorder %s101, %s104
    %p110 = scmp.eq.s32.totalorder %s9, 0
    %p111 = por %p109, %p110
    %p112 = scmp.ne.s32.totalorder %s101, %s104
    %p113 = scmp.eq.s32.totalorder %s14, 1
    %p114 = por %p112, %p113
    %p115 = scmp.ne.s32.totalorder %s104, %s105
    %p116 = scmp.eq.s32.totalorder %s14, 0
    %p117 = por %p115, %p116
    %p118 = scmp.ne.s32.totalorder %s104, %s105
    %p119 = scmp.eq.s32.totalorder %s15, 1
    %p120 = por %p118, %p119
    %p122 = scmp.ne.s32.totalorder %s105, %s121
    %p123 = scmp.eq.s32.totalorder %s15, 0
    %p124 = por %p122, %p123
    %p125 = scmp.le.s32.totalorder 1, %s9
    %p126 = scmp.lt.s32.totalorder %s9, 3
    %p127 = pnand %p125, %p126
    %p128 = pneg %p127
    // Predicated region
    $region9: #{unetplusplus_forward.8} parent=5 // pred_check
      _
    $region10: #{unetplusplus_forward.8} parent=5 // pred_check_branch
      %130 = sbr.rel (%p127) target = $region12
    $region11: #{unetplusplus_forward.8} parent=5 // pred_region
      %s131 = ssub.s32 %s9, 1
      // Predicated region
      $region13: #{unetplusplus_forward.8} parent=11 // pred_check
        %p132 = pneg %p68
      $region14: #{unetplusplus_forward.8} parent=11 // pred_check_branch
        %134 = sbr.rel (%p132) target = $region16
      $region15: #{unetplusplus_forward.8} parent=11 // pred_region
        _
      $region16: #{unetplusplus_forward.8} parent=11 // pred_fallthru
        _
      // Predicated region
      $region17: #{unetplusplus_forward.8} parent=11 // pred_check
        %p135 = pneg %p89
      $region18: #{unetplusplus_forward.8} parent=11 // pred_check_branch
        %137 = sbr.rel (%p135) target = $region20
      $region19: #{unetplusplus_forward.8} parent=11 // pred_region
        _
      $region20: #{unetplusplus_forward.8} parent=11 // pred_fallthru
        _
    $region12: #{unetplusplus_forward.8} parent=5 // pred_fallthru
      _
    %p138 = scmp.lt.s32.totalorder %s9, 2
    // Predicated region
    $region21: #{unetplusplus_forward.8} parent=5 // pred_check
      %p139 = pneg %p138
    $region22: #{unetplusplus_forward.8} parent=5 // pred_check_branch
      %141 = sbr.rel (%p139) target = $region24
    $region23: #{unetplusplus_forward.8} parent=5 // pred_region
      // Predicated region
      $region25: #{unetplusplus_forward.8} parent=23 // pred_check
        %p142 = pneg %p41
      $region26: #{unetplusplus_forward.8} parent=23 // pred_check_branch
        %144 = sbr.rel (%p142) target = $region28
      $region27: #{unetplusplus_forward.8} parent=23 // pred_region
        %p145 = scmp.lt.s32.totalorder %s16, 1
        %s146 = scalar_select %p145, %s16, 1
        %s147 = smul.addr %s146, 2
        %s148 = scalar_lea.vmem %s0, %s147
      $region28: #{unetplusplus_forward.8} parent=23 // pred_fallthru
        _
    $region24: #{unetplusplus_forward.8} parent=5 // pred_fallthru
      _
    %p149 = scmp.le.s32.totalorder 1, %s9
    %p150 = scmp.lt.s32.totalorder %s9, 3
    %p151 = pnand %p149, %p150
    %p152 = pneg %p151
    // Predicated region
    $region29: #{unetplusplus_forward.8} parent=5 // pred_check
      _
    $region30: #{unetplusplus_forward.8} parent=5 // pred_check_branch
      %154 = sbr.rel (%p151) target = $region32
    $region31: #{unetplusplus_forward.8} parent=5 // pred_region
      %s155 = ssub.s32 %s9, 1
      %p156 = scmp.lt.s32.totalorder %s18, 1
      %s157 = scalar_select %p156, %s18, 1
      %s158 = smul.addr %s157, 2
      %s159 = scalar_lea.vmem %s0, %s158
      %p160 = pneg %p47
      %p161 = pneg %p44
      %p162 = pneg %p68
      %p163 = pneg %p65
      %p164 = pneg %p89
      %p165 = pneg %p86
      %p166 = pneg %p117
      %p167 = pneg %p114
      %p168 = scmp.lt.s32.totalorder %s18, 1
      %s169 = scalar_select %p168, %s18, 1
      %p170 = scmp.lt.s32.totalorder %s19, 0
      %s171 = scalar_select %p170, %s19, 0
      %s172 = sadd.s32 %s171, %s169
      %s173 = smul.addr %s172, 2
      %s174 = scalar_lea.vmem %s3, %s173
      %p175 = scmp.lt.s32.totalorder %s18, 1
      %s176 = scalar_select %p175, %s18, 1
      %s177 = smul.addr %s176, 2
      %s178 = scalar_lea.vmem %s0, %s177
      %p179 = scmp.lt.s32.totalorder %s18, 1
      %s180 = scalar_select %p179, %s18, 1
      %p181 = scmp.lt.s32.totalorder %s19, 0
      %s182 = scalar_select %p181, %s19, 0
      %s183 = sadd.s32 %s182, %s180
      %s184 = smul.addr %s183, 2
      %s185 = scalar_lea.vmem %s3, %s184
      %v187 = vld [vmem:[%s1] sm:$0xf]
      %v188 = vld [vmem:[%s1 + $0x4] sm:$0xf]
      %v189 = vld [vmem:[%s1 + $0x8] sm:$0xf]
      %v190 = vld [vmem:[%s1 + $0xc] sm:$0xf]
      %v191 = vld [vmem:[%s1 + $0x10] sm:$0xf]
      %v192 = vld [vmem:[%s1 + $0x14] sm:$0xf]
      %v193 = vld [vmem:[%s1 + $0x18] sm:$0xf]
      %v194 = vld [vmem:[%s1 + $0x1c] sm:$0xf]
      %s195 = scalar_lea.vmem %s1, 32
      %v196 = vld [vmem:[%s195] sm:$0xf]
      %v197 = vld [vmem:[%s195 + $0x4] sm:$0xf]
      %v198 = vld [vmem:[%s195 + $0x8] sm:$0xf]
      %v199 = vld [vmem:[%s195 + $0xc] sm:$0xf]
      %v200 = vld [vmem:[%s195 + $0x10] sm:$0xf]
      %v201 = vld [vmem:[%s195 + $0x14] sm:$0xf]
      %v202 = vld [vmem:[%s195 + $0x18] sm:$0xf]
      %v203 = vld [vmem:[%s195 + $0x1c] sm:$0xf]
      %s204 = scalar_lea.vmem %s1, 64
      %v205 = vld [vmem:[%s204] sm:$0xf]
      %v206 = vld [vmem:[%s204 + $0x4] sm:$0xf]
      %v207 = vld [vmem:[%s204 + $0x8] sm:$0xf]
      %v208 = vld [vmem:[%s204 + $0xc] sm:$0xf]
      %v209 = vld [vmem:[%s204 + $0x10] sm:$0xf]
      %v210 = vld [vmem:[%s204 + $0x14] sm:$0xf]
      %v211 = vld [vmem:[%s204 + $0x18] sm:$0xf]
      %v212 = vld [vmem:[%s204 + $0x1c] sm:$0xf]
      %v213 = vld [vmem:[%s178] sm:$0x3]
      %v222 = vunpack.c.l.b16 %v187
      %v223 = vunpack.c.l.b16 %v188
      %v224 = vunpack.c.l.b16 %v189
      %v225 = vunpack.c.l.b16 %v190
      %v226 = vunpack.c.l.b16 %v191
      %v227 = vunpack.c.l.b16 %v192
      %v228 = vunpack.c.l.b16 %v193
      %v229 = vunpack.c.l.b16 %v194
      %v230 = vpack.c.b16 %v223, %v222
      %v231 = vpack.c.b16 %v225, %v224
      %v232 = vpack.c.b16 %v227, %v226
      %v233 = vpack.c.b16 %v229, %v228
      %vm238 = vcmask 523264
      %v240 = vsel %vm238, %v213, 0
      %242 = vmatpush.bf16.msra.mxu0 0
      %243 = vmatpush.bf16.msra.mxu0 0
      %244 = vmatpush.bf16.msra.mxu0 0
      %245 = vmatpush.bf16.msra.mxu0 0
      %246 = vmatpush.bf16.msra.mxu0 %v233
      %247 = vmatpush.bf16.msra.mxu0 %v232
      %248 = vmatpush.bf16.msra.mxu0 %v231
      %249 = vmatpush.bf16.msra.mxu0 %v230
      %250 = vmatmul.bf16.gmra.mxu0 %v240
      %v251 = vpop.f32.mrf.mxu0
      %v252 = vadd.f32 0.0, %v251
      %v253 = vpop.f32.mrf.mxu0
      %254 = vdwg.mxu0
      %v263 = vunpack.c.l.b16 %v205
      %v264 = vunpack.c.l.b16 %v206
      %v265 = vunpack.c.l.b16 %v207
      %v266 = vunpack.c.l.b16 %v208
      %v267 = vunpack.c.l.b16 %v209
      %v268 = vunpack.c.l.b16 %v210
      %v269 = vunpack.c.l.b16 %v211
      %v270 = vunpack.c.l.b16 %v212
      %v271 = vpack.c.b16 %v264, %v263
      %v272 = vpack.c.b16 %v266, %v265
      %v273 = vpack.c.b16 %v268, %v267
      %v274 = vpack.c.b16 %v270, %v269
      %279 = vmatpush.bf16.msra.mxu0 0
      %280 = vmatpush.bf16.msra.mxu0 0
      %281 = vmatpush.bf16.msra.mxu0 0
      %282 = vmatpush.bf16.msra.mxu0 0
      %283 = vmatpush.bf16.msra.mxu0 %v274
      %284 = vmatpush.bf16.msra.mxu0 %v273
      %285 = vmatpush.bf16.msra.mxu0 %v272
      %286 = vmatpush.bf16.msra.mxu0 %v271
      %287 = vmatmul.bf16.gmra.mxu0 %v240
      %v288 = vpop.f32.mrf.mxu0
      %v289 = vadd.f32 0.0, %v288
      %v290 = vpop.f32.mrf.mxu0
      %291 = vdwg.mxu0
      %v292 = vlaneseq
      %v293 = vshrl.u32 %v292, 7
      %vm294 = vcmask 1047556
      %v295 = vrot.slane %v252, 4
      %v296 = vsel %vm294, %v295, %v252
      %v297 = vrot.slane %v296, 4
      %v298 = vsel %vm294, %v297, %v252
      %v299 = vrot.slane %v289, 4
      %v300 = vsel %vm294, %v299, %v289
      %v301 = vrot.slane %v300, 4
      %v302 = vsel %vm294, %v301, %v289
      %vm303 = vcmp.eq.s32.totalorder %v293, 0
      %v305 = vrot.slane %v298, 3
      %v307 = vsel %vm303, 0.0, %v305
      %vm308 = vcmp.eq.s32.totalorder %v293, 3
      %v310 = vrot.slane %v302, 1
      %v312 = vsel %vm308, 0.0, %v310
      %v321 = vunpack.c.l.b16 %v196
      %v322 = vunpack.c.l.b16 %v197
      %v323 = vunpack.c.l.b16 %v198
      %v324 = vunpack.c.l.b16 %v199
      %v325 = vunpack.c.l.b16 %v200
      %v326 = vunpack.c.l.b16 %v201
      %v327 = vunpack.c.l.b16 %v202
      %v328 = vunpack.c.l.b16 %v203
      %v329 = vpack.c.b16 %v322, %v321
      %v330 = vpack.c.b16 %v324, %v323
      %v331 = vpack.c.b16 %v326, %v325
      %v332 = vpack.c.b16 %v328, %v327
      %337 = vmatpush.bf16.msra.mxu0 0
      %338 = vmatpush.bf16.msra.mxu0 0
      %339 = vmatpush.bf16.msra.mxu0 0
      %340 = vmatpush.bf16.msra.mxu0 0
      %341 = vmatpush.bf16.msra.mxu0 %v332
      %342 = vmatpush.bf16.msra.mxu0 %v331
      %343 = vmatpush.bf16.msra.mxu0 %v330
      %344 = vmatpush.bf16.msra.mxu0 %v329
      %345 = vmatmul.bf16.gmra.mxu0 %v240
      %v346 = vpop.f32.mrf.mxu0
      %v347 = vadd.f32 %v307, %v346
      %v348 = vpop.f32.mrf.mxu0
      %349 = vdwg.mxu0
      %v350 = vadd.f32 %v347, %v312
      %v351 = vld [vmem:[%s2] sm:$0x1]
      %v353 = vperm.slane %v351, 0
      %v355 = vadd.f32 %v350, %v353
      %v356 = vmax.f32 %v355, 0.0
      %v357 = vpack.c.bf16 %v356, %v356
      %358 = vst [vmem:[%s185] sm:$0x3] %v357
      %p359 = scmp.lt.s32.totalorder %s18, 1
      %s360 = scalar_select %p359, %s18, 1
      %p361 = scmp.lt.s32.totalorder %s19, 0
      %s362 = scalar_select %p361, %s19, 0
      %s363 = sadd.s32 %s362, %s360
      %s364 = smul.addr %s363, 2
      %s365 = scalar_lea.vmem %s3, %s364
      // Predicated region
      $region33: #{unetplusplus_forward.8} parent=31 // pred_check
        %p366 = pneg %p114
      $region34: #{unetplusplus_forward.8} parent=31 // pred_check_branch
        %368 = sbr.rel (%p366) target = $region36
      $region35: #{unetplusplus_forward.8} parent=31 // pred_region
        _
      $region36: #{unetplusplus_forward.8} parent=31 // pred_fallthru
        _
    $region32: #{unetplusplus_forward.8} parent=5 // pred_fallthru
      _
    %p369 = scmp.le.s32.totalorder 2, %s9
    // Predicated region
    $region37: #{unetplusplus_forward.8} parent=5 // pred_check
      %p370 = pneg %p369
    $region38: #{unetplusplus_forward.8} parent=5 // pred_check_branch
      %372 = sbr.rel (%p370) target = $region40
    $region39: #{unetplusplus_forward.8} parent=5 // pred_region
      %s373 = ssub.s32 %s9, 2
      // Predicated region
      $region41: #{unetplusplus_forward.8} parent=39 // pred_check
        %p374 = pneg %p120
      $region42: #{unetplusplus_forward.8} parent=39 // pred_check_branch
        %376 = sbr.rel (%p374) target = $region44
      $region43: #{unetplusplus_forward.8} parent=39 // pred_region
        %p377 = scmp.lt.s32.totalorder %s20, 1
        %s378 = scalar_select %p377, %s20, 1
        %p379 = scmp.lt.s32.totalorder %s21, 0
        %s380 = scalar_select %p379, %s21, 0
        %s381 = sadd.s32 %s380, %s378
        %s382 = smul.addr %s381, 2
        %s383 = scalar_lea.vmem %s3, %s382
      $region44: #{unetplusplus_forward.8} parent=39 // pred_fallthru
        _
    $region40: #{unetplusplus_forward.8} parent=5 // pred_fallthru
      _
  $region6: #{unetplusplus_forward.8} parent=0 // loop_footer
    %s13 = sadd.s32 1, %s9
  $region7: #{unetplusplus_forward.8} parent=0 // loop_footer_branch
    %8 = sbr.rel target = $region3
  $region8: #{unetplusplus_forward.8} parent=0 // loop_exit
    _

// kernel: unetplusplus_forward.10
$region0: #{unetplusplus_forward.10}
  #allocation0 [shape = 'u32[]', space=smem, size = 0x4, offset = 0x4, fixed_abs, tag = 'smem constant byte address 0x4 - core index']
  #allocation1 [shape = 'u32[72,128]{1,0:T(1,128)}', space=vmem, size = 0x9000, scoped, tag = 'internal scratch']
  %s0 = inlined_call_operand.vmem [shape: bf16[2,8,128], index: 0, kind: input, shape index: {}]
  %s1 = inlined_call_operand.vmem [shape: bf16[2,8,256], index: 1, kind: input, shape index: {}]
  %s2 = inlined_call_operand.vmem [shape: bf16[3,128,128], index: 2, kind: input, shape index: {}]
  %s3 = inlined_call_operand.vmem [shape: bf16[3,256,128], index: 3, kind: input, shape index: {}]
  %s4 = inlined_call_operand.vmem [shape: f32[1,128], index: 4, kind: input, shape index: {}]
  %s5 = inlined_call_operand.vmem [shape: bf16[2,8,128], index: 5, kind: output, shape index: {}]
  %s6 = sld [smem:[#allocation0]]
  $region53: #{unetplusplus_forward.10} parent=0
    _
  %s8 = ssub.s32 1, %s6
  %s9 = scalar_select 0, %s8, %s6
  loop: start=0, step=1, limit=4
  $region2: #{unetplusplus_forward.10} parent=0 // loop_pre_header
    _
  $region3: #{unetplusplus_forward.10} parent=0 // loop_header
    %s11 = sphi 0, %s15
    %p12 = scmp.ge.s32.totalorder %s11, 4
    %s18 = sphi 0, %s30
    %s19 = sphi 0, %s26
    %s20 = sphi 0, %s18
    %s21 = sphi 0, %s19
    %s22 = sphi 0, %s20
    %s23 = sphi 0, %s21
    %s33 = sphi 0, %s35
    %s36 = sphi 0, %s33
    %s37 = sphi 0, %s36
    %s53 = sphi 0, %s37
    %s59 = sphi 0, %s61
    %s62 = sphi 0, %s59
    %s63 = sphi 0, %s62
    %s79 = sphi 0, %s63
    %s83 = sphi 0, %s83
    %s85 = sphi 0, %s83
    %s86 = sphi 0, %s85
    %s100 = sphi 0, %s86
    %s104 = sphi 0, %s104
    %s106 = sphi 0, %s104
    %s107 = sphi 0, %s106
    %s121 = sphi 0, %s107
    %s125 = sphi 0, %s125
    %s127 = sphi 0, %s125
    %s128 = sphi 0, %s127
    %s142 = sphi 0, %s128
    %s150 = sphi 0, %s152
    %s153 = sphi 0, %s150
    %s154 = sphi 0, %s153
    %s170 = sphi 0, %s154
  $region4: #{unetplusplus_forward.10} parent=0 // loop_header_branch
    %14 = sbr.rel (%p12) target = $region8
  $region5: #{unetplusplus_forward.10} parent=0 // loop_body
    %s16 = ssub.s32 %s11, 1
    %s17 = ssub.s32 %s11, 2
    %s24 = sadd.s32 1, %s19
    %p25 = scmp.ge.s32.totalorder %s24, 1
    %s26 = scalar_select %p25, 0, %s24
    %s27 = sadd.s32 1, %s18
    %s28 = scalar_select %p25, %s27, %s18
    %p29 = scmp.ge.s32.totalorder %s28, 2
    %s30 = scalar_select %p29, 0, %s28
    %s31 = ssub.s32 %s18, %s30
    %p32 = scmp.eq.s32.totalorder %s31, 0
    %s34 = sadd.s32 %s33, 1
    %s35 = scalar_select %p32, %s33, %s34
    %p38 = pneg %p32
    %p39 = scmp.eq.s32.totalorder %s11, 1
    %p40 = por %p38, %p39
    %p41 = scmp.ne.s32.totalorder %s33, %s36
    %p42 = scmp.eq.s32.totalorder %s11, 0
    %p43 = por %p41, %p42
    %p44 = scmp.ne.s32.totalorder %s33, %s36
    %p45 = scmp.eq.s32.totalorder %s16, 1
    %p46 = por %p44, %p45
    %p47 = scmp.ne.s32.totalorder %s36, %s37
    %p48 = scmp.eq.s32.totalorder %s16, 0
    %p49 = por %p47, %p48
    %p50 = scmp.ne.s32.totalorder %s36, %s37
    %p51 = scmp.eq.s32.totalorder %s17, 1
    %p52 = por %p50, %p51
    %p54 = scmp.ne.s32.totalorder %s37, %s53
    %p55 = scmp.eq.s32.totalorder %s17, 0
    %p56 = por %p54, %p55
    %s57 = ssub.s32 %s18, %s30
    %p58 = scmp.eq.s32.totalorder %s57, 0
    %s60 = sadd.s32 %s59, 1
    %s61 = scalar_select %p58, %s59, %s60
    %p64 = pneg %p58
    %p65 = scmp.eq.s32.totalorder %s11, 1
    %p66 = por %p64, %p65
    %p67 = scmp.ne.s32.totalorder %s59, %s62
    %p68 = scmp.eq.s32.totalorder %s11, 0
    %p69 = por %p67, %p68
    %p70 = scmp.ne.s32.totalorder %s59, %s62
    %p71 = scmp.eq.s32.totalorder %s16, 1
    %p72 = por %p70, %p71
    %p73 = scmp.ne.s32.totalorder %s62, %s63
    %p74 = scmp.eq.s32.totalorder %s16, 0
    %p75 = por %p73, %p74
    %p76 = scmp.ne.s32.totalorder %s62, %s63
    %p77 = scmp.eq.s32.totalorder %s17, 1
    %p78 = por %p76, %p77
    %p80 = scmp.ne.s32.totalorder %s63, %s79
    %p81 = scmp.eq.s32.totalorder %s17, 0
    %p82 = por %p80, %p81
    %s84 = sadd.s32 %s83, 1
    %p87 = scmp.eq.s32.totalorder %s11, 1
    %p88 = scmp.ne.s32.totalorder %s83, %s85
    %p89 = scmp.eq.s32.totalorder %s11, 0
    %p90 = por %p88, %p89
    %p91 = scmp.ne.s32.totalorder %s83, %s85
    %p92 = scmp.eq.s32.totalorder %s16, 1
    %p93 = por %p91, %p92
    %p94 = scmp.ne.s32.totalorder %s85, %s86
    %p95 = scmp.eq.s32.totalorder %s16, 0
    %p96 = por %p94, %p95
    %p97 = scmp.ne.s32.totalorder %s85, %s86
    %p98 = scmp.eq.s32.totalorder %s17, 1
    %p99 = por %p97, %p98
    %p101 = scmp.ne.s32.totalorder %s86, %s100
    %p102 = scmp.eq.s32.totalorder %s17, 0
    %p103 = por %p101, %p102
    %s105 = sadd.s32 %s104, 1
    %p108 = scmp.eq.s32.totalorder %s11, 1
    %p109 = scmp.ne.s32.totalorder %s104, %s106
    %p110 = scmp.eq.s32.totalorder %s11, 0
    %p111 = por %p109, %p110
    %p112 = scmp.ne.s32.totalorder %s104, %s106
    %p113 = scmp.eq.s32.totalorder %s16, 1
    %p114 = por %p112, %p113
    %p115 = scmp.ne.s32.totalorder %s106, %s107
    %p116 = scmp.eq.s32.totalorder %s16, 0
    %p117 = por %p115, %p116
    %p118 = scmp.ne.s32.totalorder %s106, %s107
    %p119 = scmp.eq.s32.totalorder %s17, 1
    %p120 = por %p118, %p119
    %p122 = scmp.ne.s32.totalorder %s107, %s121
    %p123 = scmp.eq.s32.totalorder %s17, 0
    %p124 = por %p122, %p123
    %s126 = sadd.s32 %s125, 1
    %p129 = scmp.eq.s32.totalorder %s11, 1
    %p130 = scmp.ne.s32.totalorder %s125, %s127
    %p131 = scmp.eq.s32.totalorder %s11, 0
    %p132 = por %p130, %p131
    %p133 = scmp.ne.s32.totalorder %s125, %s127
    %p134 = scmp.eq.s32.totalorder %s16, 1
    %p135 = por %p133, %p134
    %p136 = scmp.ne.s32.totalorder %s127, %s128
    %p137 = scmp.eq.s32.totalorder %s16, 0
    %p138 = por %p136, %p137
    %p139 = scmp.ne.s32.totalorder %s127, %s128
    %p140 = scmp.eq.s32.totalorder %s17, 1
    %p141 = por %p139, %p140
    %p143 = scmp.ne.s32.totalorder %s128, %s142
    %p144 = scmp.eq.s32.totalorder %s17, 0
    %p145 = por %p143, %p144
    %s146 = ssub.s32 %s18, %s30
    %s147 = ssub.s32 %s19, %s26
    %s148 = sor.u32 %s146, %s147
    %p149 = scmp.eq.s32.totalorder %s148, 0
    %s151 = sadd.s32 %s150, 1
    %s152 = scalar_select %p149, %s150, %s151
    %p155 = pneg %p149
    %p156 = scmp.eq.s32.totalorder %s11, 1
    %p157 = por %p155, %p156
    %p158 = scmp.ne.s32.totalorder %s150, %s153
    %p159 = scmp.eq.s32.totalorder %s11, 0
    %p160 = por %p158, %p159
    %p161 = scmp.ne.s32.totalorder %s150, %s153
    %p162 = scmp.eq.s32.totalorder %s16, 1
    %p163 = por %p161, %p162
    %p164 = scmp.ne.s32.totalorder %s153, %s154
    %p165 = scmp.eq.s32.totalorder %s16, 0
    %p166 = por %p164, %p165
    %p167 = scmp.ne.s32.totalorder %s153, %s154
    %p168 = scmp.eq.s32.totalorder %s17, 1
    %p169 = por %p167, %p168
    %p171 = scmp.ne.s32.totalorder %s154, %s170
    %p172 = scmp.eq.s32.totalorder %s17, 0
    %p173 = por %p171, %p172
    %p174 = scmp.le.s32.totalorder 1, %s11
    %p175 = scmp.lt.s32.totalorder %s11, 3
    %p176 = pnand %p174, %p175
    %p177 = pneg %p176
    // Predicated region
    $region9: #{unetplusplus_forward.10} parent=5 // pred_check
      _
    $region10: #{unetplusplus_forward.10} parent=5 // pred_check_branch
      %179 = sbr.rel (%p176) target = $region12
    $region11: #{unetplusplus_forward.10} parent=5 // pred_region
      %s180 = ssub.s32 %s11, 1
      // Predicated region
      $region13: #{unetplusplus_forward.10} parent=11 // pred_check
        %p181 = pneg %p96
      $region14: #{unetplusplus_forward.10} parent=11 // pred_check_branch
        %183 = sbr.rel (%p181) target = $region16
      $region15: #{unetplusplus_forward.10} parent=11 // pred_region
        _
      $region16: #{unetplusplus_forward.10} parent=11 // pred_fallthru
        _
      // Predicated region
      $region17: #{unetplusplus_forward.10} parent=11 // pred_check
        %p184 = pneg %p117
      $region18: #{unetplusplus_forward.10} parent=11 // pred_check_branch
        %186 = sbr.rel (%p184) target = $region20
      $region19: #{unetplusplus_forward.10} parent=11 // pred_region
        _
      $region20: #{unetplusplus_forward.10} parent=11 // pred_fallthru
        _
      // Predicated region
      $region21: #{unetplusplus_forward.10} parent=11 // pred_check
        %p187 = pneg %p138
      $region22: #{unetplusplus_forward.10} parent=11 // pred_check_branch
        %189 = sbr.rel (%p187) target = $region24
      $region23: #{unetplusplus_forward.10} parent=11 // pred_region
        _
      $region24: #{unetplusplus_forward.10} parent=11 // pred_fallthru
        _
    $region12: #{unetplusplus_forward.10} parent=5 // pred_fallthru
      _
    %p190 = scmp.lt.s32.totalorder %s11, 2
    // Predicated region
    $region25: #{unetplusplus_forward.10} parent=5 // pred_check
      %p191 = pneg %p190
    $region26: #{unetplusplus_forward.10} parent=5 // pred_check_branch
      %193 = sbr.rel (%p191) target = $region28
    $region27: #{unetplusplus_forward.10} parent=5 // pred_region
      // Predicated region
      $region29: #{unetplusplus_forward.10} parent=27 // pred_check
        %p194 = pneg %p43
      $region30: #{unetplusplus_forward.10} parent=27 // pred_check_branch
        %196 = sbr.rel (%p194) target = $region32
      $region31: #{unetplusplus_forward.10} parent=27 // pred_region
        %p197 = scmp.lt.s32.totalorder %s18, 1
        %s198 = scalar_select %p197, %s18, 1
        %s199 = smul.addr %s198, 4
        %s200 = scalar_lea.vmem %s0, %s199
      $region32: #{unetplusplus_forward.10} parent=27 // pred_fallthru
        _
      // Predicated region
      $region33: #{unetplusplus_forward.10} parent=27 // pred_check
        %p201 = pneg %p69
      $region34: #{unetplusplus_forward.10} parent=27 // pred_check_branch
        %203 = sbr.rel (%p201) target = $region36
      $region35: #{unetplusplus_forward.10} parent=27 // pred_region
        %p204 = scmp.lt.s32.totalorder %s18, 1
        %s205 = scalar_select %p204, %s18, 1
        %s206 = smul.addr %s205, 2
        %s207 = smul.addr %s206, 4
        %s208 = scalar_lea.vmem %s1, %s207
      $region36: #{unetplusplus_forward.10} parent=27 // pred_fallthru
        _
    $region28: #{unetplusplus_forward.10} parent=5 // pred_fallthru
      _
    %p209 = scmp.le.s32.totalorder 1, %s11
    %p210 = scmp.lt.s32.totalorder %s11, 3
    %p211 = pnand %p209, %p210
    %p212 = pneg %p211
    // Predicated region
    $region37: #{unetplusplus_forward.10} parent=5 // pred_check
      _
    $region38: #{unetplusplus_forward.10} parent=5 // pred_check_branch
      %214 = sbr.rel (%p211) target = $region40
    $region39: #{unetplusplus_forward.10} parent=5 // pred_region
      %s215 = ssub.s32 %s11, 1
      %p216 = scmp.lt.s32.totalorder %s20, 1
      %s217 = scalar_select %p216, %s20, 1
      %s218 = smul.addr %s217, 4
      %s219 = scalar_lea.vmem %s0, %s218
      %p220 = pneg %p49
      %p221 = pneg %p46
      %p222 = scmp.lt.s32.totalorder %s20, 1
      %s223 = scalar_select %p222, %s20, 1
      %s224 = smul.addr %s223, 2
      %s225 = smul.addr %s224, 4
      %s226 = scalar_lea.vmem %s1, %s225
      %p227 = pneg %p75
      %p228 = pneg %p72
      %p229 = pneg %p96
      %p230 = pneg %p93
      %p231 = pneg %p117
      %p232 = pneg %p114
      %p233 = pneg %p138
      %p234 = pneg %p135
      %p235 = pneg %p166
      %p236 = pneg %p163
      %p237 = scmp.lt.s32.totalorder %s20, 1
      %s238 = scalar_select %p237, %s20, 1
      %p239 = scmp.lt.s32.totalorder %s21, 0
      %s240 = scalar_select %p239, %s21, 0
      %s241 = sadd.s32 %s240, %s238
      %s242 = smul.addr %s241, 4
      %s243 = scalar_lea.vmem %s5, %s242
      %p244 = scmp.lt.s32.totalorder %s20, 1
      %s245 = scalar_select %p244, %s20, 1
      %s246 = smul.addr %s245, 4
      %s247 = scalar_lea.vmem %s0, %s246
      %p248 = scmp.lt.s32.totalorder %s20, 1
      %s249 = scalar_select %p248, %s20, 1
      %s250 = smul.addr %s249, 2
      %s251 = smul.addr %s250, 4
      %s252 = scalar_lea.vmem %s1, %s251
      %p253 = scmp.lt.s32.totalorder %s20, 1
      %s254 = scalar_select %p253, %s20, 1
      %p255 = scmp.lt.s32.totalorder %s21, 0
      %s256 = scalar_select %p255, %s21, 0
      %s257 = sadd.s32 %s256, %s254
      %s258 = smul.addr %s257, 4
      %s259 = scalar_lea.vmem %s5, %s258
      %v260 = vld [vmem:[%s2] sm:$0xf]
      %v261 = vld [vmem:[%s2 + $0x4] sm:$0xf]
      %v262 = vld [vmem:[%s2 + $0x8] sm:$0xf]
      %v263 = vld [vmem:[%s2 + $0xc] sm:$0xf]
      %v264 = vld [vmem:[%s2 + $0x10] sm:$0xf]
      %v265 = vld [vmem:[%s2 + $0x14] sm:$0xf]
      %v266 = vld [vmem:[%s2 + $0x18] sm:$0xf]
      %v267 = vld [vmem:[%s2 + $0x1c] sm:$0xf]
      %v268 = vld [vmem:[%s2 + $0x20] sm:$0xf]
      %v269 = vld [vmem:[%s2 + $0x24] sm:$0xf]
      %v270 = vld [vmem:[%s2 + $0x28] sm:$0xf]
      %v271 = vld [vmem:[%s2 + $0x2c] sm:$0xf]
      %v272 = vld [vmem:[%s2 + $0x30] sm:$0xf]
      %v273 = vld [vmem:[%s2 + $0x34] sm:$0xf]
      %v274 = vld [vmem:[%s2 + $0x38] sm:$0xf]
      %v275 = vld [vmem:[%s2 + $0x3c] sm:$0xf]
      %s276 = scalar_lea.vmem %s2, 64
      %v277 = vld [vmem:[%s276] sm:$0xf]
      %v278 = vld [vmem:[%s276 + $0x4] sm:$0xf]
      %v279 = vld [vmem:[%s276 + $0x8] sm:$0xf]
      %v280 = vld [vmem:[%s276 + $0xc] sm:$0xf]
      %v281 = vld [vmem:[%s276 + $0x10] sm:$0xf]
      %v282 = vld [vmem:[%s276 + $0x14] sm:$0xf]
      %v283 = vld [vmem:[%s276 + $0x18] sm:$0xf]
      %v284 = vld [vmem:[%s276 + $0x1c] sm:$0xf]
      %v285 = vld [vmem:[%s276 + $0x20] sm:$0xf]
      %v286 = vld [vmem:[%s276 + $0x24] sm:$0xf]
      %v287 = vld [vmem:[%s276 + $0x28] sm:$0xf]
      %v288 = vld [vmem:[%s276 + $0x2c] sm:$0xf]
      %v289 = vld [vmem:[%s276 + $0x30] sm:$0xf]
      %v290 = vld [vmem:[%s276 + $0x34] sm:$0xf]
      %v291 = vld [vmem:[%s276 + $0x38] sm:$0xf]
      %v292 = vld [vmem:[%s276 + $0x3c] sm:$0xf]
      %s293 = scalar_lea.vmem %s2, 128
      %v294 = vld [vmem:[%s293] sm:$0xf]
      %v295 = vld [vmem:[%s293 + $0x4] sm:$0xf]
      %v296 = vld [vmem:[%s293 + $0x8] sm:$0xf]
      %v297 = vld [vmem:[%s293 + $0xc] sm:$0xf]
      %v298 = vld [vmem:[%s293 + $0x10] sm:$0xf]
      %v299 = vld [vmem:[%s293 + $0x14] sm:$0xf]
      %v300 = vld [vmem:[%s293 + $0x18] sm:$0xf]
      %v301 = vld [vmem:[%s293 + $0x1c] sm:$0xf]
      %v302 = vld [vmem:[%s293 + $0x20] sm:$0xf]
      %v303 = vld [vmem:[%s293 + $0x24] sm:$0xf]
      %v304 = vld [vmem:[%s293 + $0x28] sm:$0xf]
      %v305 = vld [vmem:[%s293 + $0x2c] sm:$0xf]
      %v306 = vld [vmem:[%s293 + $0x30] sm:$0xf]
      %v307 = vld [vmem:[%s293 + $0x34] sm:$0xf]
      %v308 = vld [vmem:[%s293 + $0x38] sm:$0xf]
      %v309 = vld [vmem:[%s293 + $0x3c] sm:$0xf]
      %v310 = vld [vmem:[%s247] sm:$0xf]
      %v311 = vld [vmem:[%s3] sm:$0xf]
      %v312 = vld [vmem:[%s3 + $0x4] sm:$0xf]
      %v313 = vld [vmem:[%s3 + $0x8] sm:$0xf]
      %v314 = vld [vmem:[%s3 + $0xc] sm:$0xf]
      %v315 = vld [vmem:[%s3 + $0x10] sm:$0xf]
      %v316 = vld [vmem:[%s3 + $0x14] sm:$0xf]
      %v317 = vld [vmem:[%s3 + $0x18] sm:$0xf]
      %v318 = vld [vmem:[%s3 + $0x1c] sm:$0xf]
      %v319 = vld [vmem:[%s3 + $0x20] sm:$0xf]
      %v320 = vld [vmem:[%s3 + $0x24] sm:$0xf]
      %v321 = vld [vmem:[%s3 + $0x28] sm:$0xf]
      %v322 = vld [vmem:[%s3 + $0x2c] sm:$0xf]
      %v323 = vld [vmem:[%s3 + $0x30] sm:$0xf]
      %v324 = vld [vmem:[%s3 + $0x34] sm:$0xf]
      %v325 = vld [vmem:[%s3 + $0x38] sm:$0xf]
      %v326 = vld [vmem:[%s3 + $0x3c] sm:$0xf]
      %v327 = vld [vmem:[%s3 + $0x40] sm:$0xf]
      %v328 = vld [vmem:[%s3 + $0x44] sm:$0xf]
      %v329 = vld [vmem:[%s3 + $0x48] sm:$0xf]
      %v330 = vld [vmem:[%s3 + $0x4c] sm:$0xf]
      %v331 = vld [vmem:[%s3 + $0x50] sm:$0xf]
      %v332 = vld [vmem:[%s3 + $0x54] sm:$0xf]
      %v333 = vld [vmem:[%s3 + $0x58] sm:$0xf]
      %v334 = vld [vmem:[%s3 + $0x5c] sm:$0xf]
      %v335 = vld [vmem:[%s3 + $0x60] sm:$0xf]
      %v336 = vld [vmem:[%s3 + $0x64] sm:$0xf]
      %v337 = vld [vmem:[%s3 + $0x68] sm:$0xf]
      %v338 = vld [vmem:[%s3 + $0x6c] sm:$0xf]
      %v339 = vld [vmem:[%s3 + $0x70] sm:$0xf]
      %v340 = vld [vmem:[%s3 + $0x74] sm:$0xf]
      %v341 = vld [vmem:[%s3 + $0x78] sm:$0xf]
      %v342 = vld [vmem:[%s3 + $0x7c] sm:$0xf]
      %s343 = scalar_lea.vmem %s3, 128
      %v344 = vld [vmem:[%s343] sm:$0xf]
      %v345 = vld [vmem:[%s343 + $0x4] sm:$0xf]
      %v346 = vld [vmem:[%s343 + $0x8] sm:$0xf]
      %v347 = vld [vmem:[%s343 + $0xc] sm:$0xf]
      %v348 = vld [vmem:[%s343 + $0x10] sm:$0xf]
      %v349 = vld [vmem:[%s343 + $0x14] sm:$0xf]
      %v350 = vld [vmem:[%s343 + $0x18] sm:$0xf]
      %v351 = vld [vmem:[%s343 + $0x1c] sm:$0xf]
      %v352 = vld [vmem:[%s343 + $0x20] sm:$0xf]
      %v353 = vld [vmem:[%s343 + $0x24] sm:$0xf]
      %v354 = vld [vmem:[%s343 + $0x28] sm:$0xf]
      %v355 = vld [vmem:[%s343 + $0x2c] sm:$0xf]
      %v356 = vld [vmem:[%s343 + $0x30] sm:$0xf]
      %v357 = vld [vmem:[%s343 + $0x34] sm:$0xf]
      %v358 = vld [vmem:[%s343 + $0x38] sm:$0xf]
      %v359 = vld [vmem:[%s343 + $0x3c] sm:$0xf]
      %v360 = vld [vmem:[%s343 + $0x40] sm:$0xf]
      %v361 = vld [vmem:[%s343 + $0x44] sm:$0xf]
      %v362 = vld [vmem:[%s343 + $0x48] sm:$0xf]
      %v363 = vld [vmem:[%s343 + $0x4c] sm:$0xf]
      %v364 = vld [vmem:[%s343 + $0x50] sm:$0xf]
      %v365 = vld [vmem:[%s343 + $0x54] sm:$0xf]
      %v366 = vld [vmem:[%s343 + $0x58] sm:$0xf]
      %v367 = vld [vmem:[%s343 + $0x5c] sm:$0xf]
      %v368 = vld [vmem:[%s343 + $0x60] sm:$0xf]
      %v369 = vld [vmem:[%s343 + $0x64] sm:$0xf]
      %v370 = vld [vmem:[%s343 + $0x68] sm:$0xf]
      %v371 = vld [vmem:[%s343 + $0x6c] sm:$0xf]
      %v372 = vld [vmem:[%s343 + $0x70] sm:$0xf]
      %v373 = vld [vmem:[%s343 + $0x74] sm:$0xf]
      %v374 = vld [vmem:[%s343 + $0x78] sm:$0xf]
      %v375 = vld [vmem:[%s343 + $0x7c] sm:$0xf]
      %s376 = scalar_lea.vmem %s3, 256
      %v377 = vld [vmem:[%s376] sm:$0xf]
      %v378 = vld [vmem:[%s376 + $0x4] sm:$0xf]
      %v379 = vld [vmem:[%s376 + $0x8] sm:$0xf]
      %v380 = vld [vmem:[%s376 + $0xc] sm:$0xf]
      %v381 = vld [vmem:[%s376 + $0x10] sm:$0xf]
      %v382 = vld [vmem:[%s376 + $0x14] sm:$0xf]
      %v383 = vld [vmem:[%s376 + $0x18] sm:$0xf]
      %v384 = vld [vmem:[%s376 + $0x1c] sm:$0xf]
      %v385 = vld [vmem:[%s376 + $0x20] sm:$0xf]
      %v386 = vld [vmem:[%s376 + $0x24] sm:$0xf]
      %v387 = vld [vmem:[%s376 + $0x28] sm:$0xf]
      %v388 = vld [vmem:[%s376 + $0x2c] sm:$0xf]
      %v389 = vld [vmem:[%s376 + $0x30] sm:$0xf]
      %v390 = vld [vmem:[%s376 + $0x34] sm:$0xf]
      %v391 = vld [vmem:[%s376 + $0x38] sm:$0xf]
      %v392 = vld [vmem:[%s376 + $0x3c] sm:$0xf]
      %v393 = vld [vmem:[%s376 + $0x40] sm:$0xf]
      %v394 = vld [vmem:[%s376 + $0x44] sm:$0xf]
      %v395 = vld [vmem:[%s376 + $0x48] sm:$0xf]
      %v396 = vld [vmem:[%s376 + $0x4c] sm:$0xf]
      %v397 = vld [vmem:[%s376 + $0x50] sm:$0xf]
      %v398 = vld [vmem:[%s376 + $0x54] sm:$0xf]
      %v399 = vld [vmem:[%s376 + $0x58] sm:$0xf]
      %v400 = vld [vmem:[%s376 + $0x5c] sm:$0xf]
      %v401 = vld [vmem:[%s376 + $0x60] sm:$0xf]
      %v402 = vld [vmem:[%s376 + $0x64] sm:$0xf]
      %v403 = vld [vmem:[%s376 + $0x68] sm:$0xf]
      %v404 = vld [vmem:[%s376 + $0x6c] sm:$0xf]
      %v405 = vld [vmem:[%s376 + $0x70] sm:$0xf]
      %v406 = vld [vmem:[%s376 + $0x74] sm:$0xf]
      %v407 = vld [vmem:[%s376 + $0x78] sm:$0xf]
      %v408 = vld [vmem:[%s376 + $0x7c] sm:$0xf]
      %v409 = vld [vmem:[%s252] sm:$0xff]
      %v411 = vunpack.c.l.b16 %v409
      %v412 = vunpack.c.h.b16 %v409
      %v413 = vpack.c.b16 %v411, %v411
      %v414 = vpack.c.b16 %v412, %v412
      %v449 = vunpack.c.l.b16 %v311
      %v450 = vunpack.c.l.b16 %v312
      %v451 = vunpack.c.l.b16 %v313
      %v452 = vunpack.c.l.b16 %v314
      %v453 = vunpack.c.l.b16 %v315
      %v454 = vunpack.c.l.b16 %v316
      %v455 = vunpack.c.l.b16 %v317
      %v456 = vunpack.c.l.b16 %v318
      %v457 = vunpack.c.l.b16 %v319
      %v458 = vunpack.c.l.b16 %v320
      %v459 = vunpack.c.l.b16 %v321
      %v460 = vunpack.c.l.b16 %v322
      %v461 = vunpack.c.l.b16 %v323
      %v462 = vunpack.c.l.b16 %v324
      %v463 = vunpack.c.l.b16 %v325
      %v464 = vunpack.c.l.b16 %v326
      %v465 = vunpack.c.l.b16 %v327
      %v466 = vunpack.c.l.b16 %v328
      %v467 = vunpack.c.l.b16 %v329
      %v468 = vunpack.c.l.b16 %v330
      %v469 = vunpack.c.l.b16 %v331
      %v470 = vunpack.c.l.b16 %v332
      %v471 = vunpack.c.l.b16 %v333
      %v472 = vunpack.c.l.b16 %v334
      %v473 = vunpack.c.l.b16 %v335
      %v474 = vunpack.c.l.b16 %v336
      %v475 = vunpack.c.l.b16 %v337
      %v476 = vunpack.c.l.b16 %v338
      %v477 = vunpack.c.l.b16 %v339
      %v478 = vunpack.c.l.b16 %v340
      %v479 = vunpack.c.l.b16 %v341
      %v480 = vunpack.c.l.b16 %v342
      %v481 = vpack.c.b16 %v450, %v449
      %v482 = vpack.c.b16 %v452, %v451
      %v483 = vpack.c.b16 %v454, %v453
      %v484 = vpack.c.b16 %v456, %v455
      %v485 = vpack.c.b16 %v458, %v457
      %v486 = vpack.c.b16 %v460, %v459
      %v487 = vpack.c.b16 %v462, %v461
      %v488 = vpack.c.b16 %v464, %v463
      %v489 = vpack.c.b16 %v466, %v465
      %v490 = vpack.c.b16 %v468, %v467
      %v491 = vpack.c.b16 %v470, %v469
      %v492 = vpack.c.b16 %v472, %v471
      %v493 = vpack.c.b16 %v474, %v473
      %v494 = vpack.c.b16 %v476, %v475
      %v495 = vpack.c.b16 %v478, %v477
      %v496 = vpack.c.b16 %v480, %v479
      %513 = vmatpush.bf16.msra.mxu0 %v488
      %514 = vmatpush.bf16.msra.mxu0 %v487
      %515 = vmatpush.bf16.msra.mxu0 %v486
      %516 = vmatpush.bf16.msra.mxu0 %v485
      %517 = vmatpush.bf16.msra.mxu0 %v484
      %518 = vmatpush.bf16.msra.mxu0 %v483
      %519 = vmatpush.bf16.msra.mxu0 %v482
      %520 = vmatpush.bf16.msra.mxu0 %v481
      %521 = vmatmul.bf16.gmra.mxu0 %v413
      %v522 = vpop.f32.mrf.mxu0
      %v523 = vadd.f32 0.0, %v522
      %v524 = vpop.f32.mrf.mxu0
      %525 = vdwg.mxu0
      %526 = vmatpush.bf16.msra.mxu0 %v496
      %527 = vmatpush.bf16.msra.mxu0 %v495
      %528 = vmatpush.bf16.msra.mxu0 %v494
      %529 = vmatpush.bf16.msra.mxu0 %v493
      %530 = vmatpush.bf16.msra.mxu0 %v492
      %531 = vmatpush.bf16.msra.mxu0 %v491
      %532 = vmatpush.bf16.msra.mxu0 %v490
      %533 = vmatpush.bf16.msra.mxu0 %v489
      %534 = vmatmul.bf16.gmra.mxu0 %v414
      %v535 = vpop.f32.mrf.mxu0
      %v536 = vadd.f32 %v523, %v535
      %v537 = vpop.f32.mrf.mxu0
      %538 = vdwg.mxu0
      %v571 = vunpack.c.l.b16 %v344
      %v572 = vunpack.c.l.b16 %v345
      %v573 = vunpack.c.l.b16 %v346
      %v574 = vunpack.c.l.b16 %v347
      %v575 = vunpack.c.l.b16 %v348
      %v576 = vunpack.c.l.b16 %v349
      %v577 = vunpack.c.l.b16 %v350
      %v578 = vunpack.c.l.b16 %v351
      %v579 = vunpack.c.l.b16 %v352
      %v580 = vunpack.c.l.b16 %v353
      %v581 = vunpack.c.l.b16 %v354
      %v582 = vunpack.c.l.b16 %v355
      %v583 = vunpack.c.l.b16 %v356
      %v584 = vunpack.c.l.b16 %v357
      %v585 = vunpack.c.l.b16 %v358
      %v586 = vunpack.c.l.b16 %v359
      %v587 = vunpack.c.l.b16 %v360
      %v588 = vunpack.c.l.b16 %v361
      %v589 = vunpack.c.l.b16 %v362
      %v590 = vunpack.c.l.b16 %v363
      %v591 = vunpack.c.l.b16 %v364
      %v592 = vunpack.c.l.b16 %v365
      %v593 = vunpack.c.l.b16 %v366
      %v594 = vunpack.c.l.b16 %v367
      %v595 = vunpack.c.l.b16 %v368
      %v596 = vunpack.c.l.b16 %v369
      %v597 = vunpack.c.l.b16 %v370
      %v598 = vunpack.c.l.b16 %v371
      %v599 = vunpack.c.l.b16 %v372
      %v600 = vunpack.c.l.b16 %v373
      %v601 = vunpack.c.l.b16 %v374
      %v602 = vunpack.c.l.b16 %v375
      %v603 = vpack.c.b16 %v572, %v571
      %v604 = vpack.c.b16 %v574, %v573
      %v605 = vpack.c.b16 %v576, %v575
      %v606 = vpack.c.b16 %v578, %v577
      %v607 = vpack.c.b16 %v580, %v579
      %v608 = vpack.c.b16 %v582, %v581
      %v609 = vpack.c.b16 %v584, %v583
      %v610 = vpack.c.b16 %v586, %v585
      %v611 = vpack.c.b16 %v588, %v587
      %v612 = vpack.c.b16 %v590, %v589
      %v613 = vpack.c.b16 %v592, %v591
      %v614 = vpack.c.b16 %v594, %v593
      %v615 = vpack.c.b16 %v596, %v595
      %v616 = vpack.c.b16 %v598, %v597
      %v617 = vpack.c.b16 %v600, %v599
      %v618 = vpack.c.b16 %v602, %v601
      %635 = vmatpush.bf16.msra.mxu0 %v610
      %636 = vmatpush.bf16.msra.mxu0 %v609
      %637 = vmatpush.bf16.msra.mxu0 %v608
      %638 = vmatpush.bf16.msra.mxu0 %v607
      %639 = vmatpush.bf16.msra.mxu0 %v606
      %640 = vmatpush.bf16.msra.mxu0 %v605
      %641 = vmatpush.bf16.msra.mxu0 %v604
      %642 = vmatpush.bf16.msra.mxu0 %v603
      %643 = vmatmul.bf16.gmra.mxu0 %v413
      %v644 = vpop.f32.mrf.mxu0
      %v645 = vadd.f32 0.0, %v644
      %v646 = vpop.f32.mrf.mxu0
      %647 = vdwg.mxu0
      %648 = vmatpush.bf16.msra.mxu0 %v618
      %649 = vmatpush.bf16.msra.mxu0 %v617
      %650 = vmatpush.bf16.msra.mxu0 %v616
      %651 = vmatpush.bf16.msra.mxu0 %v615
      %652 = vmatpush.bf16.msra.mxu0 %v614
      %653 = vmatpush.bf16.msra.mxu0 %v613
      %654 = vmatpush.bf16.msra.mxu0 %v612
      %655 = vmatpush.bf16.msra.mxu0 %v611
      %656 = vmatmul.bf16.gmra.mxu0 %v414
      %v657 = vpop.f32.mrf.mxu0
      %v658 = vadd.f32 %v645, %v657
      %v659 = vpop.f32.mrf.mxu0
      %660 = vdwg.mxu0
      %v693 = vunpack.c.l.b16 %v377
      %v694 = vunpack.c.l.b16 %v378
      %v695 = vunpack.c.l.b16 %v379
      %v696 = vunpack.c.l.b16 %v380
      %v697 = vunpack.c.l.b16 %v381
      %v698 = vunpack.c.l.b16 %v382
      %v699 = vunpack.c.l.b16 %v383
      %v700 = vunpack.c.l.b16 %v384
      %v701 = vunpack.c.l.b16 %v385
      %v702 = vunpack.c.l.b16 %v386
      %v703 = vunpack.c.l.b16 %v387
      %v704 = vunpack.c.l.b16 %v388
      %v705 = vunpack.c.l.b16 %v389
      %v706 = vunpack.c.l.b16 %v390
      %v707 = vunpack.c.l.b16 %v391
      %v708 = vunpack.c.l.b16 %v392
      %v709 = vunpack.c.l.b16 %v393
      %v710 = vunpack.c.l.b16 %v394
      %v711 = vunpack.c.l.b16 %v395
      %v712 = vunpack.c.l.b16 %v396
      %v713 = vunpack.c.l.b16 %v397
      %v714 = vunpack.c.l.b16 %v398
      %v715 = vunpack.c.l.b16 %v399
      %v716 = vunpack.c.l.b16 %v400
      %v717 = vunpack.c.l.b16 %v401
      %v718 = vunpack.c.l.b16 %v402
      %v719 = vunpack.c.l.b16 %v403
      %v720 = vunpack.c.l.b16 %v404
      %v721 = vunpack.c.l.b16 %v405
      %v722 = vunpack.c.l.b16 %v406
      %v723 = vunpack.c.l.b16 %v407
      %v724 = vunpack.c.l.b16 %v408
      %v725 = vpack.c.b16 %v694, %v693
      %v726 = vpack.c.b16 %v696, %v695
      %v727 = vpack.c.b16 %v698, %v697
      %v728 = vpack.c.b16 %v700, %v699
      %v729 = vpack.c.b16 %v702, %v701
      %v730 = vpack.c.b16 %v704, %v703
      %v731 = vpack.c.b16 %v706, %v705
      %v732 = vpack.c.b16 %v708, %v707
      %v733 = vpack.c.b16 %v710, %v709
      %v734 = vpack.c.b16 %v712, %v711
      %v735 = vpack.c.b16 %v714, %v713
      %v736 = vpack.c.b16 %v716, %v715
      %v737 = vpack.c.b16 %v718, %v717
      %v738 = vpack.c.b16 %v720, %v719
      %v739 = vpack.c.b16 %v722, %v721
      %v740 = vpack.c.b16 %v724, %v723
      %757 = vmatpush.bf16.msra.mxu0 %v732
      %758 = vmatpush.bf16.msra.mxu0 %v731
      %759 = vmatpush.bf16.msra.mxu0 %v730
      %760 = vmatpush.bf16.msra.mxu0 %v729
      %761 = vmatpush.bf16.msra.mxu0 %v728
      %762 = vmatpush.bf16.msra.mxu0 %v727
      %763 = vmatpush.bf16.msra.mxu0 %v726
      %764 = vmatpush.bf16.msra.mxu0 %v725
      %765 = vmatmul.bf16.gmra.mxu0 %v413
      %v766 = vpop.f32.mrf.mxu0
      %v767 = vadd.f32 0.0, %v766
      %v768 = vpop.f32.mrf.mxu0
      %769 = vdwg.mxu0
      %770 = vmatpush.bf16.msra.mxu0 %v740
      %771 = vmatpush.bf16.msra.mxu0 %v739
      %772 = vmatpush.bf16.msra.mxu0 %v738
      %773 = vmatpush.bf16.msra.mxu0 %v737
      %774 = vmatpush.bf16.msra.mxu0 %v736
      %775 = vmatpush.bf16.msra.mxu0 %v735
      %776 = vmatpush.bf16.msra.mxu0 %v734
      %777 = vmatpush.bf16.msra.mxu0 %v733
      %778 = vmatmul.bf16.gmra.mxu0 %v414
      %v779 = vpop.f32.mrf.mxu0
      %v780 = vadd.f32 %v767, %v779
      %v781 = vpop.f32.mrf.mxu0
      %782 = vdwg.mxu0
      %v799 = vunpack.c.l.b16 %v260
      %v800 = vunpack.c.l.b16 %v261
      %v801 = vunpack.c.l.b16 %v262
      %v802 = vunpack.c.l.b16 %v263
      %v803 = vunpack.c.l.b16 %v264
      %v804 = vunpack.c.l.b16 %v265
      %v805 = vunpack.c.l.b16 %v266
      %v806 = vunpack.c.l.b16 %v267
      %v807 = vunpack.c.l.b16 %v268
      %v808 = vunpack.c.l.b16 %v269
      %v809 = vunpack.c.l.b16 %v270
      %v810 = vunpack.c.l.b16 %v271
      %v811 = vunpack.c.l.b16 %v272
      %v812 = vunpack.c.l.b16 %v273
      %v813 = vunpack.c.l.b16 %v274
      %v814 = vunpack.c.l.b16 %v275
      %v815 = vpack.c.b16 %v800, %v799
      %v816 = vpack.c.b16 %v802, %v801
      %v817 = vpack.c.b16 %v804, %v803
      %v818 = vpack.c.b16 %v806, %v805
      %v819 = vpack.c.b16 %v808, %v807
      %v820 = vpack.c.b16 %v810, %v809
      %v821 = vpack.c.b16 %v812, %v811
      %v822 = vpack.c.b16 %v814, %v813
      %831 = vmatpush.bf16.msra.mxu0 %v822
      %832 = vmatpush.bf16.msra.mxu0 %v821
      %833 = vmatpush.bf16.msra.mxu0 %v820
      %834 = vmatpush.bf16.msra.mxu0 %v819
      %835 = vmatpush.bf16.msra.mxu0 %v818
      %836 = vmatpush.bf16.msra.mxu0 %v817
      %837 = vmatpush.bf16.msra.mxu0 %v816
      %838 = vmatpush.bf16.msra.mxu0 %v815
      %839 = vmatmul.bf16.gmra.mxu0 %v310
      %v840 = vpop.f32.mrf.mxu0
      %v841 = vadd.f32 %v536, %v840
      %v842 = vpop.f32.mrf.mxu0
      %843 = vdwg.mxu0
      %v860 = vunpack.c.l.b16 %v277
      %v861 = vunpack.c.l.b16 %v278
      %v862 = vunpack.c.l.b16 %v279
      %v863 = vunpack.c.l.b16 %v280
      %v864 = vunpack.c.l.b16 %v281
      %v865 = vunpack.c.l.b16 %v282
      %v866 = vunpack.c.l.b16 %v283
      %v867 = vunpack.c.l.b16 %v284
      %v868 = vunpack.c.l.b16 %v285
      %v869 = vunpack.c.l.b16 %v286
      %v870 = vunpack.c.l.b16 %v287
      %v871 = vunpack.c.l.b16 %v288
      %v872 = vunpack.c.l.b16 %v289
      %v873 = vunpack.c.l.b16 %v290
      %v874 = vunpack.c.l.b16 %v291
      %v875 = vunpack.c.l.b16 %v292
      %v876 = vpack.c.b16 %v861, %v860
      %v877 = vpack.c.b16 %v863, %v862
      %v878 = vpack.c.b16 %v865, %v864
      %v879 = vpack.c.b16 %v867, %v866
      %v880 = vpack.c.b16 %v869, %v868
      %v881 = vpack.c.b16 %v871, %v870
      %v882 = vpack.c.b16 %v873, %v872
      %v883 = vpack.c.b16 %v875, %v874
      %892 = vmatpush.bf16.msra.mxu0 %v883
      %893 = vmatpush.bf16.msra.mxu0 %v882
      %894 = vmatpush.bf16.msra.mxu0 %v881
      %895 = vmatpush.bf16.msra.mxu0 %v880
      %896 = vmatpush.bf16.msra.mxu0 %v879
      %897 = vmatpush.bf16.msra.mxu0 %v878
      %898 = vmatpush.bf16.msra.mxu0 %v877
      %899 = vmatpush.bf16.msra.mxu0 %v876
      %900 = vmatmul.bf16.gmra.mxu0 %v310
      %v901 = vpop.f32.mrf.mxu0
      %v902 = vadd.f32 %v658, %v901
      %v903 = vpop.f32.mrf.mxu0
      %904 = vdwg.mxu0
      %v921 = vunpack.c.l.b16 %v294
      %v922 = vunpack.c.l.b16 %v295
      %v923 = vunpack.c.l.b16 %v296
      %v924 = vunpack.c.l.b16 %v297
      %v925 = vunpack.c.l.b16 %v298
      %v926 = vunpack.c.l.b16 %v299
      %v927 = vunpack.c.l.b16 %v300
      %v928 = vunpack.c.l.b16 %v301
      %v929 = vunpack.c.l.b16 %v302
      %v930 = vunpack.c.l.b16 %v303
      %v931 = vunpack.c.l.b16 %v304
      %v932 = vunpack.c.l.b16 %v305
      %v933 = vunpack.c.l.b16 %v306
      %v934 = vunpack.c.l.b16 %v307
      %v935 = vunpack.c.l.b16 %v308
      %v936 = vunpack.c.l.b16 %v309
      %v937 = vpack.c.b16 %v922, %v921
      %v938 = vpack.c.b16 %v924, %v923
      %v939 = vpack.c.b16 %v926, %v925
      %v940 = vpack.c.b16 %v928, %v927
      %v941 = vpack.c.b16 %v930, %v929
      %v942 = vpack.c.b16 %v932, %v931
      %v943 = vpack.c.b16 %v934, %v933
      %v944 = vpack.c.b16 %v936, %v935
      %953 = vmatpush.bf16.msra.mxu0 %v944
      %954 = vmatpush.bf16.msra.mxu0 %v943
      %955 = vmatpush.bf16.msra.mxu0 %v942
      %956 = vmatpush.bf16.msra.mxu0 %v941
      %957 = vmatpush.bf16.msra.mxu0 %v940
      %958 = vmatpush.bf16.msra.mxu0 %v939
      %959 = vmatpush.bf16.msra.mxu0 %v938
      %960 = vmatpush.bf16.msra.mxu0 %v937
      %961 = vmatmul.bf16.gmra.mxu0 %v310
      %v962 = vpop.f32.mrf.mxu0
      %v963 = vadd.f32 %v780, %v962
      %v964 = vpop.f32.mrf.mxu0
      %965 = vdwg.mxu0
      %v966 = vlaneseq
      %v967 = vshrl.u32 %v966, 7
      %v968 = vrot.slane %v841, 7
      %v969 = vrot.slane %v963, 1
      %vm970 = vcmp.eq.s32.totalorder %v967, 0
      %v971 = vsel %vm970, 0.0, %v968
      %vm972 = vcmp.eq.s32.totalorder %v967, 7
      %v973 = vsel %vm972, 0.0, %v969
      %v974 = vadd.f32 %v902, %v971
      %v975 = vadd.f32 %v974, %v973
      %v976 = vld [vmem:[%s4] sm:$0x1]
      %v978 = vperm.slane %v976, 0
      %v980 = vadd.f32 %v975, %v978
      %v981 = vmax.f32 %v980, 0.0
      %v982 = vpack.c.bf16 %v981, %v981
      %983 = vst [vmem:[%s259] sm:$0xf] %v982
      %p984 = scmp.lt.s32.totalorder %s20, 1
      %s985 = scalar_select %p984, %s20, 1
      %p986 = scmp.lt.s32.totalorder %s21, 0
      %s987 = scalar_select %p986, %s21, 0
      %s988 = sadd.s32 %s987, %s985
      %s989 = smul.addr %s988, 4
      %s990 = scalar_lea.vmem %s5, %s989
      // Predicated region
      $region41: #{unetplusplus_forward.10} parent=39 // pred_check
        %p991 = pneg %p163
      $region42: #{unetplusplus_forward.10} parent=39 // pred_check_branch
        %993 = sbr.rel (%p991) target = $region44
      $region43: #{unetplusplus_forward.10} parent=39 // pred_region
        _
      $region44: #{unetplusplus_forward.10} parent=39 // pred_fallthru
        _
    $region40: #{unetplusplus_forward.10} parent=5 // pred_fallthru
      _
    %p994 = scmp.le.s32.totalorder 2, %s11
    // Predicated region
    $region45: #{unetplusplus_forward.10} parent=5 // pred_check
      %p995 = pneg %p994
    $region46: #{unetplusplus_forward.10} parent=5 // pred_check_branch
      %997 = sbr.rel (%p995) target = $region48
    $region47: #{unetplusplus_forward.10} parent=5 // pred_region
      %s998 = ssub.s32 %s11, 2
      // Predicated region
      $region49: #{unetplusplus_forward.10} parent=47 // pred_check
        %p999 = pneg %p169
      $region50: #{unetplusplus_forward.10} parent=47 // pred_check_branch
        %1001 = sbr.rel (%p999) target = $region52
      $region51: #{unetplusplus_forward.10} parent=47 // pred_region
        %p1002 = scmp.lt.s32.totalorder %s22, 1
        %s1003 = scalar_select %p1002, %s22, 1
        %p1004 = scmp.lt.s32.totalorder %s23, 0
        %s1005 = scalar_select %p1004, %s23, 0
        %s1006 = sadd.s32 %s1005, %s1003
        %s1007 = smul.addr %s1006, 4
        %s1008 = scalar_lea.vmem %s5, %s1007
      $region52: #{unetplusplus_forward.10} parent=47 // pred_fallthru
        _
    $region48: #{unetplusplus_forward.10} parent=5 // pred_fallthru
      _
  $region6: #{unetplusplus_forward.10} parent=0 // loop_footer
    %s15 = sadd.s32 1, %s11
  $region7: #{unetplusplus_forward.10} parent=0 // loop_footer_branch
    %10 = sbr.rel target = $region3
  $region8: #{unetplusplus_forward.10} parent=0 // loop_exit
    _

// kernel: unetplusplus_forward.9
$region0: #{unetplusplus_forward.9}
  #allocation0 [shape = 'u32[]', space=smem, size = 0x4, offset = 0x4, fixed_abs, tag = 'smem constant byte address 0x4 - core index']
  #allocation1 [shape = 'u32[72,128]{1,0:T(1,128)}', space=vmem, size = 0x9000, scoped, tag = 'internal scratch']
  %s0 = inlined_call_operand.vmem [shape: bf16[2,16,128], index: 0, kind: input, shape index: {}]
  %s1 = inlined_call_operand.vmem [shape: bf16[2,16,256], index: 1, kind: input, shape index: {}]
  %s2 = inlined_call_operand.vmem [shape: bf16[3,128,128], index: 2, kind: input, shape index: {}]
  %s3 = inlined_call_operand.vmem [shape: bf16[3,256,128], index: 3, kind: input, shape index: {}]
  %s4 = inlined_call_operand.vmem [shape: f32[1,128], index: 4, kind: input, shape index: {}]
  %s5 = inlined_call_operand.vmem [shape: bf16[2,16,128], index: 5, kind: output, shape index: {}]
  %s6 = sld [smem:[#allocation0]]
  $region53: #{unetplusplus_forward.9} parent=0
    _
  %s8 = ssub.s32 1, %s6
  %s9 = scalar_select 0, %s8, %s6
  loop: start=0, step=1, limit=4
  $region2: #{unetplusplus_forward.9} parent=0 // loop_pre_header
    _
  $region3: #{unetplusplus_forward.9} parent=0 // loop_header
    %s11 = sphi 0, %s15
    %p12 = scmp.ge.s32.totalorder %s11, 4
    %s18 = sphi 0, %s30
    %s19 = sphi 0, %s26
    %s20 = sphi 0, %s18
    %s21 = sphi 0, %s19
    %s22 = sphi 0, %s20
    %s23 = sphi 0, %s21
    %s33 = sphi 0, %s35
    %s36 = sphi 0, %s33
    %s37 = sphi 0, %s36
    %s53 = sphi 0, %s37
    %s59 = sphi 0, %s61
    %s62 = sphi 0, %s59
    %s63 = sphi 0, %s62
    %s79 = sphi 0, %s63
    %s83 = sphi 0, %s83
    %s85 = sphi 0, %s83
    %s86 = sphi 0, %s85
    %s100 = sphi 0, %s86
    %s104 = sphi 0, %s104
    %s106 = sphi 0, %s104
    %s107 = sphi 0, %s106
    %s121 = sphi 0, %s107
    %s125 = sphi 0, %s125
    %s127 = sphi 0, %s125
    %s128 = sphi 0, %s127
    %s142 = sphi 0, %s128
    %s150 = sphi 0, %s152
    %s153 = sphi 0, %s150
    %s154 = sphi 0, %s153
    %s170 = sphi 0, %s154
  $region4: #{unetplusplus_forward.9} parent=0 // loop_header_branch
    %14 = sbr.rel (%p12) target = $region8
  $region5: #{unetplusplus_forward.9} parent=0 // loop_body
    %s16 = ssub.s32 %s11, 1
    %s17 = ssub.s32 %s11, 2
    %s24 = sadd.s32 1, %s19
    %p25 = scmp.ge.s32.totalorder %s24, 1
    %s26 = scalar_select %p25, 0, %s24
    %s27 = sadd.s32 1, %s18
    %s28 = scalar_select %p25, %s27, %s18
    %p29 = scmp.ge.s32.totalorder %s28, 2
    %s30 = scalar_select %p29, 0, %s28
    %s31 = ssub.s32 %s18, %s30
    %p32 = scmp.eq.s32.totalorder %s31, 0
    %s34 = sadd.s32 %s33, 1
    %s35 = scalar_select %p32, %s33, %s34
    %p38 = pneg %p32
    %p39 = scmp.eq.s32.totalorder %s11, 1
    %p40 = por %p38, %p39
    %p41 = scmp.ne.s32.totalorder %s33, %s36
    %p42 = scmp.eq.s32.totalorder %s11, 0
    %p43 = por %p41, %p42
    %p44 = scmp.ne.s32.totalorder %s33, %s36
    %p45 = scmp.eq.s32.totalorder %s16, 1
    %p46 = por %p44, %p45
    %p47 = scmp.ne.s32.totalorder %s36, %s37
    %p48 = scmp.eq.s32.totalorder %s16, 0
    %p49 = por %p47, %p48
    %p50 = scmp.ne.s32.totalorder %s36, %s37
    %p51 = scmp.eq.s32.totalorder %s17, 1
    %p52 = por %p50, %p51
    %p54 = scmp.ne.s32.totalorder %s37, %s53
    %p55 = scmp.eq.s32.totalorder %s17, 0
    %p56 = por %p54, %p55
    %s57 = ssub.s32 %s18, %s30
    %p58 = scmp.eq.s32.totalorder %s57, 0
    %s60 = sadd.s32 %s59, 1
    %s61 = scalar_select %p58, %s59, %s60
    %p64 = pneg %p58
    %p65 = scmp.eq.s32.totalorder %s11, 1
    %p66 = por %p64, %p65
    %p67 = scmp.ne.s32.totalorder %s59, %s62
    %p68 = scmp.eq.s32.totalorder %s11, 0
    %p69 = por %p67, %p68
    %p70 = scmp.ne.s32.totalorder %s59, %s62
    %p71 = scmp.eq.s32.totalorder %s16, 1
    %p72 = por %p70, %p71
    %p73 = scmp.ne.s32.totalorder %s62, %s63
    %p74 = scmp.eq.s32.totalorder %s16, 0
    %p75 = por %p73, %p74
    %p76 = scmp.ne.s32.totalorder %s62, %s63
    %p77 = scmp.eq.s32.totalorder %s17, 1
    %p78 = por %p76, %p77
    %p80 = scmp.ne.s32.totalorder %s63, %s79
    %p81 = scmp.eq.s32.totalorder %s17, 0
    %p82 = por %p80, %p81
    %s84 = sadd.s32 %s83, 1
    %p87 = scmp.eq.s32.totalorder %s11, 1
    %p88 = scmp.ne.s32.totalorder %s83, %s85
    %p89 = scmp.eq.s32.totalorder %s11, 0
    %p90 = por %p88, %p89
    %p91 = scmp.ne.s32.totalorder %s83, %s85
    %p92 = scmp.eq.s32.totalorder %s16, 1
    %p93 = por %p91, %p92
    %p94 = scmp.ne.s32.totalorder %s85, %s86
    %p95 = scmp.eq.s32.totalorder %s16, 0
    %p96 = por %p94, %p95
    %p97 = scmp.ne.s32.totalorder %s85, %s86
    %p98 = scmp.eq.s32.totalorder %s17, 1
    %p99 = por %p97, %p98
    %p101 = scmp.ne.s32.totalorder %s86, %s100
    %p102 = scmp.eq.s32.totalorder %s17, 0
    %p103 = por %p101, %p102
    %s105 = sadd.s32 %s104, 1
    %p108 = scmp.eq.s32.totalorder %s11, 1
    %p109 = scmp.ne.s32.totalorder %s104, %s106
    %p110 = scmp.eq.s32.totalorder %s11, 0
    %p111 = por %p109, %p110
    %p112 = scmp.ne.s32.totalorder %s104, %s106
    %p113 = scmp.eq.s32.totalorder %s16, 1
    %p114 = por %p112, %p113
    %p115 = scmp.ne.s32.totalorder %s106, %s107
    %p116 = scmp.eq.s32.totalorder %s16, 0
    %p117 = por %p115, %p116
    %p118 = scmp.ne.s32.totalorder %s106, %s107
    %p119 = scmp.eq.s32.totalorder %s17, 1
    %p120 = por %p118, %p119
    %p122 = scmp.ne.s32.totalorder %s107, %s121
    %p123 = scmp.eq.s32.totalorder %s17, 0
    %p124 = por %p122, %p123
    %s126 = sadd.s32 %s125, 1
    %p129 = scmp.eq.s32.totalorder %s11, 1
    %p130 = scmp.ne.s32.totalorder %s125, %s127
    %p131 = scmp.eq.s32.totalorder %s11, 0
    %p132 = por %p130, %p131
    %p133 = scmp.ne.s32.totalorder %s125, %s127
    %p134 = scmp.eq.s32.totalorder %s16, 1
    %p135 = por %p133, %p134
    %p136 = scmp.ne.s32.totalorder %s127, %s128
    %p137 = scmp.eq.s32.totalorder %s16, 0
    %p138 = por %p136, %p137
    %p139 = scmp.ne.s32.totalorder %s127, %s128
    %p140 = scmp.eq.s32.totalorder %s17, 1
    %p141 = por %p139, %p140
    %p143 = scmp.ne.s32.totalorder %s128, %s142
    %p144 = scmp.eq.s32.totalorder %s17, 0
    %p145 = por %p143, %p144
    %s146 = ssub.s32 %s18, %s30
    %s147 = ssub.s32 %s19, %s26
    %s148 = sor.u32 %s146, %s147
    %p149 = scmp.eq.s32.totalorder %s148, 0
    %s151 = sadd.s32 %s150, 1
    %s152 = scalar_select %p149, %s150, %s151
    %p155 = pneg %p149
    %p156 = scmp.eq.s32.totalorder %s11, 1
    %p157 = por %p155, %p156
    %p158 = scmp.ne.s32.totalorder %s150, %s153
    %p159 = scmp.eq.s32.totalorder %s11, 0
    %p160 = por %p158, %p159
    %p161 = scmp.ne.s32.totalorder %s150, %s153
    %p162 = scmp.eq.s32.totalorder %s16, 1
    %p163 = por %p161, %p162
    %p164 = scmp.ne.s32.totalorder %s153, %s154
    %p165 = scmp.eq.s32.totalorder %s16, 0
    %p166 = por %p164, %p165
    %p167 = scmp.ne.s32.totalorder %s153, %s154
    %p168 = scmp.eq.s32.totalorder %s17, 1
    %p169 = por %p167, %p168
    %p171 = scmp.ne.s32.totalorder %s154, %s170
    %p172 = scmp.eq.s32.totalorder %s17, 0
    %p173 = por %p171, %p172
    %p174 = scmp.le.s32.totalorder 1, %s11
    %p175 = scmp.lt.s32.totalorder %s11, 3
    %p176 = pnand %p174, %p175
    %p177 = pneg %p176
    // Predicated region
    $region9: #{unetplusplus_forward.9} parent=5 // pred_check
      _
    $region10: #{unetplusplus_forward.9} parent=5 // pred_check_branch
      %179 = sbr.rel (%p176) target = $region12
    $region11: #{unetplusplus_forward.9} parent=5 // pred_region
      %s180 = ssub.s32 %s11, 1
      // Predicated region
      $region13: #{unetplusplus_forward.9} parent=11 // pred_check
        %p181 = pneg %p96
      $region14: #{unetplusplus_forward.9} parent=11 // pred_check_branch
        %183 = sbr.rel (%p181) target = $region16
      $region15: #{unetplusplus_forward.9} parent=11 // pred_region
        _
      $region16: #{unetplusplus_forward.9} parent=11 // pred_fallthru
        _
      // Predicated region
      $region17: #{unetplusplus_forward.9} parent=11 // pred_check
        %p184 = pneg %p117
      $region18: #{unetplusplus_forward.9} parent=11 // pred_check_branch
        %186 = sbr.rel (%p184) target = $region20
      $region19: #{unetplusplus_forward.9} parent=11 // pred_region
        _
      $region20: #{unetplusplus_forward.9} parent=11 // pred_fallthru
        _
      // Predicated region
      $region21: #{unetplusplus_forward.9} parent=11 // pred_check
        %p187 = pneg %p138
      $region22: #{unetplusplus_forward.9} parent=11 // pred_check_branch
        %189 = sbr.rel (%p187) target = $region24
      $region23: #{unetplusplus_forward.9} parent=11 // pred_region
        _
      $region24: #{unetplusplus_forward.9} parent=11 // pred_fallthru
        _
    $region12: #{unetplusplus_forward.9} parent=5 // pred_fallthru
      _
    %p190 = scmp.lt.s32.totalorder %s11, 2
    // Predicated region
    $region25: #{unetplusplus_forward.9} parent=5 // pred_check
      %p191 = pneg %p190
    $region26: #{unetplusplus_forward.9} parent=5 // pred_check_branch
      %193 = sbr.rel (%p191) target = $region28
    $region27: #{unetplusplus_forward.9} parent=5 // pred_region
      // Predicated region
      $region29: #{unetplusplus_forward.9} parent=27 // pred_check
        %p194 = pneg %p43
      $region30: #{unetplusplus_forward.9} parent=27 // pred_check_branch
        %196 = sbr.rel (%p194) target = $region32
      $region31: #{unetplusplus_forward.9} parent=27 // pred_region
        %p197 = scmp.lt.s32.totalorder %s18, 1
        %s198 = scalar_select %p197, %s18, 1
        %s199 = smul.addr %s198, 2
        %s200 = smul.addr %s199, 4
        %s201 = scalar_lea.vmem %s0, %s200
      $region32: #{unetplusplus_forward.9} parent=27 // pred_fallthru
        _
      // Predicated region
      $region33: #{unetplusplus_forward.9} parent=27 // pred_check
        %p202 = pneg %p69
      $region34: #{unetplusplus_forward.9} parent=27 // pred_check_branch
        %204 = sbr.rel (%p202) target = $region36
      $region35: #{unetplusplus_forward.9} parent=27 // pred_region
        %p205 = scmp.lt.s32.totalorder %s18, 1
        %s206 = scalar_select %p205, %s18, 1
        %s207 = smul.addr %s206, 4
        %s208 = smul.addr %s207, 4
        %s209 = scalar_lea.vmem %s1, %s208
      $region36: #{unetplusplus_forward.9} parent=27 // pred_fallthru
        _
    $region28: #{unetplusplus_forward.9} parent=5 // pred_fallthru
      _
    %p210 = scmp.le.s32.totalorder 1, %s11
    %p211 = scmp.lt.s32.totalorder %s11, 3
    %p212 = pnand %p210, %p211
    %p213 = pneg %p212
    // Predicated region
    $region37: #{unetplusplus_forward.9} parent=5 // pred_check
      _
    $region38: #{unetplusplus_forward.9} parent=5 // pred_check_branch
      %215 = sbr.rel (%p212) target = $region40
    $region39: #{unetplusplus_forward.9} parent=5 // pred_region
      %s216 = ssub.s32 %s11, 1
      %p217 = scmp.lt.s32.totalorder %s20, 1
      %s218 = scalar_select %p217, %s20, 1
      %s219 = smul.addr %s218, 2
      %s220 = smul.addr %s219, 4
      %s221 = scalar_lea.vmem %s0, %s220
      %p222 = pneg %p49
      %p223 = pneg %p46
      %p224 = scmp.lt.s32.totalorder %s20, 1
      %s225 = scalar_select %p224, %s20, 1
      %s226 = smul.addr %s225, 4
      %s227 = smul.addr %s226, 4
      %s228 = scalar_lea.vmem %s1, %s227
      %p229 = pneg %p75
      %p230 = pneg %p72
      %p231 = pneg %p96
      %p232 = pneg %p93
      %p233 = pneg %p117
      %p234 = pneg %p114
      %p235 = pneg %p138
      %p236 = pneg %p135
      %p237 = pneg %p166
      %p238 = pneg %p163
      %s239 = smul.u32 2, %s21
      %p240 = scmp.lt.s32.totalorder %s20, 1
      %s241 = scalar_select %p240, %s20, 1
      %p242 = scmp.lt.s32.totalorder %s239, 1
      %s243 = scalar_select %p242, %s239, 1
      %s244 = smul.addr %s241, 2
      %s245 = sadd.s32 %s243, %s244
      %s246 = smul.addr %s245, 4
      %s247 = scalar_lea.vmem %s5, %s246
      %p248 = scmp.lt.s32.totalorder %s20, 1
      %s249 = scalar_select %p248, %s20, 1
      %s250 = smul.addr %s249, 2
      %s251 = smul.addr %s250, 4
      %s252 = scalar_lea.vmem %s0, %s251
      %p253 = scmp.lt.s32.totalorder %s20, 1
      %s254 = scalar_select %p253, %s20, 1
      %s255 = smul.addr %s254, 4
      %s256 = smul.addr %s255, 4
      %s257 = scalar_lea.vmem %s1, %s256
      %s258 = smul.u32 2, %s21
      %p259 = scmp.lt.s32.totalorder %s20, 1
      %s260 = scalar_select %p259, %s20, 1
      %p261 = scmp.lt.s32.totalorder %s258, 1
      %s262 = scalar_select %p261, %s258, 1
      %s263 = smul.addr %s260, 2
      %s264 = sadd.s32 %s262, %s263
      %s265 = smul.addr %s264, 4
      %s266 = scalar_lea.vmem %s5, %s265
      %s267 = smul.u32 2, %s21
      %v268 = vld [vmem:[%s2] sm:$0xf]
      %v269 = vld [vmem:[%s2 + $0x4] sm:$0xf]
      %v270 = vld [vmem:[%s2 + $0x8] sm:$0xf]
      %v271 = vld [vmem:[%s2 + $0xc] sm:$0xf]
      %v272 = vld [vmem:[%s2 + $0x10] sm:$0xf]
      %v273 = vld [vmem:[%s2 + $0x14] sm:$0xf]
      %v274 = vld [vmem:[%s2 + $0x18] sm:$0xf]
      %v275 = vld [vmem:[%s2 + $0x1c] sm:$0xf]
      %v276 = vld [vmem:[%s2 + $0x20] sm:$0xf]
      %v277 = vld [vmem:[%s2 + $0x24] sm:$0xf]
      %v278 = vld [vmem:[%s2 + $0x28] sm:$0xf]
      %v279 = vld [vmem:[%s2 + $0x2c] sm:$0xf]
      %v280 = vld [vmem:[%s2 + $0x30] sm:$0xf]
      %v281 = vld [vmem:[%s2 + $0x34] sm:$0xf]
      %v282 = vld [vmem:[%s2 + $0x38] sm:$0xf]
      %v283 = vld [vmem:[%s2 + $0x3c] sm:$0xf]
      %s284 = scalar_lea.vmem %s2, 64
      %v285 = vld [vmem:[%s284] sm:$0xf]
      %v286 = vld [vmem:[%s284 + $0x4] sm:$0xf]
      %v287 = vld [vmem:[%s284 + $0x8] sm:$0xf]
      %v288 = vld [vmem:[%s284 + $0xc] sm:$0xf]
      %v289 = vld [vmem:[%s284 + $0x10] sm:$0xf]
      %v290 = vld [vmem:[%s284 + $0x14] sm:$0xf]
      %v291 = vld [vmem:[%s284 + $0x18] sm:$0xf]
      %v292 = vld [vmem:[%s284 + $0x1c] sm:$0xf]
      %v293 = vld [vmem:[%s284 + $0x20] sm:$0xf]
      %v294 = vld [vmem:[%s284 + $0x24] sm:$0xf]
      %v295 = vld [vmem:[%s284 + $0x28] sm:$0xf]
      %v296 = vld [vmem:[%s284 + $0x2c] sm:$0xf]
      %v297 = vld [vmem:[%s284 + $0x30] sm:$0xf]
      %v298 = vld [vmem:[%s284 + $0x34] sm:$0xf]
      %v299 = vld [vmem:[%s284 + $0x38] sm:$0xf]
      %v300 = vld [vmem:[%s284 + $0x3c] sm:$0xf]
      %s301 = scalar_lea.vmem %s2, 128
      %v302 = vld [vmem:[%s301] sm:$0xf]
      %v303 = vld [vmem:[%s301 + $0x4] sm:$0xf]
      %v304 = vld [vmem:[%s301 + $0x8] sm:$0xf]
      %v305 = vld [vmem:[%s301 + $0xc] sm:$0xf]
      %v306 = vld [vmem:[%s301 + $0x10] sm:$0xf]
      %v307 = vld [vmem:[%s301 + $0x14] sm:$0xf]
      %v308 = vld [vmem:[%s301 + $0x18] sm:$0xf]
      %v309 = vld [vmem:[%s301 + $0x1c] sm:$0xf]
      %v310 = vld [vmem:[%s301 + $0x20] sm:$0xf]
      %v311 = vld [vmem:[%s301 + $0x24] sm:$0xf]
      %v312 = vld [vmem:[%s301 + $0x28] sm:$0xf]
      %v313 = vld [vmem:[%s301 + $0x2c] sm:$0xf]
      %v314 = vld [vmem:[%s301 + $0x30] sm:$0xf]
      %v315 = vld [vmem:[%s301 + $0x34] sm:$0xf]
      %v316 = vld [vmem:[%s301 + $0x38] sm:$0xf]
      %v317 = vld [vmem:[%s301 + $0x3c] sm:$0xf]
      %v318 = vld [vmem:[%s252] sm:$0xf]
      %v319 = vld [vmem:[%s252 + $0x4] sm:$0xf]
      %v320 = vld [vmem:[%s3] sm:$0xf]
      %v321 = vld [vmem:[%s3 + $0x4] sm:$0xf]
      %v322 = vld [vmem:[%s3 + $0x8] sm:$0xf]
      %v323 = vld [vmem:[%s3 + $0xc] sm:$0xf]
      %v324 = vld [vmem:[%s3 + $0x10] sm:$0xf]
      %v325 = vld [vmem:[%s3 + $0x14] sm:$0xf]
      %v326 = vld [vmem:[%s3 + $0x18] sm:$0xf]
      %v327 = vld [vmem:[%s3 + $0x1c] sm:$0xf]
      %v328 = vld [vmem:[%s3 + $0x20] sm:$0xf]
      %v329 = vld [vmem:[%s3 + $0x24] sm:$0xf]
      %v330 = vld [vmem:[%s3 + $0x28] sm:$0xf]
      %v331 = vld [vmem:[%s3 + $0x2c] sm:$0xf]
      %v332 = vld [vmem:[%s3 + $0x30] sm:$0xf]
      %v333 = vld [vmem:[%s3 + $0x34] sm:$0xf]
      %v334 = vld [vmem:[%s3 + $0x38] sm:$0xf]
      %v335 = vld [vmem:[%s3 + $0x3c] sm:$0xf]
      %v336 = vld [vmem:[%s3 + $0x40] sm:$0xf]
      %v337 = vld [vmem:[%s3 + $0x44] sm:$0xf]
      %v338 = vld [vmem:[%s3 + $0x48] sm:$0xf]
      %v339 = vld [vmem:[%s3 + $0x4c] sm:$0xf]
      %v340 = vld [vmem:[%s3 + $0x50] sm:$0xf]
      %v341 = vld [vmem:[%s3 + $0x54] sm:$0xf]
      %v342 = vld [vmem:[%s3 + $0x58] sm:$0xf]
      %v343 = vld [vmem:[%s3 + $0x5c] sm:$0xf]
      %v344 = vld [vmem:[%s3 + $0x60] sm:$0xf]
      %v345 = vld [vmem:[%s3 + $0x64] sm:$0xf]
      %v346 = vld [vmem:[%s3 + $0x68] sm:$0xf]
      %v347 = vld [vmem:[%s3 + $0x6c] sm:$0xf]
      %v348 = vld [vmem:[%s3 + $0x70] sm:$0xf]
      %v349 = vld [vmem:[%s3 + $0x74] sm:$0xf]
      %v350 = vld [vmem:[%s3 + $0x78] sm:$0xf]
      %v351 = vld [vmem:[%s3 + $0x7c] sm:$0xf]
      %s352 = scalar_lea.vmem %s3, 128
      %v353 = vld [vmem:[%s352] sm:$0xf]
      %v354 = vld [vmem:[%s352 + $0x4] sm:$0xf]
      %v355 = vld [vmem:[%s352 + $0x8] sm:$0xf]
      %v356 = vld [vmem:[%s352 + $0xc] sm:$0xf]
      %v357 = vld [vmem:[%s352 + $0x10] sm:$0xf]
      %v358 = vld [vmem:[%s352 + $0x14] sm:$0xf]
      %v359 = vld [vmem:[%s352 + $0x18] sm:$0xf]
      %v360 = vld [vmem:[%s352 + $0x1c] sm:$0xf]
      %v361 = vld [vmem:[%s352 + $0x20] sm:$0xf]
      %v362 = vld [vmem:[%s352 + $0x24] sm:$0xf]
      %v363 = vld [vmem:[%s352 + $0x28] sm:$0xf]
      %v364 = vld [vmem:[%s352 + $0x2c] sm:$0xf]
      %v365 = vld [vmem:[%s352 + $0x30] sm:$0xf]
      %v366 = vld [vmem:[%s352 + $0x34] sm:$0xf]
      %v367 = vld [vmem:[%s352 + $0x38] sm:$0xf]
      %v368 = vld [vmem:[%s352 + $0x3c] sm:$0xf]
      %v369 = vld [vmem:[%s352 + $0x40] sm:$0xf]
      %v370 = vld [vmem:[%s352 + $0x44] sm:$0xf]
      %v371 = vld [vmem:[%s352 + $0x48] sm:$0xf]
      %v372 = vld [vmem:[%s352 + $0x4c] sm:$0xf]
      %v373 = vld [vmem:[%s352 + $0x50] sm:$0xf]
      %v374 = vld [vmem:[%s352 + $0x54] sm:$0xf]
      %v375 = vld [vmem:[%s352 + $0x58] sm:$0xf]
      %v376 = vld [vmem:[%s352 + $0x5c] sm:$0xf]
      %v377 = vld [vmem:[%s352 + $0x60] sm:$0xf]
      %v378 = vld [vmem:[%s352 + $0x64] sm:$0xf]
      %v379 = vld [vmem:[%s352 + $0x68] sm:$0xf]
      %v380 = vld [vmem:[%s352 + $0x6c] sm:$0xf]
      %v381 = vld [vmem:[%s352 + $0x70] sm:$0xf]
      %v382 = vld [vmem:[%s352 + $0x74] sm:$0xf]
      %v383 = vld [vmem:[%s352 + $0x78] sm:$0xf]
      %v384 = vld [vmem:[%s352 + $0x7c] sm:$0xf]
      %s385 = scalar_lea.vmem %s3, 256
      %v386 = vld [vmem:[%s385] sm:$0xf]
      %v387 = vld [vmem:[%s385 + $0x4] sm:$0xf]
      %v388 = vld [vmem:[%s385 + $0x8] sm:$0xf]
      %v389 = vld [vmem:[%s385 + $0xc] sm:$0xf]
      %v390 = vld [vmem:[%s385 + $0x10] sm:$0xf]
      %v391 = vld [vmem:[%s385 + $0x14] sm:$0xf]
      %v392 = vld [vmem:[%s385 + $0x18] sm:$0xf]
      %v393 = vld [vmem:[%s385 + $0x1c] sm:$0xf]
      %v394 = vld [vmem:[%s385 + $0x20] sm:$0xf]
      %v395 = vld [vmem:[%s385 + $0x24] sm:$0xf]
      %v396 = vld [vmem:[%s385 + $0x28] sm:$0xf]
      %v397 = vld [vmem:[%s385 + $0x2c] sm:$0xf]
      %v398 = vld [vmem:[%s385 + $0x30] sm:$0xf]
      %v399 = vld [vmem:[%s385 + $0x34] sm:$0xf]
      %v400 = vld [vmem:[%s385 + $0x38] sm:$0xf]
      %v401 = vld [vmem:[%s385 + $0x3c] sm:$0xf]
      %v402 = vld [vmem:[%s385 + $0x40] sm:$0xf]
      %v403 = vld [vmem:[%s385 + $0x44] sm:$0xf]
      %v404 = vld [vmem:[%s385 + $0x48] sm:$0xf]
      %v405 = vld [vmem:[%s385 + $0x4c] sm:$0xf]
      %v406 = vld [vmem:[%s385 + $0x50] sm:$0xf]
      %v407 = vld [vmem:[%s385 + $0x54] sm:$0xf]
      %v408 = vld [vmem:[%s385 + $0x58] sm:$0xf]
      %v409 = vld [vmem:[%s385 + $0x5c] sm:$0xf]
      %v410 = vld [vmem:[%s385 + $0x60] sm:$0xf]
      %v411 = vld [vmem:[%s385 + $0x64] sm:$0xf]
      %v412 = vld [vmem:[%s385 + $0x68] sm:$0xf]
      %v413 = vld [vmem:[%s385 + $0x6c] sm:$0xf]
      %v414 = vld [vmem:[%s385 + $0x70] sm:$0xf]
      %v415 = vld [vmem:[%s385 + $0x74] sm:$0xf]
      %v416 = vld [vmem:[%s385 + $0x78] sm:$0xf]
      %v417 = vld [vmem:[%s385 + $0x7c] sm:$0xf]
      %v418 = vld [vmem:[%s257] sm:$0xff]
      %v419 = vld [vmem:[%s257 + $0x8] sm:$0xff]
      %v422 = vunpack.c.l.b16 %v418
      %v423 = vunpack.c.h.b16 %v418
      %v424 = vunpack.c.l.b16 %v419
      %v425 = vunpack.c.h.b16 %v419
      %v426 = vpack.c.b16 %v424, %v422
      %v427 = vpack.c.b16 %v425, %v423
      %v462 = vunpack.c.l.b16 %v320
      %v463 = vunpack.c.l.b16 %v321
      %v464 = vunpack.c.l.b16 %v322
      %v465 = vunpack.c.l.b16 %v323
      %v466 = vunpack.c.l.b16 %v324
      %v467 = vunpack.c.l.b16 %v325
      %v468 = vunpack.c.l.b16 %v326
      %v469 = vunpack.c.l.b16 %v327
      %v470 = vunpack.c.l.b16 %v328
      %v471 = vunpack.c.l.b16 %v329
      %v472 = vunpack.c.l.b16 %v330
      %v473 = vunpack.c.l.b16 %v331
      %v474 = vunpack.c.l.b16 %v332
      %v475 = vunpack.c.l.b16 %v333
      %v476 = vunpack.c.l.b16 %v334
      %v477 = vunpack.c.l.b16 %v335
      %v478 = vunpack.c.l.b16 %v336
      %v479 = vunpack.c.l.b16 %v337
      %v480 = vunpack.c.l.b16 %v338
      %v481 = vunpack.c.l.b16 %v339
      %v482 = vunpack.c.l.b16 %v340
      %v483 = vunpack.c.l.b16 %v341
      %v484 = vunpack.c.l.b16 %v342
      %v485 = vunpack.c.l.b16 %v343
      %v486 = vunpack.c.l.b16 %v344
      %v487 = vunpack.c.l.b16 %v345
      %v488 = vunpack.c.l.b16 %v346
      %v489 = vunpack.c.l.b16 %v347
      %v490 = vunpack.c.l.b16 %v348
      %v491 = vunpack.c.l.b16 %v349
      %v492 = vunpack.c.l.b16 %v350
      %v493 = vunpack.c.l.b16 %v351
      %v494 = vpack.c.b16 %v463, %v462
      %v495 = vpack.c.b16 %v465, %v464
      %v496 = vpack.c.b16 %v467, %v466
      %v497 = vpack.c.b16 %v469, %v468
      %v498 = vpack.c.b16 %v471, %v470
      %v499 = vpack.c.b16 %v473, %v472
      %v500 = vpack.c.b16 %v475, %v474
      %v501 = vpack.c.b16 %v477, %v476
      %v502 = vpack.c.b16 %v479, %v478
      %v503 = vpack.c.b16 %v481, %v480
      %v504 = vpack.c.b16 %v483, %v482
      %v505 = vpack.c.b16 %v485, %v484
      %v506 = vpack.c.b16 %v487, %v486
      %v507 = vpack.c.b16 %v489, %v488
      %v508 = vpack.c.b16 %v491, %v490
      %v509 = vpack.c.b16 %v493, %v492
      %526 = vmatpush.bf16.msra.mxu0 %v501
      %527 = vmatpush.bf16.msra.mxu0 %v500
      %528 = vmatpush.bf16.msra.mxu0 %v499
      %529 = vmatpush.bf16.msra.mxu0 %v498
      %530 = vmatpush.bf16.msra.mxu0 %v497
      %531 = vmatpush.bf16.msra.mxu0 %v496
      %532 = vmatpush.bf16.msra.mxu0 %v495
      %533 = vmatpush.bf16.msra.mxu0 %v494
      %534 = vmatmul.bf16.gmra.mxu0 %v426
      %v535 = vpop.f32.mrf.mxu0
      %v536 = vadd.f32 0.0, %v535
      %v537 = vpop.f32.mrf.mxu0
      %v538 = vadd.f32 0.0, %v537
      %539 = vdwg.mxu0
      %540 = vmatpush.bf16.msra.mxu0 %v509
      %541 = vmatpush.bf16.msra.mxu0 %v508
      %542 = vmatpush.bf16.msra.mxu0 %v507
      %543 = vmatpush.bf16.msra.mxu0 %v506
      %544 = vmatpush.bf16.msra.mxu0 %v505
      %545 = vmatpush.bf16.msra.mxu0 %v504
      %546 = vmatpush.bf16.msra.mxu0 %v503
      %547 = vmatpush.bf16.msra.mxu0 %v502
      %548 = vmatmul.bf16.gmra.mxu0 %v427
      %v549 = vpop.f32.mrf.mxu0
      %v550 = vadd.f32 %v536, %v549
      %v551 = vpop.f32.mrf.mxu0
      %v552 = vadd.f32 %v538, %v551
      %553 = vdwg.mxu0
      %v586 = vunpack.c.l.b16 %v353
      %v587 = vunpack.c.l.b16 %v354
      %v588 = vunpack.c.l.b16 %v355
      %v589 = vunpack.c.l.b16 %v356
      %v590 = vunpack.c.l.b16 %v357
      %v591 = vunpack.c.l.b16 %v358
      %v592 = vunpack.c.l.b16 %v359
      %v593 = vunpack.c.l.b16 %v360
      %v594 = vunpack.c.l.b16 %v361
      %v595 = vunpack.c.l.b16 %v362
      %v596 = vunpack.c.l.b16 %v363
      %v597 = vunpack.c.l.b16 %v364
      %v598 = vunpack.c.l.b16 %v365
      %v599 = vunpack.c.l.b16 %v366
      %v600 = vunpack.c.l.b16 %v367
      %v601 = vunpack.c.l.b16 %v368
      %v602 = vunpack.c.l.b16 %v369
      %v603 = vunpack.c.l.b16 %v370
      %v604 = vunpack.c.l.b16 %v371
      %v605 = vunpack.c.l.b16 %v372
      %v606 = vunpack.c.l.b16 %v373
      %v607 = vunpack.c.l.b16 %v374
      %v608 = vunpack.c.l.b16 %v375
      %v609 = vunpack.c.l.b16 %v376
      %v610 = vunpack.c.l.b16 %v377
      %v611 = vunpack.c.l.b16 %v378
      %v612 = vunpack.c.l.b16 %v379
      %v613 = vunpack.c.l.b16 %v380
      %v614 = vunpack.c.l.b16 %v381
      %v615 = vunpack.c.l.b16 %v382
      %v616 = vunpack.c.l.b16 %v383
      %v617 = vunpack.c.l.b16 %v384
      %v618 = vpack.c.b16 %v587, %v586
      %v619 = vpack.c.b16 %v589, %v588
      %v620 = vpack.c.b16 %v591, %v590
      %v621 = vpack.c.b16 %v593, %v592
      %v622 = vpack.c.b16 %v595, %v594
      %v623 = vpack.c.b16 %v597, %v596
      %v624 = vpack.c.b16 %v599, %v598
      %v625 = vpack.c.b16 %v601, %v600
      %v626 = vpack.c.b16 %v603, %v602
      %v627 = vpack.c.b16 %v605, %v604
      %v628 = vpack.c.b16 %v607, %v606
      %v629 = vpack.c.b16 %v609, %v608
      %v630 = vpack.c.b16 %v611, %v610
      %v631 = vpack.c.b16 %v613, %v612
      %v632 = vpack.c.b16 %v615, %v614
      %v633 = vpack.c.b16 %v617, %v616
      %650 = vmatpush.bf16.msra.mxu0 %v625
      %651 = vmatpush.bf16.msra.mxu0 %v624
      %652 = vmatpush.bf16.msra.mxu0 %v623
      %653 = vmatpush.bf16.msra.mxu0 %v622
      %654 = vmatpush.bf16.msra.mxu0 %v621
      %655 = vmatpush.bf16.msra.mxu0 %v620
      %656 = vmatpush.bf16.msra.mxu0 %v619
      %657 = vmatpush.bf16.msra.mxu0 %v618
      %658 = vmatmul.bf16.gmra.mxu0 %v426
      %v659 = vpop.f32.mrf.mxu0
      %v660 = vadd.f32 0.0, %v659
      %v661 = vpop.f32.mrf.mxu0
      %v662 = vadd.f32 0.0, %v661
      %663 = vdwg.mxu0
      %664 = vmatpush.bf16.msra.mxu0 %v633
      %665 = vmatpush.bf16.msra.mxu0 %v632
      %666 = vmatpush.bf16.msra.mxu0 %v631
      %667 = vmatpush.bf16.msra.mxu0 %v630
      %668 = vmatpush.bf16.msra.mxu0 %v629
      %669 = vmatpush.bf16.msra.mxu0 %v628
      %670 = vmatpush.bf16.msra.mxu0 %v627
      %671 = vmatpush.bf16.msra.mxu0 %v626
      %672 = vmatmul.bf16.gmra.mxu0 %v427
      %v673 = vpop.f32.mrf.mxu0
      %v674 = vadd.f32 %v660, %v673
      %v675 = vpop.f32.mrf.mxu0
      %v676 = vadd.f32 %v662, %v675
      %677 = vdwg.mxu0
      %v710 = vunpack.c.l.b16 %v386
      %v711 = vunpack.c.l.b16 %v387
      %v712 = vunpack.c.l.b16 %v388
      %v713 = vunpack.c.l.b16 %v389
      %v714 = vunpack.c.l.b16 %v390
      %v715 = vunpack.c.l.b16 %v391
      %v716 = vunpack.c.l.b16 %v392
      %v717 = vunpack.c.l.b16 %v393
      %v718 = vunpack.c.l.b16 %v394
      %v719 = vunpack.c.l.b16 %v395
      %v720 = vunpack.c.l.b16 %v396
      %v721 = vunpack.c.l.b16 %v397
      %v722 = vunpack.c.l.b16 %v398
      %v723 = vunpack.c.l.b16 %v399
      %v724 = vunpack.c.l.b16 %v400
      %v725 = vunpack.c.l.b16 %v401
      %v726 = vunpack.c.l.b16 %v402
      %v727 = vunpack.c.l.b16 %v403
      %v728 = vunpack.c.l.b16 %v404
      %v729 = vunpack.c.l.b16 %v405
      %v730 = vunpack.c.l.b16 %v406
      %v731 = vunpack.c.l.b16 %v407
      %v732 = vunpack.c.l.b16 %v408
      %v733 = vunpack.c.l.b16 %v409
      %v734 = vunpack.c.l.b16 %v410
      %v735 = vunpack.c.l.b16 %v411
      %v736 = vunpack.c.l.b16 %v412
      %v737 = vunpack.c.l.b16 %v413
      %v738 = vunpack.c.l.b16 %v414
      %v739 = vunpack.c.l.b16 %v415
      %v740 = vunpack.c.l.b16 %v416
      %v741 = vunpack.c.l.b16 %v417
      %v742 = vpack.c.b16 %v711, %v710
      %v743 = vpack.c.b16 %v713, %v712
      %v744 = vpack.c.b16 %v715, %v714
      %v745 = vpack.c.b16 %v717, %v716
      %v746 = vpack.c.b16 %v719, %v718
      %v747 = vpack.c.b16 %v721, %v720
      %v748 = vpack.c.b16 %v723, %v722
      %v749 = vpack.c.b16 %v725, %v724
      %v750 = vpack.c.b16 %v727, %v726
      %v751 = vpack.c.b16 %v729, %v728
      %v752 = vpack.c.b16 %v731, %v730
      %v753 = vpack.c.b16 %v733, %v732
      %v754 = vpack.c.b16 %v735, %v734
      %v755 = vpack.c.b16 %v737, %v736
      %v756 = vpack.c.b16 %v739, %v738
      %v757 = vpack.c.b16 %v741, %v740
      %774 = vmatpush.bf16.msra.mxu0 %v749
      %775 = vmatpush.bf16.msra.mxu0 %v748
      %776 = vmatpush.bf16.msra.mxu0 %v747
      %777 = vmatpush.bf16.msra.mxu0 %v746
      %778 = vmatpush.bf16.msra.mxu0 %v745
      %779 = vmatpush.bf16.msra.mxu0 %v744
      %780 = vmatpush.bf16.msra.mxu0 %v743
      %781 = vmatpush.bf16.msra.mxu0 %v742
      %782 = vmatmul.bf16.gmra.mxu0 %v426
      %v783 = vpop.f32.mrf.mxu0
      %v784 = vadd.f32 0.0, %v783
      %v785 = vpop.f32.mrf.mxu0
      %v786 = vadd.f32 0.0, %v785
      %787 = vdwg.mxu0
      %788 = vmatpush.bf16.msra.mxu0 %v757
      %789 = vmatpush.bf16.msra.mxu0 %v756
      %790 = vmatpush.bf16.msra.mxu0 %v755
      %791 = vmatpush.bf16.msra.mxu0 %v754
      %792 = vmatpush.bf16.msra.mxu0 %v753
      %793 = vmatpush.bf16.msra.mxu0 %v752
      %794 = vmatpush.bf16.msra.mxu0 %v751
      %795 = vmatpush.bf16.msra.mxu0 %v750
      %796 = vmatmul.bf16.gmra.mxu0 %v427
      %v797 = vpop.f32.mrf.mxu0
      %v798 = vadd.f32 %v784, %v797
      %v799 = vpop.f32.mrf.mxu0
      %v800 = vadd.f32 %v786, %v799
      %801 = vdwg.mxu0
      %v804 = vunpack.c.l.b16 %v318
      %v805 = vunpack.c.l.b16 %v319
      %v806 = vpack.c.b16 %v805, %v804
      %v824 = vunpack.c.l.b16 %v268
      %v825 = vunpack.c.l.b16 %v269
      %v826 = vunpack.c.l.b16 %v270
      %v827 = vunpack.c.l.b16 %v271
      %v828 = vunpack.c.l.b16 %v272
      %v829 = vunpack.c.l.b16 %v273
      %v830 = vunpack.c.l.b16 %v274
      %v831 = vunpack.c.l.b16 %v275
      %v832 = vunpack.c.l.b16 %v276
      %v833 = vunpack.c.l.b16 %v277
      %v834 = vunpack.c.l.b16 %v278
      %v835 = vunpack.c.l.b16 %v279
      %v836 = vunpack.c.l.b16 %v280
      %v837 = vunpack.c.l.b16 %v281
      %v838 = vunpack.c.l.b16 %v282
      %v839 = vunpack.c.l.b16 %v283
      %v840 = vpack.c.b16 %v825, %v824
      %v841 = vpack.c.b16 %v827, %v826
      %v842 = vpack.c.b16 %v829, %v828
      %v843 = vpack.c.b16 %v831, %v830
      %v844 = vpack.c.b16 %v833, %v832
      %v845 = vpack.c.b16 %v835, %v834
      %v846 = vpack.c.b16 %v837, %v836
      %v847 = vpack.c.b16 %v839, %v838
      %856 = vmatpush.bf16.msra.mxu0 %v847
      %857 = vmatpush.bf16.msra.mxu0 %v846
      %858 = vmatpush.bf16.msra.mxu0 %v845
      %859 = vmatpush.bf16.msra.mxu0 %v844
      %860 = vmatpush.bf16.msra.mxu0 %v843
      %861 = vmatpush.bf16.msra.mxu0 %v842
      %862 = vmatpush.bf16.msra.mxu0 %v841
      %863 = vmatpush.bf16.msra.mxu0 %v840
      %864 = vmatmul.bf16.gmra.mxu0 %v806
      %v865 = vpop.f32.mrf.mxu0
      %v866 = vadd.f32 %v550, %v865
      %v867 = vpop.f32.mrf.mxu0
      %v868 = vadd.f32 %v552, %v867
      %869 = vdwg.mxu0
      %v886 = vunpack.c.l.b16 %v285
      %v887 = vunpack.c.l.b16 %v286
      %v888 = vunpack.c.l.b16 %v287
      %v889 = vunpack.c.l.b16 %v288
      %v890 = vunpack.c.l.b16 %v289
      %v891 = vunpack.c.l.b16 %v290
      %v892 = vunpack.c.l.b16 %v291
      %v893 = vunpack.c.l.b16 %v292
      %v894 = vunpack.c.l.b16 %v293
      %v895 = vunpack.c.l.b16 %v294
      %v896 = vunpack.c.l.b16 %v295
      %v897 = vunpack.c.l.b16 %v296
      %v898 = vunpack.c.l.b16 %v297
      %v899 = vunpack.c.l.b16 %v298
      %v900 = vunpack.c.l.b16 %v299
      %v901 = vunpack.c.l.b16 %v300
      %v902 = vpack.c.b16 %v887, %v886
      %v903 = vpack.c.b16 %v889, %v888
      %v904 = vpack.c.b16 %v891, %v890
      %v905 = vpack.c.b16 %v893, %v892
      %v906 = vpack.c.b16 %v895, %v894
      %v907 = vpack.c.b16 %v897, %v896
      %v908 = vpack.c.b16 %v899, %v898
      %v909 = vpack.c.b16 %v901, %v900
      %918 = vmatpush.bf16.msra.mxu0 %v909
      %919 = vmatpush.bf16.msra.mxu0 %v908
      %920 = vmatpush.bf16.msra.mxu0 %v907
      %921 = vmatpush.bf16.msra.mxu0 %v906
      %922 = vmatpush.bf16.msra.mxu0 %v905
      %923 = vmatpush.bf16.msra.mxu0 %v904
      %924 = vmatpush.bf16.msra.mxu0 %v903
      %925 = vmatpush.bf16.msra.mxu0 %v902
      %926 = vmatmul.bf16.gmra.mxu0 %v806
      %v927 = vpop.f32.mrf.mxu0
      %v928 = vadd.f32 %v674, %v927
      %v929 = vpop.f32.mrf.mxu0
      %v930 = vadd.f32 %v676, %v929
      %931 = vdwg.mxu0
      %v948 = vunpack.c.l.b16 %v302
      %v949 = vunpack.c.l.b16 %v303
      %v950 = vunpack.c.l.b16 %v304
      %v951 = vunpack.c.l.b16 %v305
      %v952 = vunpack.c.l.b16 %v306
      %v953 = vunpack.c.l.b16 %v307
      %v954 = vunpack.c.l.b16 %v308
      %v955 = vunpack.c.l.b16 %v309
      %v956 = vunpack.c.l.b16 %v310
      %v957 = vunpack.c.l.b16 %v311
      %v958 = vunpack.c.l.b16 %v312
      %v959 = vunpack.c.l.b16 %v313
      %v960 = vunpack.c.l.b16 %v314
      %v961 = vunpack.c.l.b16 %v315
      %v962 = vunpack.c.l.b16 %v316
      %v963 = vunpack.c.l.b16 %v317
      %v964 = vpack.c.b16 %v949, %v948
      %v965 = vpack.c.b16 %v951, %v950
      %v966 = vpack.c.b16 %v953, %v952
      %v967 = vpack.c.b16 %v955, %v954
      %v968 = vpack.c.b16 %v957, %v956
      %v969 = vpack.c.b16 %v959, %v958
      %v970 = vpack.c.b16 %v961, %v960
      %v971 = vpack.c.b16 %v963, %v962
      %980 = vmatpush.bf16.msra.mxu0 %v971
      %981 = vmatpush.bf16.msra.mxu0 %v970
      %982 = vmatpush.bf16.msra.mxu0 %v969
      %983 = vmatpush.bf16.msra.mxu0 %v968
      %984 = vmatpush.bf16.msra.mxu0 %v967
      %985 = vmatpush.bf16.msra.mxu0 %v966
      %986 = vmatpush.bf16.msra.mxu0 %v965
      %987 = vmatpush.bf16.msra.mxu0 %v964
      %988 = vmatmul.bf16.gmra.mxu0 %v806
      %v989 = vpop.f32.mrf.mxu0
      %v990 = vadd.f32 %v798, %v989
      %v991 = vpop.f32.mrf.mxu0
      %v992 = vadd.f32 %v800, %v991
      %993 = vdwg.mxu0
      %v994 = vlaneseq
      %v995 = vshrl.u32 %v994, 7
      %v996 = vadd.s32 %v995, 8
      %v997 = vrot.slane %v866, 7
      %v998 = vrot.slane %v868, 7
      %vm999 = vcmp.lt.s32.totalorder %v995, 1
      %v1000 = vsel %vm999, %v997, %v998
      %v1001 = vsel %vm999, %v998, %v997
      %v1002 = vrot.slane %v990, 1
      %v1003 = vrot.slane %v992, 1
      %vm1004 = vcmp.lt.s32.totalorder %v995, 7
      %v1005 = vsel %vm1004, %v1002, %v1003
      %v1006 = vsel %vm1004, %v1003, %v1002
      %vm1007 = vcmp.eq.s32.totalorder %v995, 0
      %vm1008 = vcmp.eq.s32.totalorder %v996, 0
      %v1009 = vsel %vm1007, 0.0, %v1001
      %v1010 = vsel %vm1008, 0.0, %v1000
      %vm1011 = vcmp.eq.s32.totalorder %v995, 15
      %vm1012 = vcmp.eq.s32.totalorder %v996, 15
      %v1013 = vsel %vm1011, 0.0, %v1005
      %v1014 = vsel %vm1012, 0.0, %v1006
      %v1015 = vadd.f32 %v928, %v1009
      %v1016 = vadd.f32 %v930, %v1010
      %v1017 = vadd.f32 %v1015, %v1013
      %v1018 = vadd.f32 %v1016, %v1014
      %v1019 = vld [vmem:[%s4] sm:$0x1]
      %v1021 = vperm.slane %v1019, 0
      %v1023 = vadd.f32 %v1017, %v1021
      %v1024 = vadd.f32 %v1018, %v1021
      %v1025 = vmax.f32 %v1023, 0.0
      %v1026 = vmax.f32 %v1024, 0.0
      %v1027 = vpack.c.bf16 %v1025, %v1025
      %v1028 = vpack.c.bf16 %v1026, %v1026
      %1029 = vst [vmem:[%s266] sm:$0xf] %v1027
      %1030 = vst [vmem:[%s266 + $0x4] sm:$0xf] %v1028
      %s1031 = smul.u32 2, %s21
      %p1032 = scmp.lt.s32.totalorder %s20, 1
      %s1033 = scalar_select %p1032, %s20, 1
      %p1034 = scmp.lt.s32.totalorder %s1031, 1
      %s1035 = scalar_select %p1034, %s1031, 1
      %s1036 = smul.addr %s1033, 2
      %s1037 = sadd.s32 %s1035, %s1036
      %s1038 = smul.addr %s1037, 4
      %s1039 = scalar_lea.vmem %s5, %s1038
      // Predicated region
      $region41: #{unetplusplus_forward.9} parent=39 // pred_check
        %p1040 = pneg %p163
      $region42: #{unetplusplus_forward.9} parent=39 // pred_check_branch
        %1042 = sbr.rel (%p1040) target = $region44
      $region43: #{unetplusplus_forward.9} parent=39 // pred_region
        %s1043 = smul.u32 2, %s21
      $region44: #{unetplusplus_forward.9} parent=39 // pred_fallthru
        _
    $region40: #{unetplusplus_forward.9} parent=5 // pred_fallthru
      _
    %p1044 = scmp.le.s32.totalorder 2, %s11
    // Predicated region
    $region45: #{unetplusplus_forward.9} parent=5 // pred_check
      %p1045 = pneg %p1044
    $region46: #{unetplusplus_forward.9} parent=5 // pred_check_branch
      %1047 = sbr.rel (%p1045) target = $region48
    $region47: #{unetplusplus_forward.9} parent=5 // pred_region
      %s1048 = ssub.s32 %s11, 2
      // Predicated region
      $region49: #{unetplusplus_forward.9} parent=47 // pred_check
        %p1049 = pneg %p169
      $region50: #{unetplusplus_forward.9} parent=47 // pred_check_branch
        %1051 = sbr.rel (%p1049) target = $region52
      $region51: #{unetplusplus_forward.9} parent=47 // pred_region
        %s1052 = smul.u32 2, %s23
        %p1053 = scmp.lt.s32.totalorder %s22, 1
        %s1054 = scalar_select %p1053, %s22, 1
        %p1055 = scmp.lt.s32.totalorder %s1052, 1
        %s1056 = scalar_select %p1055, %s1052, 1
        %s1057 = smul.addr %s1054, 2
        %s1058 = sadd.s32 %s1056, %s1057
        %s1059 = smul.addr %s1058, 4
        %s1060 = scalar_lea.vmem %s5, %s1059
      $region52: #{unetplusplus_forward.9} parent=47 // pred_fallthru
        _
    $region48: #{unetplusplus_forward.9} parent=5 // pred_fallthru
      _
  $region6: #{unetplusplus_forward.9} parent=0 // loop_footer
    %s15 = sadd.s32 1, %s11
  $region7: #{unetplusplus_forward.9} parent=0 // loop_footer_branch
    %10 = sbr.rel target = $region3
  $region8: #{unetplusplus_forward.9} parent=0 // loop_exit
    _

// kernel: unetplusplus_forward.11
$region0: #{unetplusplus_forward.11}
  #allocation0 [shape = 'u32[]', space=smem, size = 0x4, offset = 0x4, fixed_abs, tag = 'smem constant byte address 0x4 - core index']
  #allocation1 [shape = 'u32[72,128]{1,0:T(1,128)}', space=vmem, size = 0x9000, scoped, tag = 'internal scratch']
  %s0 = inlined_call_operand.vmem [shape: bf16[2,16,128], index: 0, kind: input, shape index: {}]
  %s1 = inlined_call_operand.vmem [shape: bf16[2,16,128], index: 1, kind: input, shape index: {}]
  %s2 = inlined_call_operand.vmem [shape: bf16[2,16,256], index: 2, kind: input, shape index: {}]
  %s3 = inlined_call_operand.vmem [shape: bf16[3,128,128], index: 3, kind: input, shape index: {}]
  %s4 = inlined_call_operand.vmem [shape: bf16[3,128,128], index: 4, kind: input, shape index: {}]
  %s5 = inlined_call_operand.vmem [shape: bf16[3,256,128], index: 5, kind: input, shape index: {}]
  %s6 = inlined_call_operand.vmem [shape: f32[1,128], index: 6, kind: input, shape index: {}]
  %s7 = inlined_call_operand.vmem [shape: bf16[128,128], index: 7, kind: input, shape index: {}]
  %s8 = inlined_call_operand.vmem [shape: f32[1,128], index: 8, kind: input, shape index: {}]
  %s9 = inlined_call_operand.vmem [shape: bf16[2,16,128], index: 9, kind: output, shape index: {0}]
  %s10 = inlined_call_operand.vmem [shape: f32[2,16,128], index: 10, kind: output, shape index: {1}]
  %11 = xla_tuple %s9, %s10
  %s12 = sld [smem:[#allocation0]]
  $region77: #{unetplusplus_forward.11} parent=0
    _
  %s14 = ssub.s32 1, %s12
  %s15 = scalar_select 0, %s14, %s12
  loop: start=0, step=1, limit=4
  $region2: #{unetplusplus_forward.11} parent=0 // loop_pre_header
    _
  $region3: #{unetplusplus_forward.11} parent=0 // loop_header
    %s17 = sphi 0, %s21
    %p18 = scmp.ge.s32.totalorder %s17, 4
    %s24 = sphi 0, %s36
    %s25 = sphi 0, %s32
    %s26 = sphi 0, %s24
    %s27 = sphi 0, %s25
    %s28 = sphi 0, %s26
    %s29 = sphi 0, %s27
    %s39 = sphi 0, %s41
    %s42 = sphi 0, %s39
    %s43 = sphi 0, %s42
    %s59 = sphi 0, %s43
    %s65 = sphi 0, %s67
    %s68 = sphi 0, %s65
    %s69 = sphi 0, %s68
    %s85 = sphi 0, %s69
    %s91 = sphi 0, %s93
    %s94 = sphi 0, %s91
    %s95 = sphi 0, %s94
    %s111 = sphi 0, %s95
    %s115 = sphi 0, %s115
    %s117 = sphi 0, %s115
    %s118 = sphi 0, %s117
    %s132 = sphi 0, %s118
    %s136 = sphi 0, %s136
    %s138 = sphi 0, %s136
    %s139 = sphi 0, %s138
    %s153 = sphi 0, %s139
    %s157 = sphi 0, %s157
    %s159 = sphi 0, %s157
    %s160 = sphi 0, %s159
    %s174 = sphi 0, %s160
    %s178 = sphi 0, %s178
    %s180 = sphi 0, %s178
    %s181 = sphi 0, %s180
    %s195 = sphi 0, %s181
    %s199 = sphi 0, %s199
    %s201 = sphi 0, %s199
    %s202 = sphi 0, %s201
    %s216 = sphi 0, %s202
    %s220 = sphi 0, %s220
    %s222 = sphi 0, %s220
    %s223 = sphi 0, %s222
    %s237 = sphi 0, %s223
    %s245 = sphi 0, %s247
    %s248 = sphi 0, %s245
    %s249 = sphi 0, %s248
    %s265 = sphi 0, %s249
    %s273 = sphi 0, %s275
    %s276 = sphi 0, %s273
    %s277 = sphi 0, %s276
    %s293 = sphi 0, %s277
  $region4: #{unetplusplus_forward.11} parent=0 // loop_header_branch
    %20 = sbr.rel (%p18) target = $region8
  $region5: #{unetplusplus_forward.11} parent=0 // loop_body
    %s22 = ssub.s32 %s17, 1
    %s23 = ssub.s32 %s17, 2
    %s30 = sadd.s32 1, %s25
    %p31 = scmp.ge.s32.totalorder %s30, 1
    %s32 = scalar_select %p31, 0, %s30
    %s33 = sadd.s32 1, %s24
    %s34 = scalar_select %p31, %s33, %s24
    %p35 = scmp.ge.s32.totalorder %s34, 2
    %s36 = scalar_select %p35, 0, %s34
    %s37 = ssub.s32 %s24, %s36
    %p38 = scmp.eq.s32.totalorder %s37, 0
    %s40 = sadd.s32 %s39, 1
    %s41 = scalar_select %p38, %s39, %s40
    %p44 = pneg %p38
    %p45 = scmp.eq.s32.totalorder %s17, 1
    %p46 = por %p44, %p45
    %p47 = scmp.ne.s32.totalorder %s39, %s42
    %p48 = scmp.eq.s32.totalorder %s17, 0
    %p49 = por %p47, %p48
    %p50 = scmp.ne.s32.totalorder %s39, %s42
    %p51 = scmp.eq.s32.totalorder %s22, 1
    %p52 = por %p50, %p51
    %p53 = scmp.ne.s32.totalorder %s42, %s43
    %p54 = scmp.eq.s32.totalorder %s22, 0
    %p55 = por %p53, %p54
    %p56 = scmp.ne.s32.totalorder %s42, %s43
    %p57 = scmp.eq.s32.totalorder %s23, 1
    %p58 = por %p56, %p57
    %p60 = scmp.ne.s32.totalorder %s43, %s59
    %p61 = scmp.eq.s32.totalorder %s23, 0
    %p62 = por %p60, %p61
    %s63 = ssub.s32 %s24, %s36
    %p64 = scmp.eq.s32.totalorder %s63, 0
    %s66 = sadd.s32 %s65, 1
    %s67 = scalar_select %p64, %s65, %s66
    %p70 = pneg %p64
    %p71 = scmp.eq.s32.totalorder %s17, 1
    %p72 = por %p70, %p71
    %p73 = scmp.ne.s32.totalorder %s65, %s68
    %p74 = scmp.eq.s32.totalorder %s17, 0
    %p75 = por %p73, %p74
    %p76 = scmp.ne.s32.totalorder %s65, %s68
    %p77 = scmp.eq.s32.totalorder %s22, 1
    %p78 = por %p76, %p77
    %p79 = scmp.ne.s32.totalorder %s68, %s69
    %p80 = scmp.eq.s32.totalorder %s22, 0
    %p81 = por %p79, %p80
    %p82 = scmp.ne.s32.totalorder %s68, %s69
    %p83 = scmp.eq.s32.totalorder %s23, 1
    %p84 = por %p82, %p83
    %p86 = scmp.ne.s32.totalorder %s69, %s85
    %p87 = scmp.eq.s32.totalorder %s23, 0
    %p88 = por %p86, %p87
    %s89 = ssub.s32 %s24, %s36
    %p90 = scmp.eq.s32.totalorder %s89, 0
    %s92 = sadd.s32 %s91, 1
    %s93 = scalar_select %p90, %s91, %s92
    %p96 = pneg %p90
    %p97 = scmp.eq.s32.totalorder %s17, 1
    %p98 = por %p96, %p97
    %p99 = scmp.ne.s32.totalorder %s91, %s94
    %p100 = scmp.eq.s32.totalorder %s17, 0
    %p101 = por %p99, %p100
    %p102 = scmp.ne.s32.totalorder %s91, %s94
    %p103 = scmp.eq.s32.totalorder %s22, 1
    %p104 = por %p102, %p103
    %p105 = scmp.ne.s32.totalorder %s94, %s95
    %p106 = scmp.eq.s32.totalorder %s22, 0
    %p107 = por %p105, %p106
    %p108 = scmp.ne.s32.totalorder %s94, %s95
    %p109 = scmp.eq.s32.totalorder %s23, 1
    %p110 = por %p108, %p109
    %p112 = scmp.ne.s32.totalorder %s95, %s111
    %p113 = scmp.eq.s32.totalorder %s23, 0
    %p114 = por %p112, %p113
    %s116 = sadd.s32 %s115, 1
    %p119 = scmp.eq.s32.totalorder %s17, 1
    %p120 = scmp.ne.s32.totalorder %s115, %s117
    %p121 = scmp.eq.s32.totalorder %s17, 0
    %p122 = por %p120, %p121
    %p123 = scmp.ne.s32.totalorder %s115, %s117
    %p124 = scmp.eq.s32.totalorder %s22, 1
    %p125 = por %p123, %p124
    %p126 = scmp.ne.s32.totalorder %s117, %s118
    %p127 = scmp.eq.s32.totalorder %s22, 0
    %p128 = por %p126, %p127
    %p129 = scmp.ne.s32.totalorder %s117, %s118
    %p130 = scmp.eq.s32.totalorder %s23, 1
    %p131 = por %p129, %p130
    %p133 = scmp.ne.s32.totalorder %s118, %s132
    %p134 = scmp.eq.s32.totalorder %s23, 0
    %p135 = por %p133, %p134
    %s137 = sadd.s32 %s136, 1
    %p140 = scmp.eq.s32.totalorder %s17, 1
    %p141 = scmp.ne.s32.totalorder %s136, %s138
    %p142 = scmp.eq.s32.totalorder %s17, 0
    %p143 = por %p141, %p142
    %p144 = scmp.ne.s32.totalorder %s136, %s138
    %p145 = scmp.eq.s32.totalorder %s22, 1
    %p146 = por %p144, %p145
    %p147 = scmp.ne.s32.totalorder %s138, %s139
    %p148 = scmp.eq.s32.totalorder %s22, 0
    %p149 = por %p147, %p148
    %p150 = scmp.ne.s32.totalorder %s138, %s139
    %p151 = scmp.eq.s32.totalorder %s23, 1
    %p152 = por %p150, %p151
    %p154 = scmp.ne.s32.totalorder %s139, %s153
    %p155 = scmp.eq.s32.totalorder %s23, 0
    %p156 = por %p154, %p155
    %s158 = sadd.s32 %s157, 1
    %p161 = scmp.eq.s32.totalorder %s17, 1
    %p162 = scmp.ne.s32.totalorder %s157, %s159
    %p163 = scmp.eq.s32.totalorder %s17, 0
    %p164 = por %p162, %p163
    %p165 = scmp.ne.s32.totalorder %s157, %s159
    %p166 = scmp.eq.s32.totalorder %s22, 1
    %p167 = por %p165, %p166
    %p168 = scmp.ne.s32.totalorder %s159, %s160
    %p169 = scmp.eq.s32.totalorder %s22, 0
    %p170 = por %p168, %p169
    %p171 = scmp.ne.s32.totalorder %s159, %s160
    %p172 = scmp.eq.s32.totalorder %s23, 1
    %p173 = por %p171, %p172
    %p175 = scmp.ne.s32.totalorder %s160, %s174
    %p176 = scmp.eq.s32.totalorder %s23, 0
    %p177 = por %p175, %p176
    %s179 = sadd.s32 %s178, 1
    %p182 = scmp.eq.s32.totalorder %s17, 1
    %p183 = scmp.ne.s32.totalorder %s178, %s180
    %p184 = scmp.eq.s32.totalorder %s17, 0
    %p185 = por %p183, %p184
    %p186 = scmp.ne.s32.totalorder %s178, %s180
    %p187 = scmp.eq.s32.totalorder %s22, 1
    %p188 = por %p186, %p187
    %p189 = scmp.ne.s32.totalorder %s180, %s181
    %p190 = scmp.eq.s32.totalorder %s22, 0
    %p191 = por %p189, %p190
    %p192 = scmp.ne.s32.totalorder %s180, %s181
    %p193 = scmp.eq.s32.totalorder %s23, 1
    %p194 = por %p192, %p193
    %p196 = scmp.ne.s32.totalorder %s181, %s195
    %p197 = scmp.eq.s32.totalorder %s23, 0
    %p198 = por %p196, %p197
    %s200 = sadd.s32 %s199, 1
    %p203 = scmp.eq.s32.totalorder %s17, 1
    %p204 = scmp.ne.s32.totalorder %s199, %s201
    %p205 = scmp.eq.s32.totalorder %s17, 0
    %p206 = por %p204, %p205
    %p207 = scmp.ne.s32.totalorder %s199, %s201
    %p208 = scmp.eq.s32.totalorder %s22, 1
    %p209 = por %p207, %p208
    %p210 = scmp.ne.s32.totalorder %s201, %s202
    %p211 = scmp.eq.s32.totalorder %s22, 0
    %p212 = por %p210, %p211
    %p213 = scmp.ne.s32.totalorder %s201, %s202
    %p214 = scmp.eq.s32.totalorder %s23, 1
    %p215 = por %p213, %p214
    %p217 = scmp.ne.s32.totalorder %s202, %s216
    %p218 = scmp.eq.s32.totalorder %s23, 0
    %p219 = por %p217, %p218
    %s221 = sadd.s32 %s220, 1
    %p224 = scmp.eq.s32.totalorder %s17, 1
    %p225 = scmp.ne.s32.totalorder %s220, %s222
    %p226 = scmp.eq.s32.totalorder %s17, 0
    %p227 = por %p225, %p226
    %p228 = scmp.ne.s32.totalorder %s220, %s222
    %p229 = scmp.eq.s32.totalorder %s22, 1
    %p230 = por %p228, %p229
    %p231 = scmp.ne.s32.totalorder %s222, %s223
    %p232 = scmp.eq.s32.totalorder %s22, 0
    %p233 = por %p231, %p232
    %p234 = scmp.ne.s32.totalorder %s222, %s223
    %p235 = scmp.eq.s32.totalorder %s23, 1
    %p236 = por %p234, %p235
    %p238 = scmp.ne.s32.totalorder %s223, %s237
    %p239 = scmp.eq.s32.totalorder %s23, 0
    %p240 = por %p238, %p239
    %s241 = ssub.s32 %s24, %s36
    %s242 = ssub.s32 %s25, %s32
    %s243 = sor.u32 %s241, %s242
    %p244 = scmp.eq.s32.totalorder %s243, 0
    %s246 = sadd.s32 %s245, 1
    %s247 = scalar_select %p244, %s245, %s246
    %p250 = pneg %p244
    %p251 = scmp.eq.s32.totalorder %s17, 1
    %p252 = por %p250, %p251
    %p253 = scmp.ne.s32.totalorder %s245, %s248
    %p254 = scmp.eq.s32.totalorder %s17, 0
    %p255 = por %p253, %p254
    %p256 = scmp.ne.s32.totalorder %s245, %s248
    %p257 = scmp.eq.s32.totalorder %s22, 1
    %p258 = por %p256, %p257
    %p259 = scmp.ne.s32.totalorder %s248, %s249
    %p260 = scmp.eq.s32.totalorder %s22, 0
    %p261 = por %p259, %p260
    %p262 = scmp.ne.s32.totalorder %s248, %s249
    %p263 = scmp.eq.s32.totalorder %s23, 1
    %p264 = por %p262, %p263
    %p266 = scmp.ne.s32.totalorder %s249, %s265
    %p267 = scmp.eq.s32.totalorder %s23, 0
    %p268 = por %p266, %p267
    %s269 = ssub.s32 %s24, %s36
    %s270 = ssub.s32 %s25, %s32
    %s271 = sor.u32 %s269, %s270
    %p272 = scmp.eq.s32.totalorder %s271, 0
    %s274 = sadd.s32 %s273, 1
    %s275 = scalar_select %p272, %s273, %s274
    %p278 = pneg %p272
    %p279 = scmp.eq.s32.totalorder %s17, 1
    %p280 = por %p278, %p279
    %p281 = scmp.ne.s32.totalorder %s273, %s276
    %p282 = scmp.eq.s32.totalorder %s17, 0
    %p283 = por %p281, %p282
    %p284 = scmp.ne.s32.totalorder %s273, %s276
    %p285 = scmp.eq.s32.totalorder %s22, 1
    %p286 = por %p284, %p285
    %p287 = scmp.ne.s32.totalorder %s276, %s277
    %p288 = scmp.eq.s32.totalorder %s22, 0
    %p289 = por %p287, %p288
    %p290 = scmp.ne.s32.totalorder %s276, %s277
    %p291 = scmp.eq.s32.totalorder %s23, 1
    %p292 = por %p290, %p291
    %p294 = scmp.ne.s32.totalorder %s277, %s293
    %p295 = scmp.eq.s32.totalorder %s23, 0
    %p296 = por %p294, %p295
    %p297 = scmp.le.s32.totalorder 1, %s17
    %p298 = scmp.lt.s32.totalorder %s17, 3
    %p299 = pnand %p297, %p298
    %p300 = pneg %p299
    // Predicated region
    $region9: #{unetplusplus_forward.11} parent=5 // pred_check
      _
    $region10: #{unetplusplus_forward.11} parent=5 // pred_check_branch
      %302 = sbr.rel (%p299) target = $region12
    $region11: #{unetplusplus_forward.11} parent=5 // pred_region
      %s303 = ssub.s32 %s17, 1
      // Predicated region
      $region13: #{unetplusplus_forward.11} parent=11 // pred_check
        %p304 = pneg %p128
      $region14: #{unetplusplus_forward.11} parent=11 // pred_check_branch
        %306 = sbr.rel (%p304) target = $region16
      $region15: #{unetplusplus_forward.11} parent=11 // pred_region
        _
      $region16: #{unetplusplus_forward.11} parent=11 // pred_fallthru
        _
      // Predicated region
      $region17: #{unetplusplus_forward.11} parent=11 // pred_check
        %p307 = pneg %p149
      $region18: #{unetplusplus_forward.11} parent=11 // pred_check_branch
        %309 = sbr.rel (%p307) target = $region20
      $region19: #{unetplusplus_forward.11} parent=11 // pred_region
        _
      $region20: #{unetplusplus_forward.11} parent=11 // pred_fallthru
        _
      // Predicated region
      $region21: #{unetplusplus_forward.11} parent=11 // pred_check
        %p310 = pneg %p170
      $region22: #{unetplusplus_forward.11} parent=11 // pred_check_branch
        %312 = sbr.rel (%p310) target = $region24
      $region23: #{unetplusplus_forward.11} parent=11 // pred_region
        _
      $region24: #{unetplusplus_forward.11} parent=11 // pred_fallthru
        _
      // Predicated region
      $region25: #{unetplusplus_forward.11} parent=11 // pred_check
        %p313 = pneg %p191
      $region26: #{unetplusplus_forward.11} parent=11 // pred_check_branch
        %315 = sbr.rel (%p313) target = $region28
      $region27: #{unetplusplus_forward.11} parent=11 // pred_region
        _
      $region28: #{unetplusplus_forward.11} parent=11 // pred_fallthru
        _
      // Predicated region
      $region29: #{unetplusplus_forward.11} parent=11 // pred_check
        %p316 = pneg %p212
      $region30: #{unetplusplus_forward.11} parent=11 // pred_check_branch
        %318 = sbr.rel (%p316) target = $region32
      $region31: #{unetplusplus_forward.11} parent=11 // pred_region
        _
      $region32: #{unetplusplus_forward.11} parent=11 // pred_fallthru
        _
      // Predicated region
      $region33: #{unetplusplus_forward.11} parent=11 // pred_check
        %p319 = pneg %p233
      $region34: #{unetplusplus_forward.11} parent=11 // pred_check_branch
        %321 = sbr.rel (%p319) target = $region36
      $region35: #{unetplusplus_forward.11} parent=11 // pred_region
        _
      $region36: #{unetplusplus_forward.11} parent=11 // pred_fallthru
        _
    $region12: #{unetplusplus_forward.11} parent=5 // pred_fallthru
      _
    %p322 = scmp.lt.s32.totalorder %s17, 2
    // Predicated region
    $region37: #{unetplusplus_forward.11} parent=5 // pred_check
      %p323 = pneg %p322
    $region38: #{unetplusplus_forward.11} parent=5 // pred_check_branch
      %325 = sbr.rel (%p323) target = $region40
    $region39: #{unetplusplus_forward.11} parent=5 // pred_region
      // Predicated region
      $region41: #{unetplusplus_forward.11} parent=39 // pred_check
        %p326 = pneg %p49
      $region42: #{unetplusplus_forward.11} parent=39 // pred_check_branch
        %328 = sbr.rel (%p326) target = $region44
      $region43: #{unetplusplus_forward.11} parent=39 // pred_region
        %p329 = scmp.lt.s32.totalorder %s24, 1
        %s330 = scalar_select %p329, %s24, 1
        %s331 = smul.addr %s330, 2
        %s332 = smul.addr %s331, 4
        %s333 = scalar_lea.vmem %s0, %s332
      $region44: #{unetplusplus_forward.11} parent=39 // pred_fallthru
        _
      // Predicated region
      $region45: #{unetplusplus_forward.11} parent=39 // pred_check
        %p334 = pneg %p75
      $region46: #{unetplusplus_forward.11} parent=39 // pred_check_branch
        %336 = sbr.rel (%p334) target = $region48
      $region47: #{unetplusplus_forward.11} parent=39 // pred_region
        %p337 = scmp.lt.s32.totalorder %s24, 1
        %s338 = scalar_select %p337, %s24, 1
        %s339 = smul.addr %s338, 2
        %s340 = smul.addr %s339, 4
        %s341 = scalar_lea.vmem %s1, %s340
      $region48: #{unetplusplus_forward.11} parent=39 // pred_fallthru
        _
      // Predicated region
      $region49: #{unetplusplus_forward.11} parent=39 // pred_check
        %p342 = pneg %p101
      $region50: #{unetplusplus_forward.11} parent=39 // pred_check_branch
        %344 = sbr.rel (%p342) target = $region52
      $region51: #{unetplusplus_forward.11} parent=39 // pred_region
        %p345 = scmp.lt.s32.totalorder %s24, 1
        %s346 = scalar_select %p345, %s24, 1
        %s347 = smul.addr %s346, 4
        %s348 = smul.addr %s347, 4
        %s349 = scalar_lea.vmem %s2, %s348
      $region52: #{unetplusplus_forward.11} parent=39 // pred_fallthru
        _
    $region40: #{unetplusplus_forward.11} parent=5 // pred_fallthru
      _
    %p350 = scmp.le.s32.totalorder 1, %s17
    %p351 = scmp.lt.s32.totalorder %s17, 3
    %p352 = pnand %p350, %p351
    %p353 = pneg %p352
    // Predicated region
    $region53: #{unetplusplus_forward.11} parent=5 // pred_check
      _
    $region54: #{unetplusplus_forward.11} parent=5 // pred_check_branch
      %355 = sbr.rel (%p352) target = $region56
    $region55: #{unetplusplus_forward.11} parent=5 // pred_region
      %s356 = ssub.s32 %s17, 1
      %p357 = scmp.lt.s32.totalorder %s26, 1
      %s358 = scalar_select %p357, %s26, 1
      %s359 = smul.addr %s358, 2
      %s360 = smul.addr %s359, 4
      %s361 = scalar_lea.vmem %s0, %s360
      %p362 = pneg %p55
      %p363 = pneg %p52
      %p364 = scmp.lt.s32.totalorder %s26, 1
      %s365 = scalar_select %p364, %s26, 1
      %s366 = smul.addr %s365, 2
      %s367 = smul.addr %s366, 4
      %s368 = scalar_lea.vmem %s1, %s367
      %p369 = pneg %p81
      %p370 = pneg %p78
      %p371 = scmp.lt.s32.totalorder %s26, 1
      %s372 = scalar_select %p371, %s26, 1
      %s373 = smul.addr %s372, 4
      %s374 = smul.addr %s373, 4
      %s375 = scalar_lea.vmem %s2, %s374
      %p376 = pneg %p107
      %p377 = pneg %p104
      %p378 = pneg %p128
      %p379 = pneg %p125
      %p380 = pneg %p149
      %p381 = pneg %p146
      %p382 = pneg %p170
      %p383 = pneg %p167
      %p384 = pneg %p191
      %p385 = pneg %p188
      %p386 = pneg %p212
      %p387 = pneg %p209
      %p388 = pneg %p233
      %p389 = pneg %p230
      %p390 = pneg %p261
      %p391 = pneg %p258
      %s392 = smul.u32 2, %s27
      %p393 = scmp.lt.s32.totalorder %s26, 1
      %s394 = scalar_select %p393, %s26, 1
      %p395 = scmp.lt.s32.totalorder %s392, 1
      %s396 = scalar_select %p395, %s392, 1
      %s397 = smul.addr %s394, 2
      %s398 = sadd.s32 %s396, %s397
      %s399 = smul.addr %s398, 4
      %s400 = scalar_lea.vmem %s9, %s399
      %p401 = pneg %p289
      %p402 = pneg %p286
      %s403 = smul.u32 2, %s27
      %p404 = scmp.lt.s32.totalorder %s26, 1
      %s405 = scalar_select %p404, %s26, 1
      %p406 = scmp.lt.s32.totalorder %s403, 1
      %s407 = scalar_select %p406, %s403, 1
      %s408 = smul.addr %s405, 2
      %s409 = sadd.s32 %s407, %s408
      %s410 = smul.addr %s409, 8
      %s411 = scalar_lea.vmem %s10, %s410
      %p412 = scmp.lt.s32.totalorder %s26, 1
      %s413 = scalar_select %p412, %s26, 1
      %s414 = smul.addr %s413, 2
      %s415 = smul.addr %s414, 4
      %s416 = scalar_lea.vmem %s0, %s415
      %p417 = scmp.lt.s32.totalorder %s26, 1
      %s418 = scalar_select %p417, %s26, 1
      %s419 = smul.addr %s418, 2
      %s420 = smul.addr %s419, 4
      %s421 = scalar_lea.vmem %s1, %s420
      %p422 = scmp.lt.s32.totalorder %s26, 1
      %s423 = scalar_select %p422, %s26, 1
      %s424 = smul.addr %s423, 4
      %s425 = smul.addr %s424, 4
      %s426 = scalar_lea.vmem %s2, %s425
      %s427 = smul.u32 2, %s27
      %p428 = scmp.lt.s32.totalorder %s26, 1
      %s429 = scalar_select %p428, %s26, 1
      %p430 = scmp.lt.s32.totalorder %s427, 1
      %s431 = scalar_select %p430, %s427, 1
      %s432 = smul.addr %s429, 2
      %s433 = sadd.s32 %s431, %s432
      %s434 = smul.addr %s433, 4
      %s435 = scalar_lea.vmem %s9, %s434
      %s436 = smul.u32 2, %s27
      %s437 = smul.u32 2, %s27
      %p438 = scmp.lt.s32.totalorder %s26, 1
      %s439 = scalar_select %p438, %s26, 1
      %p440 = scmp.lt.s32.totalorder %s437, 1
      %s441 = scalar_select %p440, %s437, 1
      %s442 = smul.addr %s439, 2
      %s443 = sadd.s32 %s441, %s442
      %s444 = smul.addr %s443, 8
      %s445 = scalar_lea.vmem %s10, %s444
      %s446 = smul.u32 2, %s27
      %v447 = vld [vmem:[%s3] sm:$0xf]
      %v448 = vld [vmem:[%s3 + $0x4] sm:$0xf]
      %v449 = vld [vmem:[%s3 + $0x8] sm:$0xf]
      %v450 = vld [vmem:[%s3 + $0xc] sm:$0xf]
      %v451 = vld [vmem:[%s3 + $0x10] sm:$0xf]
      %v452 = vld [vmem:[%s3 + $0x14] sm:$0xf]
      %v453 = vld [vmem:[%s3 + $0x18] sm:$0xf]
      %v454 = vld [vmem:[%s3 + $0x1c] sm:$0xf]
      %v455 = vld [vmem:[%s3 + $0x20] sm:$0xf]
      %v456 = vld [vmem:[%s3 + $0x24] sm:$0xf]
      %v457 = vld [vmem:[%s3 + $0x28] sm:$0xf]
      %v458 = vld [vmem:[%s3 + $0x2c] sm:$0xf]
      %v459 = vld [vmem:[%s3 + $0x30] sm:$0xf]
      %v460 = vld [vmem:[%s3 + $0x34] sm:$0xf]
      %v461 = vld [vmem:[%s3 + $0x38] sm:$0xf]
      %v462 = vld [vmem:[%s3 + $0x3c] sm:$0xf]
      %s463 = scalar_lea.vmem %s3, 64
      %v464 = vld [vmem:[%s463] sm:$0xf]
      %v465 = vld [vmem:[%s463 + $0x4] sm:$0xf]
      %v466 = vld [vmem:[%s463 + $0x8] sm:$0xf]
      %v467 = vld [vmem:[%s463 + $0xc] sm:$0xf]
      %v468 = vld [vmem:[%s463 + $0x10] sm:$0xf]
      %v469 = vld [vmem:[%s463 + $0x14] sm:$0xf]
      %v470 = vld [vmem:[%s463 + $0x18] sm:$0xf]
      %v471 = vld [vmem:[%s463 + $0x1c] sm:$0xf]
      %v472 = vld [vmem:[%s463 + $0x20] sm:$0xf]
      %v473 = vld [vmem:[%s463 + $0x24] sm:$0xf]
      %v474 = vld [vmem:[%s463 + $0x28] sm:$0xf]
      %v475 = vld [vmem:[%s463 + $0x2c] sm:$0xf]
      %v476 = vld [vmem:[%s463 + $0x30] sm:$0xf]
      %v477 = vld [vmem:[%s463 + $0x34] sm:$0xf]
      %v478 = vld [vmem:[%s463 + $0x38] sm:$0xf]
      %v479 = vld [vmem:[%s463 + $0x3c] sm:$0xf]
      %s480 = scalar_lea.vmem %s3, 128
      %v481 = vld [vmem:[%s480] sm:$0xf]
      %v482 = vld [vmem:[%s480 + $0x4] sm:$0xf]
      %v483 = vld [vmem:[%s480 + $0x8] sm:$0xf]
      %v484 = vld [vmem:[%s480 + $0xc] sm:$0xf]
      %v485 = vld [vmem:[%s480 + $0x10] sm:$0xf]
      %v486 = vld [vmem:[%s480 + $0x14] sm:$0xf]
      %v487 = vld [vmem:[%s480 + $0x18] sm:$0xf]
      %v488 = vld [vmem:[%s480 + $0x1c] sm:$0xf]
      %v489 = vld [vmem:[%s480 + $0x20] sm:$0xf]
      %v490 = vld [vmem:[%s480 + $0x24] sm:$0xf]
      %v491 = vld [vmem:[%s480 + $0x28] sm:$0xf]
      %v492 = vld [vmem:[%s480 + $0x2c] sm:$0xf]
      %v493 = vld [vmem:[%s480 + $0x30] sm:$0xf]
      %v494 = vld [vmem:[%s480 + $0x34] sm:$0xf]
      %v495 = vld [vmem:[%s480 + $0x38] sm:$0xf]
      %v496 = vld [vmem:[%s480 + $0x3c] sm:$0xf]
      %v497 = vld [vmem:[%s416] sm:$0xf]
      %v498 = vld [vmem:[%s416 + $0x4] sm:$0xf]
      %v499 = vld [vmem:[%s4] sm:$0xf]
      %v500 = vld [vmem:[%s4 + $0x4] sm:$0xf]
      %v501 = vld [vmem:[%s4 + $0x8] sm:$0xf]
      %v502 = vld [vmem:[%s4 + $0xc] sm:$0xf]
      %v503 = vld [vmem:[%s4 + $0x10] sm:$0xf]
      %v504 = vld [vmem:[%s4 + $0x14] sm:$0xf]
      %v505 = vld [vmem:[%s4 + $0x18] sm:$0xf]
      %v506 = vld [vmem:[%s4 + $0x1c] sm:$0xf]
      %v507 = vld [vmem:[%s4 + $0x20] sm:$0xf]
      %v508 = vld [vmem:[%s4 + $0x24] sm:$0xf]
      %v509 = vld [vmem:[%s4 + $0x28] sm:$0xf]
      %v510 = vld [vmem:[%s4 + $0x2c] sm:$0xf]
      %v511 = vld [vmem:[%s4 + $0x30] sm:$0xf]
      %v512 = vld [vmem:[%s4 + $0x34] sm:$0xf]
      %v513 = vld [vmem:[%s4 + $0x38] sm:$0xf]
      %v514 = vld [vmem:[%s4 + $0x3c] sm:$0xf]
      %s515 = scalar_lea.vmem %s4, 64
      %v516 = vld [vmem:[%s515] sm:$0xf]
      %v517 = vld [vmem:[%s515 + $0x4] sm:$0xf]
      %v518 = vld [vmem:[%s515 + $0x8] sm:$0xf]
      %v519 = vld [vmem:[%s515 + $0xc] sm:$0xf]
      %v520 = vld [vmem:[%s515 + $0x10] sm:$0xf]
      %v521 = vld [vmem:[%s515 + $0x14] sm:$0xf]
      %v522 = vld [vmem:[%s515 + $0x18] sm:$0xf]
      %v523 = vld [vmem:[%s515 + $0x1c] sm:$0xf]
      %v524 = vld [vmem:[%s515 + $0x20] sm:$0xf]
      %v525 = vld [vmem:[%s515 + $0x24] sm:$0xf]
      %v526 = vld [vmem:[%s515 + $0x28] sm:$0xf]
      %v527 = vld [vmem:[%s515 + $0x2c] sm:$0xf]
      %v528 = vld [vmem:[%s515 + $0x30] sm:$0xf]
      %v529 = vld [vmem:[%s515 + $0x34] sm:$0xf]
      %v530 = vld [vmem:[%s515 + $0x38] sm:$0xf]
      %v531 = vld [vmem:[%s515 + $0x3c] sm:$0xf]
      %s532 = scalar_lea.vmem %s4, 128
      %v533 = vld [vmem:[%s532] sm:$0xf]
      %v534 = vld [vmem:[%s532 + $0x4] sm:$0xf]
      %v535 = vld [vmem:[%s532 + $0x8] sm:$0xf]
      %v536 = vld [vmem:[%s532 + $0xc] sm:$0xf]
      %v537 = vld [vmem:[%s532 + $0x10] sm:$0xf]
      %v538 = vld [vmem:[%s532 + $0x14] sm:$0xf]
      %v539 = vld [vmem:[%s532 + $0x18] sm:$0xf]
      %v540 = vld [vmem:[%s532 + $0x1c] sm:$0xf]
      %v541 = vld [vmem:[%s532 + $0x20] sm:$0xf]
      %v542 = vld [vmem:[%s532 + $0x24] sm:$0xf]
      %v543 = vld [vmem:[%s532 + $0x28] sm:$0xf]
      %v544 = vld [vmem:[%s532 + $0x2c] sm:$0xf]
      %v545 = vld [vmem:[%s532 + $0x30] sm:$0xf]
      %v546 = vld [vmem:[%s532 + $0x34] sm:$0xf]
      %v547 = vld [vmem:[%s532 + $0x38] sm:$0xf]
      %v548 = vld [vmem:[%s532 + $0x3c] sm:$0xf]
      %v549 = vld [vmem:[%s421] sm:$0xf]
      %v550 = vld [vmem:[%s421 + $0x4] sm:$0xf]
      %v553 = vunpack.c.l.b16 %v549
      %v554 = vunpack.c.l.b16 %v550
      %v555 = vpack.c.b16 %v554, %v553
      %v573 = vunpack.c.l.b16 %v499
      %v574 = vunpack.c.l.b16 %v500
      %v575 = vunpack.c.l.b16 %v501
      %v576 = vunpack.c.l.b16 %v502
      %v577 = vunpack.c.l.b16 %v503
      %v578 = vunpack.c.l.b16 %v504
      %v579 = vunpack.c.l.b16 %v505
      %v580 = vunpack.c.l.b16 %v506
      %v581 = vunpack.c.l.b16 %v507
      %v582 = vunpack.c.l.b16 %v508
      %v583 = vunpack.c.l.b16 %v509
      %v584 = vunpack.c.l.b16 %v510
      %v585 = vunpack.c.l.b16 %v511
      %v586 = vunpack.c.l.b16 %v512
      %v587 = vunpack.c.l.b16 %v513
      %v588 = vunpack.c.l.b16 %v514
      %v589 = vpack.c.b16 %v574, %v573
      %v590 = vpack.c.b16 %v576, %v575
      %v591 = vpack.c.b16 %v578, %v577
      %v592 = vpack.c.b16 %v580, %v579
      %v593 = vpack.c.b16 %v582, %v581
      %v594 = vpack.c.b16 %v584, %v583
      %v595 = vpack.c.b16 %v586, %v585
      %v596 = vpack.c.b16 %v588, %v587
      %605 = vmatpush.bf16.msra.mxu0 %v596
      %606 = vmatpush.bf16.msra.mxu0 %v595
      %607 = vmatpush.bf16.msra.mxu0 %v594
      %608 = vmatpush.bf16.msra.mxu0 %v593
      %609 = vmatpush.bf16.msra.mxu0 %v592
      %610 = vmatpush.bf16.msra.mxu0 %v591
      %611 = vmatpush.bf16.msra.mxu0 %v590
      %612 = vmatpush.bf16.msra.mxu0 %v589
      %613 = vmatmul.bf16.gmra.mxu0 %v555
      %v614 = vpop.f32.mrf.mxu0
      %v615 = vadd.f32 0.0, %v614
      %v616 = vpop.f32.mrf.mxu0
      %v617 = vadd.f32 0.0, %v616
      %618 = vdwg.mxu0
      %v635 = vunpack.c.l.b16 %v516
      %v636 = vunpack.c.l.b16 %v517
      %v637 = vunpack.c.l.b16 %v518
      %v638 = vunpack.c.l.b16 %v519
      %v639 = vunpack.c.l.b16 %v520
      %v640 = vunpack.c.l.b16 %v521
      %v641 = vunpack.c.l.b16 %v522
      %v642 = vunpack.c.l.b16 %v523
      %v643 = vunpack.c.l.b16 %v524
      %v644 = vunpack.c.l.b16 %v525
      %v645 = vunpack.c.l.b16 %v526
      %v646 = vunpack.c.l.b16 %v527
      %v647 = vunpack.c.l.b16 %v528
      %v648 = vunpack.c.l.b16 %v529
      %v649 = vunpack.c.l.b16 %v530
      %v650 = vunpack.c.l.b16 %v531
      %v651 = vpack.c.b16 %v636, %v635
      %v652 = vpack.c.b16 %v638, %v637
      %v653 = vpack.c.b16 %v640, %v639
      %v654 = vpack.c.b16 %v642, %v641
      %v655 = vpack.c.b16 %v644, %v643
      %v656 = vpack.c.b16 %v646, %v645
      %v657 = vpack.c.b16 %v648, %v647
      %v658 = vpack.c.b16 %v650, %v649
      %667 = vmatpush.bf16.msra.mxu0 %v658
      %668 = vmatpush.bf16.msra.mxu0 %v657
      %669 = vmatpush.bf16.msra.mxu0 %v656
      %670 = vmatpush.bf16.msra.mxu0 %v655
      %671 = vmatpush.bf16.msra.mxu0 %v654
      %672 = vmatpush.bf16.msra.mxu0 %v653
      %673 = vmatpush.bf16.msra.mxu0 %v652
      %674 = vmatpush.bf16.msra.mxu0 %v651
      %675 = vmatmul.bf16.gmra.mxu0 %v555
      %v676 = vpop.f32.mrf.mxu0
      %v677 = vadd.f32 0.0, %v676
      %v678 = vpop.f32.mrf.mxu0
      %v679 = vadd.f32 0.0, %v678
      %680 = vdwg.mxu0
      %v697 = vunpack.c.l.b16 %v533
      %v698 = vunpack.c.l.b16 %v534
      %v699 = vunpack.c.l.b16 %v535
      %v700 = vunpack.c.l.b16 %v536
      %v701 = vunpack.c.l.b16 %v537
      %v702 = vunpack.c.l.b16 %v538
      %v703 = vunpack.c.l.b16 %v539
      %v704 = vunpack.c.l.b16 %v540
      %v705 = vunpack.c.l.b16 %v541
      %v706 = vunpack.c.l.b16 %v542
      %v707 = vunpack.c.l.b16 %v543
      %v708 = vunpack.c.l.b16 %v544
      %v709 = vunpack.c.l.b16 %v545
      %v710 = vunpack.c.l.b16 %v546
      %v711 = vunpack.c.l.b16 %v547
      %v712 = vunpack.c.l.b16 %v548
      %v713 = vpack.c.b16 %v698, %v697
      %v714 = vpack.c.b16 %v700, %v699
      %v715 = vpack.c.b16 %v702, %v701
      %v716 = vpack.c.b16 %v704, %v703
      %v717 = vpack.c.b16 %v706, %v705
      %v718 = vpack.c.b16 %v708, %v707
      %v719 = vpack.c.b16 %v710, %v709
      %v720 = vpack.c.b16 %v712, %v711
      %729 = vmatpush.bf16.msra.mxu0 %v720
      %730 = vmatpush.bf16.msra.mxu0 %v719
      %731 = vmatpush.bf16.msra.mxu0 %v718
      %732 = vmatpush.bf16.msra.mxu0 %v717
      %733 = vmatpush.bf16.msra.mxu0 %v716
      %734 = vmatpush.bf16.msra.mxu0 %v715
      %735 = vmatpush.bf16.msra.mxu0 %v714
      %736 = vmatpush.bf16.msra.mxu0 %v713
      %737 = vmatmul.bf16.gmra.mxu0 %v555
      %v738 = vpop.f32.mrf.mxu0
      %v739 = vadd.f32 0.0, %v738
      %v740 = vpop.f32.mrf.mxu0
      %v741 = vadd.f32 0.0, %v740
      %742 = vdwg.mxu0
      %v745 = vunpack.c.l.b16 %v497
      %v746 = vunpack.c.l.b16 %v498
      %v747 = vpack.c.b16 %v746, %v745
      %v765 = vunpack.c.l.b16 %v447
      %v766 = vunpack.c.l.b16 %v448
      %v767 = vunpack.c.l.b16 %v449
      %v768 = vunpack.c.l.b16 %v450
      %v769 = vunpack.c.l.b16 %v451
      %v770 = vunpack.c.l.b16 %v452
      %v771 = vunpack.c.l.b16 %v453
      %v772 = vunpack.c.l.b16 %v454
      %v773 = vunpack.c.l.b16 %v455
      %v774 = vunpack.c.l.b16 %v456
      %v775 = vunpack.c.l.b16 %v457
      %v776 = vunpack.c.l.b16 %v458
      %v777 = vunpack.c.l.b16 %v459
      %v778 = vunpack.c.l.b16 %v460
      %v779 = vunpack.c.l.b16 %v461
      %v780 = vunpack.c.l.b16 %v462
      %v781 = vpack.c.b16 %v766, %v765
      %v782 = vpack.c.b16 %v768, %v767
      %v783 = vpack.c.b16 %v770, %v769
      %v784 = vpack.c.b16 %v772, %v771
      %v785 = vpack.c.b16 %v774, %v773
      %v786 = vpack.c.b16 %v776, %v775
      %v787 = vpack.c.b16 %v778, %v777
      %v788 = vpack.c.b16 %v780, %v779
      %797 = vmatpush.bf16.msra.mxu0 %v788
      %798 = vmatpush.bf16.msra.mxu0 %v787
      %799 = vmatpush.bf16.msra.mxu0 %v786
      %800 = vmatpush.bf16.msra.mxu0 %v785
      %801 = vmatpush.bf16.msra.mxu0 %v784
      %802 = vmatpush.bf16.msra.mxu0 %v783
      %803 = vmatpush.bf16.msra.mxu0 %v782
      %804 = vmatpush.bf16.msra.mxu0 %v781
      %805 = vmatmul.bf16.gmra.mxu0 %v747
      %v806 = vpop.f32.mrf.mxu0
      %v807 = vadd.f32 %v615, %v806
      %v808 = vpop.f32.mrf.mxu0
      %v809 = vadd.f32 %v617, %v808
      %810 = vdwg.mxu0
      %v827 = vunpack.c.l.b16 %v464
      %v828 = vunpack.c.l.b16 %v465
      %v829 = vunpack.c.l.b16 %v466
      %v830 = vunpack.c.l.b16 %v467
      %v831 = vunpack.c.l.b16 %v468
      %v832 = vunpack.c.l.b16 %v469
      %v833 = vunpack.c.l.b16 %v470
      %v834 = vunpack.c.l.b16 %v471
      %v835 = vunpack.c.l.b16 %v472
      %v836 = vunpack.c.l.b16 %v473
      %v837 = vunpack.c.l.b16 %v474
      %v838 = vunpack.c.l.b16 %v475
      %v839 = vunpack.c.l.b16 %v476
      %v840 = vunpack.c.l.b16 %v477
      %v841 = vunpack.c.l.b16 %v478
      %v842 = vunpack.c.l.b16 %v479
      %v843 = vpack.c.b16 %v828, %v827
      %v844 = vpack.c.b16 %v830, %v829
      %v845 = vpack.c.b16 %v832, %v831
      %v846 = vpack.c.b16 %v834, %v833
      %v847 = vpack.c.b16 %v836, %v835
      %v848 = vpack.c.b16 %v838, %v837
      %v849 = vpack.c.b16 %v840, %v839
      %v850 = vpack.c.b16 %v842, %v841
      %859 = vmatpush.bf16.msra.mxu0 %v850
      %860 = vmatpush.bf16.msra.mxu0 %v849
      %861 = vmatpush.bf16.msra.mxu0 %v848
      %862 = vmatpush.bf16.msra.mxu0 %v847
      %863 = vmatpush.bf16.msra.mxu0 %v846
      %864 = vmatpush.bf16.msra.mxu0 %v845
      %865 = vmatpush.bf16.msra.mxu0 %v844
      %866 = vmatpush.bf16.msra.mxu0 %v843
      %867 = vmatmul.bf16.gmra.mxu0 %v747
      %v868 = vpop.f32.mrf.mxu0
      %v869 = vadd.f32 %v677, %v868
      %v870 = vpop.f32.mrf.mxu0
      %v871 = vadd.f32 %v679, %v870
      %872 = vdwg.mxu0
      %v889 = vunpack.c.l.b16 %v481
      %v890 = vunpack.c.l.b16 %v482
      %v891 = vunpack.c.l.b16 %v483
      %v892 = vunpack.c.l.b16 %v484
      %v893 = vunpack.c.l.b16 %v485
      %v894 = vunpack.c.l.b16 %v486
      %v895 = vunpack.c.l.b16 %v487
      %v896 = vunpack.c.l.b16 %v488
      %v897 = vunpack.c.l.b16 %v489
      %v898 = vunpack.c.l.b16 %v490
      %v899 = vunpack.c.l.b16 %v491
      %v900 = vunpack.c.l.b16 %v492
      %v901 = vunpack.c.l.b16 %v493
      %v902 = vunpack.c.l.b16 %v494
      %v903 = vunpack.c.l.b16 %v495
      %v904 = vunpack.c.l.b16 %v496
      %v905 = vpack.c.b16 %v890, %v889
      %v906 = vpack.c.b16 %v892, %v891
      %v907 = vpack.c.b16 %v894, %v893
      %v908 = vpack.c.b16 %v896, %v895
      %v909 = vpack.c.b16 %v898, %v897
      %v910 = vpack.c.b16 %v900, %v899
      %v911 = vpack.c.b16 %v902, %v901
      %v912 = vpack.c.b16 %v904, %v903
      %921 = vmatpush.bf16.msra.mxu0 %v912
      %922 = vmatpush.bf16.msra.mxu0 %v911
      %923 = vmatpush.bf16.msra.mxu0 %v910
      %924 = vmatpush.bf16.msra.mxu0 %v909
      %925 = vmatpush.bf16.msra.mxu0 %v908
      %926 = vmatpush.bf16.msra.mxu0 %v907
      %927 = vmatpush.bf16.msra.mxu0 %v906
      %928 = vmatpush.bf16.msra.mxu0 %v905
      %929 = vmatmul.bf16.gmra.mxu0 %v747
      %v930 = vpop.f32.mrf.mxu0
      %v931 = vadd.f32 %v739, %v930
      %v932 = vpop.f32.mrf.mxu0
      %v933 = vadd.f32 %v741, %v932
      %934 = vdwg.mxu0
      %v935 = vld [vmem:[%s5] sm:$0xf]
      %v936 = vld [vmem:[%s5 + $0x4] sm:$0xf]
      %v937 = vld [vmem:[%s5 + $0x8] sm:$0xf]
      %v938 = vld [vmem:[%s5 + $0xc] sm:$0xf]
      %v939 = vld [vmem:[%s5 + $0x10] sm:$0xf]
      %v940 = vld [vmem:[%s5 + $0x14] sm:$0xf]
      %v941 = vld [vmem:[%s5 + $0x18] sm:$0xf]
      %v942 = vld [vmem:[%s5 + $0x1c] sm:$0xf]
      %v943 = vld [vmem:[%s5 + $0x20] sm:$0xf]
      %v944 = vld [vmem:[%s5 + $0x24] sm:$0xf]
      %v945 = vld [vmem:[%s5 + $0x28] sm:$0xf]
      %v946 = vld [vmem:[%s5 + $0x2c] sm:$0xf]
      %v947 = vld [vmem:[%s5 + $0x30] sm:$0xf]
      %v948 = vld [vmem:[%s5 + $0x34] sm:$0xf]
      %v949 = vld [vmem:[%s5 + $0x38] sm:$0xf]
      %v950 = vld [vmem:[%s5 + $0x3c] sm:$0xf]
      %v951 = vld [vmem:[%s5 + $0x40] sm:$0xf]
      %v952 = vld [vmem:[%s5 + $0x44] sm:$0xf]
      %v953 = vld [vmem:[%s5 + $0x48] sm:$0xf]
      %v954 = vld [vmem:[%s5 + $0x4c] sm:$0xf]
      %v955 = vld [vmem:[%s5 + $0x50] sm:$0xf]
      %v956 = vld [vmem:[%s5 + $0x54] sm:$0xf]
      %v957 = vld [vmem:[%s5 + $0x58] sm:$0xf]
      %v958 = vld [vmem:[%s5 + $0x5c] sm:$0xf]
      %v959 = vld [vmem:[%s5 + $0x60] sm:$0xf]
      %v960 = vld [vmem:[%s5 + $0x64] sm:$0xf]
      %v961 = vld [vmem:[%s5 + $0x68] sm:$0xf]
      %v962 = vld [vmem:[%s5 + $0x6c] sm:$0xf]
      %v963 = vld [vmem:[%s5 + $0x70] sm:$0xf]
      %v964 = vld [vmem:[%s5 + $0x74] sm:$0xf]
      %v965 = vld [vmem:[%s5 + $0x78] sm:$0xf]
      %v966 = vld [vmem:[%s5 + $0x7c] sm:$0xf]
      %s967 = scalar_lea.vmem %s5, 128
      %v968 = vld [vmem:[%s967] sm:$0xf]
      %v969 = vld [vmem:[%s967 + $0x4] sm:$0xf]
      %v970 = vld [vmem:[%s967 + $0x8] sm:$0xf]
      %v971 = vld [vmem:[%s967 + $0xc] sm:$0xf]
      %v972 = vld [vmem:[%s967 + $0x10] sm:$0xf]
      %v973 = vld [vmem:[%s967 + $0x14] sm:$0xf]
      %v974 = vld [vmem:[%s967 + $0x18] sm:$0xf]
      %v975 = vld [vmem:[%s967 + $0x1c] sm:$0xf]
      %v976 = vld [vmem:[%s967 + $0x20] sm:$0xf]
      %v977 = vld [vmem:[%s967 + $0x24] sm:$0xf]
      %v978 = vld [vmem:[%s967 + $0x28] sm:$0xf]
      %v979 = vld [vmem:[%s967 + $0x2c] sm:$0xf]
      %v980 = vld [vmem:[%s967 + $0x30] sm:$0xf]
      %v981 = vld [vmem:[%s967 + $0x34] sm:$0xf]
      %v982 = vld [vmem:[%s967 + $0x38] sm:$0xf]
      %v983 = vld [vmem:[%s967 + $0x3c] sm:$0xf]
      %v984 = vld [vmem:[%s967 + $0x40] sm:$0xf]
      %v985 = vld [vmem:[%s967 + $0x44] sm:$0xf]
      %v986 = vld [vmem:[%s967 + $0x48] sm:$0xf]
      %v987 = vld [vmem:[%s967 + $0x4c] sm:$0xf]
      %v988 = vld [vmem:[%s967 + $0x50] sm:$0xf]
      %v989 = vld [vmem:[%s967 + $0x54] sm:$0xf]
      %v990 = vld [vmem:[%s967 + $0x58] sm:$0xf]
      %v991 = vld [vmem:[%s967 + $0x5c] sm:$0xf]
      %v992 = vld [vmem:[%s967 + $0x60] sm:$0xf]
      %v993 = vld [vmem:[%s967 + $0x64] sm:$0xf]
      %v994 = vld [vmem:[%s967 + $0x68] sm:$0xf]
      %v995 = vld [vmem:[%s967 + $0x6c] sm:$0xf]
      %v996 = vld [vmem:[%s967 + $0x70] sm:$0xf]
      %v997 = vld [vmem:[%s967 + $0x74] sm:$0xf]
      %v998 = vld [vmem:[%s967 + $0x78] sm:$0xf]
      %v999 = vld [vmem:[%s967 + $0x7c] sm:$0xf]
      %s1000 = scalar_lea.vmem %s5, 256
      %v1001 = vld [vmem:[%s1000] sm:$0xf]
      %v1002 = vld [vmem:[%s1000 + $0x4] sm:$0xf]
      %v1003 = vld [vmem:[%s1000 + $0x8] sm:$0xf]
      %v1004 = vld [vmem:[%s1000 + $0xc] sm:$0xf]
      %v1005 = vld [vmem:[%s1000 + $0x10] sm:$0xf]
      %v1006 = vld [vmem:[%s1000 + $0x14] sm:$0xf]
      %v1007 = vld [vmem:[%s1000 + $0x18] sm:$0xf]
      %v1008 = vld [vmem:[%s1000 + $0x1c] sm:$0xf]
      %v1009 = vld [vmem:[%s1000 + $0x20] sm:$0xf]
      %v1010 = vld [vmem:[%s1000 + $0x24] sm:$0xf]
      %v1011 = vld [vmem:[%s1000 + $0x28] sm:$0xf]
      %v1012 = vld [vmem:[%s1000 + $0x2c] sm:$0xf]
      %v1013 = vld [vmem:[%s1000 + $0x30] sm:$0xf]
      %v1014 = vld [vmem:[%s1000 + $0x34] sm:$0xf]
      %v1015 = vld [vmem:[%s1000 + $0x38] sm:$0xf]
      %v1016 = vld [vmem:[%s1000 + $0x3c] sm:$0xf]
      %v1017 = vld [vmem:[%s1000 + $0x40] sm:$0xf]
      %v1018 = vld [vmem:[%s1000 + $0x44] sm:$0xf]
      %v1019 = vld [vmem:[%s1000 + $0x48] sm:$0xf]
      %v1020 = vld [vmem:[%s1000 + $0x4c] sm:$0xf]
      %v1021 = vld [vmem:[%s1000 + $0x50] sm:$0xf]
      %v1022 = vld [vmem:[%s1000 + $0x54] sm:$0xf]
      %v1023 = vld [vmem:[%s1000 + $0x58] sm:$0xf]
      %v1024 = vld [vmem:[%s1000 + $0x5c] sm:$0xf]
      %v1025 = vld [vmem:[%s1000 + $0x60] sm:$0xf]
      %v1026 = vld [vmem:[%s1000 + $0x64] sm:$0xf]
      %v1027 = vld [vmem:[%s1000 + $0x68] sm:$0xf]
      %v1028 = vld [vmem:[%s1000 + $0x6c] sm:$0xf]
      %v1029 = vld [vmem:[%s1000 + $0x70] sm:$0xf]
      %v1030 = vld [vmem:[%s1000 + $0x74] sm:$0xf]
      %v1031 = vld [vmem:[%s1000 + $0x78] sm:$0xf]
      %v1032 = vld [vmem:[%s1000 + $0x7c] sm:$0xf]
      %v1033 = vld [vmem:[%s426] sm:$0xff]
      %v1034 = vld [vmem:[%s426 + $0x8] sm:$0xff]
      %v1037 = vunpack.c.l.b16 %v1033
      %v1038 = vunpack.c.h.b16 %v1033
      %v1039 = vunpack.c.l.b16 %v1034
      %v1040 = vunpack.c.h.b16 %v1034
      %v1041 = vpack.c.b16 %v1039, %v1037
      %v1042 = vpack.c.b16 %v1040, %v1038
      %v1077 = vunpack.c.l.b16 %v935
      %v1078 = vunpack.c.l.b16 %v936
      %v1079 = vunpack.c.l.b16 %v937
      %v1080 = vunpack.c.l.b16 %v938
      %v1081 = vunpack.c.l.b16 %v939
      %v1082 = vunpack.c.l.b16 %v940
      %v1083 = vunpack.c.l.b16 %v941
      %v1084 = vunpack.c.l.b16 %v942
      %v1085 = vunpack.c.l.b16 %v943
      %v1086 = vunpack.c.l.b16 %v944
      %v1087 = vunpack.c.l.b16 %v945
      %v1088 = vunpack.c.l.b16 %v946
      %v1089 = vunpack.c.l.b16 %v947
      %v1090 = vunpack.c.l.b16 %v948
      %v1091 = vunpack.c.l.b16 %v949
      %v1092 = vunpack.c.l.b16 %v950
      %v1093 = vunpack.c.l.b16 %v951
      %v1094 = vunpack.c.l.b16 %v952
      %v1095 = vunpack.c.l.b16 %v953
      %v1096 = vunpack.c.l.b16 %v954
      %v1097 = vunpack.c.l.b16 %v955
      %v1098 = vunpack.c.l.b16 %v956
      %v1099 = vunpack.c.l.b16 %v957
      %v1100 = vunpack.c.l.b16 %v958
      %v1101 = vunpack.c.l.b16 %v959
      %v1102 = vunpack.c.l.b16 %v960
      %v1103 = vunpack.c.l.b16 %v961
      %v1104 = vunpack.c.l.b16 %v962
      %v1105 = vunpack.c.l.b16 %v963
      %v1106 = vunpack.c.l.b16 %v964
      %v1107 = vunpack.c.l.b16 %v965
      %v1108 = vunpack.c.l.b16 %v966
      %v1109 = vpack.c.b16 %v1078, %v1077
      %v1110 = vpack.c.b16 %v1080, %v1079
      %v1111 = vpack.c.b16 %v1082, %v1081
      %v1112 = vpack.c.b16 %v1084, %v1083
      %v1113 = vpack.c.b16 %v1086, %v1085
      %v1114 = vpack.c.b16 %v1088, %v1087
      %v1115 = vpack.c.b16 %v1090, %v1089
      %v1116 = vpack.c.b16 %v1092, %v1091
      %v1117 = vpack.c.b16 %v1094, %v1093
      %v1118 = vpack.c.b16 %v1096, %v1095
      %v1119 = vpack.c.b16 %v1098, %v1097
      %v1120 = vpack.c.b16 %v1100, %v1099
      %v1121 = vpack.c.b16 %v1102, %v1101
      %v1122 = vpack.c.b16 %v1104, %v1103
      %v1123 = vpack.c.b16 %v1106, %v1105
      %v1124 = vpack.c.b16 %v1108, %v1107
      %1141 = vmatpush.bf16.msra.mxu0 %v1116
      %1142 = vmatpush.bf16.msra.mxu0 %v1115
      %1143 = vmatpush.bf16.msra.mxu0 %v1114
      %1144 = vmatpush.bf16.msra.mxu0 %v1113
      %1145 = vmatpush.bf16.msra.mxu0 %v1112
      %1146 = vmatpush.bf16.msra.mxu0 %v1111
      %1147 = vmatpush.bf16.msra.mxu0 %v1110
      %1148 = vmatpush.bf16.msra.mxu0 %v1109
      %1149 = vmatmul.bf16.gmra.mxu0 %v1041
      %v1150 = vpop.f32.mrf.mxu0
      %v1151 = vadd.f32 0.0, %v1150
      %v1152 = vpop.f32.mrf.mxu0
      %v1153 = vadd.f32 0.0, %v1152
      %1154 = vdwg.mxu0
      %1155 = vmatpush.bf16.msra.mxu0 %v1124
      %1156 = vmatpush.bf16.msra.mxu0 %v1123
      %1157 = vmatpush.bf16.msra.mxu0 %v1122
      %1158 = vmatpush.bf16.msra.mxu0 %v1121
      %1159 = vmatpush.bf16.msra.mxu0 %v1120
      %1160 = vmatpush.bf16.msra.mxu0 %v1119
      %1161 = vmatpush.bf16.msra.mxu0 %v1118
      %1162 = vmatpush.bf16.msra.mxu0 %v1117
      %1163 = vmatmul.bf16.gmra.mxu0 %v1042
      %v1164 = vpop.f32.mrf.mxu0
      %v1165 = vadd.f32 %v1151, %v1164
      %v1166 = vpop.f32.mrf.mxu0
      %v1167 = vadd.f32 %v1153, %v1166
      %1168 = vdwg.mxu0
      %v1201 = vunpack.c.l.b16 %v968
      %v1202 = vunpack.c.l.b16 %v969
      %v1203 = vunpack.c.l.b16 %v970
      %v1204 = vunpack.c.l.b16 %v971
      %v1205 = vunpack.c.l.b16 %v972
      %v1206 = vunpack.c.l.b16 %v973
      %v1207 = vunpack.c.l.b16 %v974
      %v1208 = vunpack.c.l.b16 %v975
      %v1209 = vunpack.c.l.b16 %v976
      %v1210 = vunpack.c.l.b16 %v977
      %v1211 = vunpack.c.l.b16 %v978
      %v1212 = vunpack.c.l.b16 %v979
      %v1213 = vunpack.c.l.b16 %v980
      %v1214 = vunpack.c.l.b16 %v981
      %v1215 = vunpack.c.l.b16 %v982
      %v1216 = vunpack.c.l.b16 %v983
      %v1217 = vunpack.c.l.b16 %v984
      %v1218 = vunpack.c.l.b16 %v985
      %v1219 = vunpack.c.l.b16 %v986
      %v1220 = vunpack.c.l.b16 %v987
      %v1221 = vunpack.c.l.b16 %v988
      %v1222 = vunpack.c.l.b16 %v989
      %v1223 = vunpack.c.l.b16 %v990
      %v1224 = vunpack.c.l.b16 %v991
      %v1225 = vunpack.c.l.b16 %v992
      %v1226 = vunpack.c.l.b16 %v993
      %v1227 = vunpack.c.l.b16 %v994
      %v1228 = vunpack.c.l.b16 %v995
      %v1229 = vunpack.c.l.b16 %v996
      %v1230 = vunpack.c.l.b16 %v997
      %v1231 = vunpack.c.l.b16 %v998
      %v1232 = vunpack.c.l.b16 %v999
      %v1233 = vpack.c.b16 %v1202, %v1201
      %v1234 = vpack.c.b16 %v1204, %v1203
      %v1235 = vpack.c.b16 %v1206, %v1205
      %v1236 = vpack.c.b16 %v1208, %v1207
      %v1237 = vpack.c.b16 %v1210, %v1209
      %v1238 = vpack.c.b16 %v1212, %v1211
      %v1239 = vpack.c.b16 %v1214, %v1213
      %v1240 = vpack.c.b16 %v1216, %v1215
      %v1241 = vpack.c.b16 %v1218, %v1217
      %v1242 = vpack.c.b16 %v1220, %v1219
      %v1243 = vpack.c.b16 %v1222, %v1221
      %v1244 = vpack.c.b16 %v1224, %v1223
      %v1245 = vpack.c.b16 %v1226, %v1225
      %v1246 = vpack.c.b16 %v1228, %v1227
      %v1247 = vpack.c.b16 %v1230, %v1229
      %v1248 = vpack.c.b16 %v1232, %v1231
      %1265 = vmatpush.bf16.msra.mxu0 %v1240
      %1266 = vmatpush.bf16.msra.mxu0 %v1239
      %1267 = vmatpush.bf16.msra.mxu0 %v1238
      %1268 = vmatpush.bf16.msra.mxu0 %v1237
      %1269 = vmatpush.bf16.msra.mxu0 %v1236
      %1270 = vmatpush.bf16.msra.mxu0 %v1235
      %1271 = vmatpush.bf16.msra.mxu0 %v1234
      %1272 = vmatpush.bf16.msra.mxu0 %v1233
      %1273 = vmatmul.bf16.gmra.mxu0 %v1041
      %v1274 = vpop.f32.mrf.mxu0
      %v1275 = vadd.f32 0.0, %v1274
      %v1276 = vpop.f32.mrf.mxu0
      %v1277 = vadd.f32 0.0, %v1276
      %1278 = vdwg.mxu0
      %1279 = vmatpush.bf16.msra.mxu0 %v1248
      %1280 = vmatpush.bf16.msra.mxu0 %v1247
      %1281 = vmatpush.bf16.msra.mxu0 %v1246
      %1282 = vmatpush.bf16.msra.mxu0 %v1245
      %1283 = vmatpush.bf16.msra.mxu0 %v1244
      %1284 = vmatpush.bf16.msra.mxu0 %v1243
      %1285 = vmatpush.bf16.msra.mxu0 %v1242
      %1286 = vmatpush.bf16.msra.mxu0 %v1241
      %1287 = vmatmul.bf16.gmra.mxu0 %v1042
      %v1288 = vpop.f32.mrf.mxu0
      %v1289 = vadd.f32 %v1275, %v1288
      %v1290 = vpop.f32.mrf.mxu0
      %v1291 = vadd.f32 %v1277, %v1290
      %1292 = vdwg.mxu0
      %v1325 = vunpack.c.l.b16 %v1001
      %v1326 = vunpack.c.l.b16 %v1002
      %v1327 = vunpack.c.l.b16 %v1003
      %v1328 = vunpack.c.l.b16 %v1004
      %v1329 = vunpack.c.l.b16 %v1005
      %v1330 = vunpack.c.l.b16 %v1006
      %v1331 = vunpack.c.l.b16 %v1007
      %v1332 = vunpack.c.l.b16 %v1008
      %v1333 = vunpack.c.l.b16 %v1009
      %v1334 = vunpack.c.l.b16 %v1010
      %v1335 = vunpack.c.l.b16 %v1011
      %v1336 = vunpack.c.l.b16 %v1012
      %v1337 = vunpack.c.l.b16 %v1013
      %v1338 = vunpack.c.l.b16 %v1014
      %v1339 = vunpack.c.l.b16 %v1015
      %v1340 = vunpack.c.l.b16 %v1016
      %v1341 = vunpack.c.l.b16 %v1017
      %v1342 = vunpack.c.l.b16 %v1018
      %v1343 = vunpack.c.l.b16 %v1019
      %v1344 = vunpack.c.l.b16 %v1020
      %v1345 = vunpack.c.l.b16 %v1021
      %v1346 = vunpack.c.l.b16 %v1022
      %v1347 = vunpack.c.l.b16 %v1023
      %v1348 = vunpack.c.l.b16 %v1024
      %v1349 = vunpack.c.l.b16 %v1025
      %v1350 = vunpack.c.l.b16 %v1026
      %v1351 = vunpack.c.l.b16 %v1027
      %v1352 = vunpack.c.l.b16 %v1028
      %v1353 = vunpack.c.l.b16 %v1029
      %v1354 = vunpack.c.l.b16 %v1030
      %v1355 = vunpack.c.l.b16 %v1031
      %v1356 = vunpack.c.l.b16 %v1032
      %v1357 = vpack.c.b16 %v1326, %v1325
      %v1358 = vpack.c.b16 %v1328, %v1327
      %v1359 = vpack.c.b16 %v1330, %v1329
      %v1360 = vpack.c.b16 %v1332, %v1331
      %v1361 = vpack.c.b16 %v1334, %v1333
      %v1362 = vpack.c.b16 %v1336, %v1335
      %v1363 = vpack.c.b16 %v1338, %v1337
      %v1364 = vpack.c.b16 %v1340, %v1339
      %v1365 = vpack.c.b16 %v1342, %v1341
      %v1366 = vpack.c.b16 %v1344, %v1343
      %v1367 = vpack.c.b16 %v1346, %v1345
      %v1368 = vpack.c.b16 %v1348, %v1347
      %v1369 = vpack.c.b16 %v1350, %v1349
      %v1370 = vpack.c.b16 %v1352, %v1351
      %v1371 = vpack.c.b16 %v1354, %v1353
      %v1372 = vpack.c.b16 %v1356, %v1355
      %1389 = vmatpush.bf16.msra.mxu0 %v1364
      %1390 = vmatpush.bf16.msra.mxu0 %v1363
      %1391 = vmatpush.bf16.msra.mxu0 %v1362
      %1392 = vmatpush.bf16.msra.mxu0 %v1361
      %1393 = vmatpush.bf16.msra.mxu0 %v1360
      %1394 = vmatpush.bf16.msra.mxu0 %v1359
      %1395 = vmatpush.bf16.msra.mxu0 %v1358
      %1396 = vmatpush.bf16.msra.mxu0 %v1357
      %1397 = vmatmul.bf16.gmra.mxu0 %v1041
      %v1398 = vpop.f32.mrf.mxu0
      %v1399 = vadd.f32 0.0, %v1398
      %v1400 = vpop.f32.mrf.mxu0
      %v1401 = vadd.f32 0.0, %v1400
      %1402 = vdwg.mxu0
      %1403 = vmatpush.bf16.msra.mxu0 %v1372
      %1404 = vmatpush.bf16.msra.mxu0 %v1371
      %1405 = vmatpush.bf16.msra.mxu0 %v1370
      %1406 = vmatpush.bf16.msra.mxu0 %v1369
      %1407 = vmatpush.bf16.msra.mxu0 %v1368
      %1408 = vmatpush.bf16.msra.mxu0 %v1367
      %1409 = vmatpush.bf16.msra.mxu0 %v1366
      %1410 = vmatpush.bf16.msra.mxu0 %v1365
      %1411 = vmatmul.bf16.gmra.mxu0 %v1042
      %v1412 = vpop.f32.mrf.mxu0
      %v1413 = vadd.f32 %v1399, %v1412
      %v1414 = vpop.f32.mrf.mxu0
      %v1415 = vadd.f32 %v1401, %v1414
      %1416 = vdwg.mxu0
      %v1417 = vadd.f32 %v807, %v1165
      %v1418 = vadd.f32 %v809, %v1167
      %v1419 = vadd.f32 %v869, %v1289
      %v1420 = vadd.f32 %v871, %v1291
      %v1421 = vadd.f32 %v931, %v1413
      %v1422 = vadd.f32 %v933, %v1415
      %v1423 = vlaneseq
      %v1424 = vshrl.u32 %v1423, 7
      %v1425 = vadd.s32 %v1424, 8
      %v1426 = vrot.slane %v1417, 7
      %v1427 = vrot.slane %v1418, 7
      %vm1428 = vcmp.lt.s32.totalorder %v1424, 1
      %v1429 = vsel %vm1428, %v1426, %v1427
      %v1430 = vsel %vm1428, %v1427, %v1426
      %v1431 = vrot.slane %v1421, 1
      %v1432 = vrot.slane %v1422, 1
      %vm1433 = vcmp.lt.s32.totalorder %v1424, 7
      %v1434 = vsel %vm1433, %v1431, %v1432
      %v1435 = vsel %vm1433, %v1432, %v1431
      %vm1436 = vcmp.eq.s32.totalorder %v1424, 0
      %vm1437 = vcmp.eq.s32.totalorder %v1425, 0
      %v1438 = vsel %vm1436, 0.0, %v1430
      %v1439 = vsel %vm1437, 0.0, %v1429
      %vm1440 = vcmp.eq.s32.totalorder %v1424, 15
      %vm1441 = vcmp.eq.s32.totalorder %v1425, 15
      %v1442 = vsel %vm1440, 0.0, %v1434
      %v1443 = vsel %vm1441, 0.0, %v1435
      %v1444 = vadd.f32 %v1419, %v1438
      %v1445 = vadd.f32 %v1420, %v1439
      %v1446 = vadd.f32 %v1444, %v1442
      %v1447 = vadd.f32 %v1445, %v1443
      %v1448 = vld [vmem:[%s6] sm:$0x1]
      %v1450 = vperm.slane %v1448, 0
      %v1452 = vadd.f32 %v1446, %v1450
      %v1453 = vadd.f32 %v1447, %v1450
      %v1454 = vmax.f32 %v1452, 0.0
      %v1455 = vmax.f32 %v1453, 0.0
      %v1456 = vpack.c.bf16 %v1454, %v1454
      %v1457 = vpack.c.bf16 %v1455, %v1455
      %1458 = vst [vmem:[%s435] sm:$0xf] %v1456
      %1459 = vst [vmem:[%s435 + $0x4] sm:$0xf] %v1457
      %v1460 = vld [vmem:[%s7] sm:$0xf]
      %v1461 = vld [vmem:[%s7 + $0x4] sm:$0xf]
      %v1462 = vld [vmem:[%s7 + $0x8] sm:$0xf]
      %v1463 = vld [vmem:[%s7 + $0xc] sm:$0xf]
      %v1464 = vld [vmem:[%s7 + $0x10] sm:$0xf]
      %v1465 = vld [vmem:[%s7 + $0x14] sm:$0xf]
      %v1466 = vld [vmem:[%s7 + $0x18] sm:$0xf]
      %v1467 = vld [vmem:[%s7 + $0x1c] sm:$0xf]
      %v1468 = vld [vmem:[%s7 + $0x20] sm:$0xf]
      %v1469 = vld [vmem:[%s7 + $0x24] sm:$0xf]
      %v1470 = vld [vmem:[%s7 + $0x28] sm:$0xf]
      %v1471 = vld [vmem:[%s7 + $0x2c] sm:$0xf]
      %v1472 = vld [vmem:[%s7 + $0x30] sm:$0xf]
      %v1473 = vld [vmem:[%s7 + $0x34] sm:$0xf]
      %v1474 = vld [vmem:[%s7 + $0x38] sm:$0xf]
      %v1475 = vld [vmem:[%s7 + $0x3c] sm:$0xf]
      %v1476 = vld [vmem:[%s8] sm:$0x1]
      %v1478 = vperm.slane %v1476, 0
      %v1482 = vunpack.c.l.b16 %v1456
      %v1483 = vunpack.c.l.b16 %v1457
      %v1484 = vpack.c.b16 %v1483, %v1482
      %v1502 = vunpack.c.l.b16 %v1460
      %v1503 = vunpack.c.l.b16 %v1461
      %v1504 = vunpack.c.l.b16 %v1462
      %v1505 = vunpack.c.l.b16 %v1463
      %v1506 = vunpack.c.l.b16 %v1464
      %v1507 = vunpack.c.l.b16 %v1465
      %v1508 = vunpack.c.l.b16 %v1466
      %v1509 = vunpack.c.l.b16 %v1467
      %v1510 = vunpack.c.l.b16 %v1468
      %v1511 = vunpack.c.l.b16 %v1469
      %v1512 = vunpack.c.l.b16 %v1470
      %v1513 = vunpack.c.l.b16 %v1471
      %v1514 = vunpack.c.l.b16 %v1472
      %v1515 = vunpack.c.l.b16 %v1473
      %v1516 = vunpack.c.l.b16 %v1474
      %v1517 = vunpack.c.l.b16 %v1475
      %v1518 = vpack.c.b16 %v1503, %v1502
      %v1519 = vpack.c.b16 %v1505, %v1504
      %v1520 = vpack.c.b16 %v1507, %v1506
      %v1521 = vpack.c.b16 %v1509, %v1508
      %v1522 = vpack.c.b16 %v1511, %v1510
      %v1523 = vpack.c.b16 %v1513, %v1512
      %v1524 = vpack.c.b16 %v1515, %v1514
      %v1525 = vpack.c.b16 %v1517, %v1516
      %1534 = vmatpush.bf16.msra.mxu0 %v1525
      %1535 = vmatpush.bf16.msra.mxu0 %v1524
      %1536 = vmatpush.bf16.msra.mxu0 %v1523
      %1537 = vmatpush.bf16.msra.mxu0 %v1522
      %1538 = vmatpush.bf16.msra.mxu0 %v1521
      %1539 = vmatpush.bf16.msra.mxu0 %v1520
      %1540 = vmatpush.bf16.msra.mxu0 %v1519
      %1541 = vmatpush.bf16.msra.mxu0 %v1518
      %1542 = vmatmul.bf16.gmra.mxu0 %v1484
      %v1543 = vpop.f32.mrf.mxu0
      %v1544 = vadd.f32 %v1478, %v1543
      %v1545 = vpop.f32.mrf.mxu0
      %v1546 = vadd.f32 %v1478, %v1545
      %1547 = vdwg.mxu0
      %1548 = vst [vmem:[%s445] sm:$0xff] %v1544
      %1549 = vst [vmem:[%s445 + $0x8] sm:$0xff] %v1546
      %s1550 = smul.u32 2, %s27
      %p1551 = scmp.lt.s32.totalorder %s26, 1
      %s1552 = scalar_select %p1551, %s26, 1
      %p1553 = scmp.lt.s32.totalorder %s1550, 1
      %s1554 = scalar_select %p1553, %s1550, 1
      %s1555 = smul.addr %s1552, 2
      %s1556 = sadd.s32 %s1554, %s1555
      %s1557 = smul.addr %s1556, 4
      %s1558 = scalar_lea.vmem %s9, %s1557
      %s1559 = smul.u32 2, %s27
      %p1560 = scmp.lt.s32.totalorder %s26, 1
      %s1561 = scalar_select %p1560, %s26, 1
      %p1562 = scmp.lt.s32.totalorder %s1559, 1
      %s1563 = scalar_select %p1562, %s1559, 1
      %s1564 = smul.addr %s1561, 2
      %s1565 = sadd.s32 %s1563, %s1564
      %s1566 = smul.addr %s1565, 8
      %s1567 = scalar_lea.vmem %s10, %s1566
      // Predicated region
      $region57: #{unetplusplus_forward.11} parent=55 // pred_check
        %p1568 = pneg %p258
      $region58: #{unetplusplus_forward.11} parent=55 // pred_check_branch
        %1570 = sbr.rel (%p1568) target = $region60
      $region59: #{unetplusplus_forward.11} parent=55 // pred_region
        %s1571 = smul.u32 2, %s27
      $region60: #{unetplusplus_forward.11} parent=55 // pred_fallthru
        _
      // Predicated region
      $region61: #{unetplusplus_forward.11} parent=55 // pred_check
        %p1572 = pneg %p286
      $region62: #{unetplusplus_forward.11} parent=55 // pred_check_branch
        %1574 = sbr.rel (%p1572) target = $region64
      $region63: #{unetplusplus_forward.11} parent=55 // pred_region
        %s1575 = smul.u32 2, %s27
      $region64: #{unetplusplus_forward.11} parent=55 // pred_fallthru
        _
    $region56: #{unetplusplus_forward.11} parent=5 // pred_fallthru
      _
    %p1576 = scmp.le.s32.totalorder 2, %s17
    // Predicated region
    $region65: #{unetplusplus_forward.11} parent=5 // pred_check
      %p1577 = pneg %p1576
    $region66: #{unetplusplus_forward.11} parent=5 // pred_check_branch
      %1579 = sbr.rel (%p1577) target = $region68
    $region67: #{unetplusplus_forward.11} parent=5 // pred_region
      %s1580 = ssub.s32 %s17, 2
      // Predicated region
      $region69: #{unetplusplus_forward.11} parent=67 // pred_check
        %p1581 = pneg %p264
      $region70: #{unetplusplus_forward.11} parent=67 // pred_check_branch
        %1583 = sbr.rel (%p1581) target = $region72
      $region71: #{unetplusplus_forward.11} parent=67 // pred_region
        %s1584 = smul.u32 2, %s29
        %p1585 = scmp.lt.s32.totalorder %s28, 1
        %s1586 = scalar_select %p1585, %s28, 1
        %p1587 = scmp.lt.s32.totalorder %s1584, 1
        %s1588 = scalar_select %p1587, %s1584, 1
        %s1589 = smul.addr %s1586, 2
        %s1590 = sadd.s32 %s1588, %s1589
        %s1591 = smul.addr %s1590, 4
        %s1592 = scalar_lea.vmem %s9, %s1591
      $region72: #{unetplusplus_forward.11} parent=67 // pred_fallthru
        _
      // Predicated region
      $region73: #{unetplusplus_forward.11} parent=67 // pred_check
        %p1593 = pneg %p292
      $region74: #{unetplusplus_forward.11} parent=67 // pred_check_branch
        %1595 = sbr.rel (%p1593) target = $region76
      $region75: #{unetplusplus_forward.11} parent=67 // pred_region
        %s1596 = smul.u32 2, %s29
        %p1597 = scmp.lt.s32.totalorder %s28, 1
        %s1598 = scalar_select %p1597, %s28, 1
        %p1599 = scmp.lt.s32.totalorder %s1596, 1
        %s1600 = scalar_select %p1599, %s1596, 1
        %s1601 = smul.addr %s1598, 2
        %s1602 = sadd.s32 %s1600, %s1601
        %s1603 = smul.addr %s1602, 8
        %s1604 = scalar_lea.vmem %s10, %s1603
      $region76: #{unetplusplus_forward.11} parent=67 // pred_fallthru
        _
    $region68: #{unetplusplus_forward.11} parent=5 // pred_fallthru
      _
  $region6: #{unetplusplus_forward.11} parent=0 // loop_footer
    %s21 = sadd.s32 1, %s17
  $region7: #{unetplusplus_forward.11} parent=0 // loop_footer_branch
    %16 = sbr.rel target = $region3
  $region8: #{unetplusplus_forward.11} parent=0 // loop_exit
    _

</llo_original>
